<compile_context>
chip_gen: v6e
topology: v6e:2x2x1
jax: 0.10.0
libtpu: 0.0.40
codegen_flags: <defaults>
</compile_context>

<pallas_src>
import functools

import jax
import jax.numpy as jnp
from jax.experimental import pallas as pl
from jax.experimental.pallas import tpu as pltpu

NUM_GROUPS = 32
EPS = 1e-5


def _choose_tq(hw, max_tq):
    """Tile size that divides HW: prefer multiples of 128 (MXU-native), then multiples
    of 8. Never silently falls back to TQ=HW for large HW (that would reinstate an
    (HW, HW)-scale score buffer)."""
    if hw <= max_tq:
        return hw
    t = max_tq - (max_tq % 128)
    while t >= 128:
        if hw % t == 0:
            return t
        t -= 128
    t = max_tq - (max_tq % 8)
    while t >= 8:
        if hw % t == 0:
            return t
        t -= 8
    # TODO(synk): pad + mask the query axis instead of erroring for pathological HW.
    raise ValueError(f"H*W={hw} has no tile divisor (multiple of 8, <= {max_tq})")


def _attn_block_kernel(x_ref, gmat_ref, gamma_ref, beta_ref,
                       wq_ref, bq_ref, wkv_ref, bv_ref, wp_ref, bp_ref,
                       o_ref,
                       k_sc, v_sc, scale_sc, shift_sc,
                       *, C, TQ, NCHUNK, inv_count):
    sp = pl.program_id(1)
    qi = pl.program_id(2)
    nqi = pl.num_programs(2)

    # ---- once per (batch element, query split): GroupNorm stats + K|V projection ----
    @pl.when(qi == 0)
    def _prologue():
        ones_row = jnp.ones((1, TQ), jnp.float32)          # hoisted out of the loops

        # pass A: per-channel sums on the MXU, chunked over HW
        def _sum_body(ci, acc):
            r = pl.multiple_of(ci * TQ, TQ)
            xc = x_ref[0, pl.ds(r, TQ), :]
            return acc + jnp.dot(ones_row, xc, preferred_element_type=jnp.float32)

        ssum = jax.lax.fori_loop(0, NCHUNK, _sum_body, jnp.zeros((1, C), jnp.float32))
        mean = jnp.dot(ssum, gmat_ref[...],
                       preferred_element_type=jnp.float32) * inv_count   # (1, C)

        # pass B: centered sum of squares (two-pass variance, no E[x^2]-E[x]^2 cancellation)
        def _ssq_body(ci, acc):
            r = pl.multiple_of(ci * TQ, TQ)
            cent = x_ref[0, pl.ds(r, TQ), :] - mean
            return acc + jnp.dot(ones_row, cent * cent,
                                 preferred_element_type=jnp.float32)

        ssq = jax.lax.fori_loop(0, NCHUNK, _ssq_body, jnp.zeros((1, C), jnp.float32))
        var = jnp.dot(ssq, gmat_ref[...],
                      preferred_element_type=jnp.float32) * inv_count

        inv = jax.lax.rsqrt(var + EPS)
        scale = inv * gamma_ref[...]                       # folded GroupNorm affine
        shift = beta_ref[...] - mean * scale
        scale_sc[...] = scale
        shift_sc[...] = shift

        bv = bv_ref[...]

        # pass C: chunked fused K|V projection straight into bf16 scratch
        # (k bias dropped -- constant along the softmax axis; bv added only to V half)
        @pl.loop(0, NCHUNK)
        def _kv_body(ci):
            r = pl.multiple_of(ci * TQ, TQ)
            h = (x_ref[0, pl.ds(r, TQ), :] * scale + shift).astype(jnp.bfloat16)
            kv = jnp.dot(h, wkv_ref[...], preferred_element_type=jnp.float32)  # (TQ, 2C)
            k_sc[pl.ds(r, TQ), :] = kv[:, :C].astype(jnp.bfloat16)
            v_sc[pl.ds(r, TQ), :] = (kv[:, C:] + bv).astype(jnp.bfloat16)

    # ---- per query tile ----
    t = sp * nqi + qi
    row0 = pl.multiple_of(t * TQ, TQ)
    x_q = x_ref[0, pl.ds(row0, TQ), :]                                 # (TQ, C) f32
    h_q = (x_q * scale_sc[...] + shift_sc[...]).astype(jnp.bfloat16)

    # 1/sqrt(C) attention scale already folded into wq/bq in the wrapper
    q = (jnp.dot(h_q, wq_ref[...], preferred_element_type=jnp.float32)
         + bq_ref[...]).astype(jnp.bfloat16)

    # scores: contract the channel dim of q and k (no explicit transpose)
    s = jax.lax.dot_general(q, k_sc[...], (((1,), (1,)), ((), ())),
                            preferred_element_type=jnp.float32)        # (TQ, HW) f32
    m = jnp.max(s, axis=-1, keepdims=True)
    e = jnp.exp((s - m).astype(jnp.bfloat16))                          # bf16 EUP exp
    denom = jnp.sum(e.astype(jnp.float32), axis=-1, keepdims=True)     # f32 row-sum
    a = jnp.dot(e, v_sc[...], preferred_element_type=jnp.float32)      # (TQ, C) f32
    a = a * pl.reciprocal(denom, approx=True)                          # normalize after p@v

    out = jnp.dot(a.astype(jnp.bfloat16), wp_ref[...],
                  preferred_element_type=jnp.float32) + bp_ref[...]
    o_ref[0] = x_q + out                                               # residual in f32


def attn_block_hwc(x_hwc, params, *, max_tq=None):
    """Channels-last entry point: x_hwc is (B, H*W, C) float32. Use this directly if the
    surrounding model is channels-last (skips two full HBM transpose passes)."""
    B, HW, C = x_hwc.shape
    assert C % NUM_GROUPS == 0, "GroupNorm(32, C) requires C % 32 == 0"
    cg = C // NUM_GROUPS

    try:
        info = pltpu.get_tpu_info()
        vmem_cap = int(getattr(info, "vmem_capacity_bytes", 64 * 1024 * 1024))
    except Exception:
        vmem_cap = 64 * 1024 * 1024
    if max_tq is None:
        # bigger tiles on 128 MiB parts (v5e/v6e), tighter on 64 MiB (v7x)
        max_tq = 512 if vmem_cap >= 100 * 1024 * 1024 else 256
    vmem_limit = min(vmem_cap * 3 // 4, 96 * 1024 * 1024)

    TQ = _choose_tq(HW, max_tq)
    NQ = HW // TQ
    # v7x has 2 TensorCores per chip: if B == 1, split the query axis so both get work.
    qsplit = 2 if (B == 1 and NQ % 2 == 0 and NQ >= 2) else 1
    nqi = NQ // qsplit

    inv_count = 1.0 / float(HW * cg)
    attn_scale = 1.0 / (C ** 0.5)

    # group-membership matrix: gmat[c, c'] = 1 if c and c' are in the same group
    gid = jnp.arange(C) // cg
    gmat = (gid[:, None] == gid[None, :]).astype(jnp.float32)          # (C, C)

    gamma = params["gamma"].reshape(1, C).astype(jnp.float32)
    beta = params["beta"].reshape(1, C).astype(jnp.float32)
    # conv weight (out, in, 1, 1) -> (in, out) so h @ W == conv1x1(h); bf16 for the MXU.
    # Fold the 1/sqrt(C) attention scale into wq/bq at trace time.
    wq = (params["wq"].reshape(C, C).T * attn_scale).astype(jnp.bfloat16)
    bq = (params["bq"].reshape(1, C) * attn_scale).astype(jnp.float32)
    wk = params["wk"].reshape(C, C).T
    wv = params["wv"].reshape(C, C).T
    wkv = jnp.concatenate([wk, wv], axis=1).astype(jnp.bfloat16)       # (C, 2C) fused
    bv = params["bv"].reshape(1, C).astype(jnp.float32)                # bk dropped (cancels)
    wp = params["wp"].reshape(C, C).T.astype(jnp.bfloat16)
    bp = params["bp"].reshape(1, C).astype(jnp.float32)

    kernel = functools.partial(_attn_block_kernel, C=C, TQ=TQ, NCHUNK=NQ,
                               inv_count=inv_count)
    x_hwc = x_hwc.astype(jnp.float32)

    def _run(single_buffer_slab):
        if single_buffer_slab:
            # x slab only changes per batch element: single-buffer it to halve residency.
            slab_spec = pl.BlockSpec((1, HW, C), lambda b, sp, qi: (b, 0, 0),
                                     pipeline_mode=pl.Buffered(1))
        else:
            slab_spec = pl.BlockSpec((1, HW, C), lambda b, sp, qi: (b, 0, 0))
        full = lambda shape: pl.BlockSpec(shape, lambda b, sp, qi: (0, 0))

        return pl.pallas_call(
            kernel,
            out_shape=jax.ShapeDtypeStruct((B, HW, C), jnp.float32),
            grid_spec=pltpu.PrefetchScalarGridSpec(
                num_scalar_prefetch=0,
                grid=(B, qsplit, nqi),
                in_specs=[
                    slab_spec,                                  # x slab (prologue + tiles)
                    full((C, C)),                               # group-membership matrix
                    full((1, C)), full((1, C)),                 # gamma, beta
                    full((C, C)), full((1, C)),                 # wq (scaled), bq (scaled)
                    full((C, 2 * C)), full((1, C)),             # fused wk|wv, bv
                    full((C, C)), full((1, C)),                 # wp, bp
                ],
                out_specs=pl.BlockSpec((1, TQ, C),
                                       lambda b, sp, qi: (b, sp * nqi + qi, 0)),
                scratch_shapes=[
                    pltpu.VMEM((HW, C), jnp.bfloat16),          # K cache (current b)
                    pltpu.VMEM((HW, C), jnp.bfloat16),          # V cache (current b)
                    pltpu.VMEM((1, C), jnp.float32),            # folded GroupNorm scale
                    pltpu.VMEM((1, C), jnp.float32),            # folded GroupNorm shift
                ],
            ),
            compiler_params=pltpu.CompilerParams(
                dimension_semantics=("parallel", "parallel", "arbitrary"),
                vmem_limit_bytes=int(vmem_limit),
            ),
        )(x_hwc, gmat, gamma, beta, wq, bq, wkv, bv, wp, bp)

    try:
        return _run(True)
    except Exception:       # fall back if this JAX build rejects single-buffering
        return _run(False)


def attn_block(x_nchw, params, *, max_tq=None):
    """NCHW wrapper matching the PyTorch module (transposes around attn_block_hwc)."""
    B, C, H, W = x_nchw.shape
    x = jnp.transpose(x_nchw.reshape(B, C, H * W), (0, 2, 1))
    out = attn_block_hwc(x, params, max_tq=max_tq)
    return jnp.transpose(out, (0, 2, 1)).reshape(B, C, H, W)


def init_params(key, channels):
    ks = jax.random.split(key, 10)
    s = 0.05
    return {
        "gamma": jnp.ones((channels,), jnp.float32)
                 + s * jax.random.normal(ks[0], (channels,), jnp.float32),
        "beta": s * jax.random.normal(ks[1], (channels,), jnp.float32),
        "wq": s * jax.random.normal(ks[2], (channels, channels, 1, 1), jnp.float32),
        "bq": s * jax.random.normal(ks[3], (channels,), jnp.float32),
        "wk": s * jax.random.normal(ks[4], (channels, channels, 1, 1), jnp.float32),
        "bk": s * jax.random.normal(ks[5], (channels,), jnp.float32),
        "wv": s * jax.random.normal(ks[6], (channels, channels, 1, 1), jnp.float32),
        "bv": s * jax.random.normal(ks[7], (channels,), jnp.float32),
        "wp": s * jax.random.normal(ks[8], (channels, channels, 1, 1), jnp.float32),
        "bp": s * jax.random.normal(ks[9], (channels,), jnp.float32),
    }


def attn_block_reference(x, p):
    """Pure-JAX f32 reference mirroring the PyTorch forward (NCHW), incl. bk."""
    B, C, H, W = x.shape
    cg = C // NUM_GROUPS
    xg = x.reshape(B, NUM_GROUPS, cg, H, W)
    mean = xg.mean(axis=(2, 3, 4), keepdims=True)
    var = xg.var(axis=(2, 3, 4), keepdims=True)
    h = ((xg - mean) / jnp.sqrt(var + EPS)).reshape(B, C, H, W)
    h = h * p["gamma"].reshape(1, C, 1, 1) + p["beta"].reshape(1, C, 1, 1)

    def conv1x1(t, w, b):
        return jnp.einsum("oc,bchw->bohw", w.reshape(C, C), t) + b.reshape(1, C, 1, 1)

    q = conv1x1(h, p["wq"], p["bq"]).reshape(B, C, -1)
    k = conv1x1(h, p["wk"], p["bk"]).reshape(B, C, -1)
    v = conv1x1(h, p["wv"], p["bv"]).reshape(B, C, -1)
    w = jnp.einsum("bci,bcj->bij", q, k) * (1.0 / C ** 0.5)
    w = jax.nn.softmax(w, axis=-1)
    hh = jnp.einsum("bij,bcj->bci", w, v).reshape(B, C, H, W)
    hh = conv1x1(hh, p["wp"], p["bp"])
    return x + hh


if __name__ == "__main__":
    key = jax.random.PRNGKey(0)
    kx1, kp1, kx2, kp2 = jax.random.split(key, 4)

    # case 1: B=2 (batch axis feeds both cores); max_tq=128 forces NQ=2 so the chunked
    # prologue loops and dynamic scratch stores are exercised.
    B, C, H, W = 2, 128, 16, 16
    x1 = jax.random.normal(kx1, (B, C, H, W), jnp.float32)
    p1 = init_params(kp1, C)
    out1 = jax.block_until_ready(attn_block(x1, p1, max_tq=128))
    ref1 = attn_block_reference(x1, p1)
    assert out1.shape == x1.shape
    err1 = float(jnp.max(jnp.abs(out1 - ref1)))
    assert jnp.allclose(out1, ref1, atol=2e-2, rtol=2e-2), f"case1 max err {err1}"

    # case 2: B=1 exercises the query-split ("both TensorCores busy") grid path.
    x2 = jax.random.normal(kx2, (1, C, H, W), jnp.float32)
    p2 = init_params(kp2, C)
    out2 = jax.block_until_ready(attn_block(x2, p2, max_tq=128))
    ref2 = attn_block_reference(x2, p2)
    assert out2.shape == x2.shape
    err2 = float(jnp.max(jnp.abs(out2 - ref2)))
    assert jnp.allclose(out2, ref2, atol=2e-2, rtol=2e-2), f"case2 max err {err2}"

    print("KERNEL_OK")
</pallas_src>

<mosaic_0001>
module attributes {stable_mosaic.version = 11 : i64} {
  func.func @_attn_block_kernel(%arg0: i32, %arg1: i32, %arg2: i32, %arg3: memref<1x256x128xf32, #tpu.memory_space<vmem>>, %arg4: memref<128x128xf32, #tpu.memory_space<vmem>>, %arg5: memref<1x128xf32, #tpu.memory_space<vmem>>, %arg6: memref<1x128xf32, #tpu.memory_space<vmem>>, %arg7: memref<128x128xbf16, #tpu.memory_space<vmem>>, %arg8: memref<1x128xf32, #tpu.memory_space<vmem>>, %arg9: memref<128x256xbf16, #tpu.memory_space<vmem>>, %arg10: memref<1x128xf32, #tpu.memory_space<vmem>>, %arg11: memref<128x128xbf16, #tpu.memory_space<vmem>>, %arg12: memref<1x128xf32, #tpu.memory_space<vmem>>, %arg13: memref<1x128x128xf32, #tpu.memory_space<vmem>>, %arg14: memref<256x128xbf16, #tpu.memory_space<vmem>>, %arg15: memref<256x128xbf16, #tpu.memory_space<vmem>>, %arg16: memref<1x128xf32, #tpu.memory_space<vmem>>, %arg17: memref<1x128xf32, #tpu.memory_space<vmem>>) attributes {dimension_semantics = [#tpu.dimension_semantics<parallel>, #tpu.dimension_semantics<parallel>, #tpu.dimension_semantics<arbitrary>], iteration_bounds = array<i64: 2, 1, 2>, scalar_prefetch = 0 : i64, scratch_operands = 4 : i64, tpu.core_type = #tpu.core_type<tc>, window_params = [{pipeline_mode = #tpu.pipeline_mode<synchronous>, transform_indices = @transform_0, window_bounds = array<i64: 1, 256, 128>}, {pipeline_mode = #tpu.pipeline_mode<synchronous>, transform_indices = @transform_1, window_bounds = array<i64: 128, 128>}, {pipeline_mode = #tpu.pipeline_mode<synchronous>, transform_indices = @transform_2, window_bounds = array<i64: 1, 128>}, {pipeline_mode = #tpu.pipeline_mode<synchronous>, transform_indices = @transform_3, window_bounds = array<i64: 1, 128>}, {pipeline_mode = #tpu.pipeline_mode<synchronous>, transform_indices = @transform_4, window_bounds = array<i64: 128, 128>}, {pipeline_mode = #tpu.pipeline_mode<synchronous>, transform_indices = @transform_5, window_bounds = array<i64: 1, 128>}, {pipeline_mode = #tpu.pipeline_mode<synchronous>, transform_indices = @transform_6, window_bounds = array<i64: 128, 256>}, {pipeline_mode = #tpu.pipeline_mode<synchronous>, transform_indices = @transform_7, window_bounds = array<i64: 1, 128>}, {pipeline_mode = #tpu.pipeline_mode<synchronous>, transform_indices = @transform_8, window_bounds = array<i64: 128, 128>}, {pipeline_mode = #tpu.pipeline_mode<synchronous>, transform_indices = @transform_9, window_bounds = array<i64: 1, 128>}, {transform_indices = @transform_10, window_bounds = array<i64: 1, 128, 128>}]} {
    %c0_i32 = arith.constant 0 : i32
    %0 = arith.cmpi eq, %arg2, %c0_i32 : i32
    %1 = arith.extui %0 : i1 to i32
    %c0_i32_0 = arith.constant 0 : i32
    %2 = arith.cmpi ne, %1, %c0_i32_0 : i32
    scf.if %2 {
      %cst_26 = arith.constant 1.000000e+00 : f32
      %49 = vector.broadcast %cst_26 : f32 to vector<1x128xf32>
      %cst_27 = arith.constant 0.000000e+00 : f32
      %50 = vector.broadcast %cst_27 : f32 to vector<1x128xf32>
      %c0_i32_28 = arith.constant 0 : i32
      %c2_i32_29 = arith.constant 2 : i32
      %51 = arith.addi %c0_i32_28, %c2_i32_29 : i32
      %c1_i32 = arith.constant 1 : i32
      %52 = scf.for %arg18 = %c0_i32_28 to %51 step %c1_i32 iter_args(%arg19 = %50) -> (vector<1x128xf32>)  : i32 {
        %c128_i32_59 = arith.constant 128 : i32
        %76 = arith.muli %arg18, %c128_i32_59 : i32
        %77 = tpu.assume_multiple %76, 128 : i32
        %c0_60 = arith.constant 0 : index
        %78 = arith.index_cast %77 : i32 to index
        %c0_61 = arith.constant 0 : index
        %79 = vector.load %arg3[%c0_60, %78, %c0_61] : memref<1x256x128xf32, #tpu.memory_space<vmem>>, vector<1x128x128xf32>
        %80 = vector.shape_cast %79 : vector<1x128x128xf32> to vector<128x128xf32>
        %cst_62 = arith.constant dense<0.000000e+00> : vector<1x128xf32>
        %81 = tpu.matmul %49, %80, %cst_62 {dimension_numbers = #tpu.dot_dimension_numbers<[1], [0], [0], [1], [0, 0, 1, 1], [], []>} : vector<1x128xf32>, vector<128x128xf32>, vector<1x128xf32> -> vector<1x128xf32>
        %82 = arith.addf %arg19, %81 : vector<1x128xf32>
        scf.yield %82 : vector<1x128xf32>
      }
      %c2_i32_30 = arith.constant 2 : i32
      %c0_31 = arith.constant 0 : index
      %c0_32 = arith.constant 0 : index
      %53 = vector.load %arg4[%c0_31, %c0_32] : memref<128x128xf32, #tpu.memory_space<vmem>>, vector<128x128xf32>
      %cst_33 = arith.constant dense<0.000000e+00> : vector<1x128xf32>
      %54 = tpu.matmul %52, %53, %cst_33 {dimension_numbers = #tpu.dot_dimension_numbers<[1], [0], [0], [1], [0, 0, 1, 1], [], []>} : vector<1x128xf32>, vector<128x128xf32>, vector<1x128xf32> -> vector<1x128xf32>
      %cst_34 = arith.constant 9.765625E-4 : f32
      %55 = vector.broadcast %cst_34 : f32 to vector<1x128xf32>
      %56 = arith.mulf %54, %55 : vector<1x128xf32>
      %cst_35 = arith.constant 0.000000e+00 : f32
      %57 = vector.broadcast %cst_35 : f32 to vector<1x128xf32>
      %c0_i32_36 = arith.constant 0 : i32
      %c2_i32_37 = arith.constant 2 : i32
      %58 = arith.addi %c0_i32_36, %c2_i32_37 : i32
      %c1_i32_38 = arith.constant 1 : i32
      %59 = scf.for %arg18 = %c0_i32_36 to %58 step %c1_i32_38 iter_args(%arg19 = %57) -> (vector<1x128xf32>)  : i32 {
        %c128_i32_59 = arith.constant 128 : i32
        %76 = arith.muli %arg18, %c128_i32_59 : i32
        %77 = tpu.assume_multiple %76, 128 : i32
        %c0_60 = arith.constant 0 : index
        %78 = arith.index_cast %77 : i32 to index
        %c0_61 = arith.constant 0 : index
        %79 = vector.load %arg3[%c0_60, %78, %c0_61] : memref<1x256x128xf32, #tpu.memory_space<vmem>>, vector<1x128x128xf32>
        %80 = vector.shape_cast %79 : vector<1x128x128xf32> to vector<128x128xf32>
        %81 = vector.broadcast %56 : vector<1x128xf32> to vector<128x128xf32>
        %82 = arith.subf %80, %81 : vector<128x128xf32>
        %83 = arith.mulf %82, %82 : vector<128x128xf32>
        %cst_62 = arith.constant dense<0.000000e+00> : vector<1x128xf32>
        %84 = tpu.matmul %49, %83, %cst_62 {dimension_numbers = #tpu.dot_dimension_numbers<[1], [0], [0], [1], [0, 0, 1, 1], [], []>} : vector<1x128xf32>, vector<128x128xf32>, vector<1x128xf32> -> vector<1x128xf32>
        %85 = arith.addf %arg19, %84 : vector<1x128xf32>
        scf.yield %85 : vector<1x128xf32>
      }
      %c2_i32_39 = arith.constant 2 : i32
      %c0_40 = arith.constant 0 : index
      %c0_41 = arith.constant 0 : index
      %60 = vector.load %arg4[%c0_40, %c0_41] : memref<128x128xf32, #tpu.memory_space<vmem>>, vector<128x128xf32>
      %cst_42 = arith.constant dense<0.000000e+00> : vector<1x128xf32>
      %61 = tpu.matmul %59, %60, %cst_42 {dimension_numbers = #tpu.dot_dimension_numbers<[1], [0], [0], [1], [0, 0, 1, 1], [], []>} : vector<1x128xf32>, vector<128x128xf32>, vector<1x128xf32> -> vector<1x128xf32>
      %cst_43 = arith.constant 9.765625E-4 : f32
      %62 = vector.broadcast %cst_43 : f32 to vector<1x128xf32>
      %63 = arith.mulf %61, %62 : vector<1x128xf32>
      %cst_44 = arith.constant 9.99999974E-6 : f32
      %64 = vector.broadcast %cst_44 : f32 to vector<1x128xf32>
      %65 = arith.addf %63, %64 : vector<1x128xf32>
      %66 = math.rsqrt %65 : vector<1x128xf32>
      %c0_45 = arith.constant 0 : index
      %c0_46 = arith.constant 0 : index
      %67 = vector.load %arg5[%c0_45, %c0_46] : memref<1x128xf32, #tpu.memory_space<vmem>>, vector<1x128xf32>
      %68 = arith.mulf %66, %67 : vector<1x128xf32>
      %c0_47 = arith.constant 0 : index
      %c0_48 = arith.constant 0 : index
      %69 = vector.load %arg6[%c0_47, %c0_48] : memref<1x128xf32, #tpu.memory_space<vmem>>, vector<1x128xf32>
      %70 = arith.mulf %56, %68 : vector<1x128xf32>
      %71 = arith.subf %69, %70 : vector<1x128xf32>
      %c0_49 = arith.constant 0 : index
      %c0_50 = arith.constant 0 : index
      %72 = vector.load %arg16[%c0_49, %c0_50] : memref<1x128xf32, #tpu.memory_space<vmem>>, vector<1x128xf32>
      tpu.vector_store %arg16[%c0_49, %c0_50], %68 {strides = array<i32>} : memref<1x128xf32, #tpu.memory_space<vmem>>, vector<1x128xf32>,
      %c0_51 = arith.constant 0 : index
      %c0_52 = arith.constant 0 : index
      %73 = vector.load %arg17[%c0_51, %c0_52] : memref<1x128xf32, #tpu.memory_space<vmem>>, vector<1x128xf32>
      tpu.vector_store %arg17[%c0_51, %c0_52], %71 {strides = array<i32>} : memref<1x128xf32, #tpu.memory_space<vmem>>, vector<1x128xf32>,
      %c0_53 = arith.constant 0 : index
      %c0_54 = arith.constant 0 : index
      %74 = vector.load %arg10[%c0_53, %c0_54] : memref<1x128xf32, #tpu.memory_space<vmem>>, vector<1x128xf32>
      %c0_i32_55 = arith.constant 0 : i32
      %c2_i32_56 = arith.constant 2 : i32
      %75 = arith.addi %c0_i32_55, %c2_i32_56 : i32
      %c1_i32_57 = arith.constant 1 : i32
      scf.for %arg18 = %c0_i32_55 to %75 step %c1_i32_57  : i32 {
        %c1_i32_59 = arith.constant 1 : i32
        %76 = arith.muli %arg18, %c1_i32_59 : i32
        %c0_i32_60 = arith.constant 0 : i32
        %77 = arith.addi %c0_i32_60, %76 : i32
        %c128_i32_61 = arith.constant 128 : i32
        %78 = arith.muli %77, %c128_i32_61 : i32
        %79 = tpu.assume_multiple %78, 128 : i32
        %c0_62 = arith.constant 0 : index
        %80 = arith.index_cast %79 : i32 to index
        %c0_63 = arith.constant 0 : index
        %81 = vector.load %arg3[%c0_62, %80, %c0_63] : memref<1x256x128xf32, #tpu.memory_space<vmem>>, vector<1x128x128xf32>
        %82 = vector.shape_cast %81 : vector<1x128x128xf32> to vector<128x128xf32>
        %83 = vector.broadcast %68 : vector<1x128xf32> to vector<128x128xf32>
        %84 = arith.mulf %82, %83 : vector<128x128xf32>
        %85 = vector.broadcast %71 : vector<1x128xf32> to vector<128x128xf32>
        %86 = arith.addf %84, %85 : vector<128x128xf32>
        %87 = arith.truncf %86 : vector<128x128xf32> to vector<128x128xbf16>
        %c0_64 = arith.constant 0 : index
        %c0_65 = arith.constant 0 : index
        %88 = vector.load %arg9[%c0_64, %c0_65] : memref<128x256xbf16, #tpu.memory_space<vmem>>, vector<128x256xbf16>
        %cst_66 = arith.constant dense<0.000000e+00> : vector<128x256xf32>
        %89 = tpu.matmul %87, %88, %cst_66 {dimension_numbers = #tpu.dot_dimension_numbers<[1], [0], [0], [1], [0, 0, 1, 1], [], []>} : vector<128x128xbf16>, vector<128x256xbf16>, vector<128x256xf32> -> vector<128x256xf32>
        %90 = vector.extract_strided_slice %89 {offsets = [0, 0], sizes = [128, 128], strides = [1, 1]} : vector<128x256xf32> to vector<128x128xf32>
        %91 = arith.truncf %90 : vector<128x128xf32> to vector<128x128xbf16>
        %92 = arith.index_cast %79 : i32 to index
        %c0_67 = arith.constant 0 : index
        %93 = vector.load %arg14[%92, %c0_67] : memref<256x128xbf16, #tpu.memory_space<vmem>>, vector<128x128xbf16>
        tpu.vector_store %arg14[%92, %c0_67], %91 {strides = array<i32>} : memref<256x128xbf16, #tpu.memory_space<vmem>>, vector<128x128xbf16>,
        %94 = vector.extract_strided_slice %89 {offsets = [0, 128], sizes = [128, 128], strides = [1, 1]} : vector<128x256xf32> to vector<128x128xf32>
        %95 = vector.broadcast %74 : vector<1x128xf32> to vector<128x128xf32>
        %96 = arith.addf %94, %95 : vector<128x128xf32>
        %97 = arith.truncf %96 : vector<128x128xf32> to vector<128x128xbf16>
        %98 = arith.index_cast %79 : i32 to index
        %c0_68 = arith.constant 0 : index
        %99 = vector.load %arg15[%98, %c0_68] : memref<256x128xbf16, #tpu.memory_space<vmem>>, vector<128x128xbf16>
        tpu.vector_store %arg15[%98, %c0_68], %97 {strides = array<i32>} : memref<256x128xbf16, #tpu.memory_space<vmem>>, vector<128x128xbf16>,
      }
      %c2_i32_58 = arith.constant 2 : i32
    } else {
    }
    %c2_i32 = arith.constant 2 : i32
    %3 = arith.muli %arg1, %c2_i32 : i32
    %4 = arith.addi %3, %arg2 : i32
    %c128_i32 = arith.constant 128 : i32
    %5 = arith.muli %4, %c128_i32 : i32
    %6 = tpu.assume_multiple %5, 128 : i32
    %c0 = arith.constant 0 : index
    %7 = arith.index_cast %6 : i32 to index
    %c0_1 = arith.constant 0 : index
    %8 = vector.load %arg3[%c0, %7, %c0_1] : memref<1x256x128xf32, #tpu.memory_space<vmem>>, vector<1x128x128xf32>
    %9 = vector.shape_cast %8 : vector<1x128x128xf32> to vector<128x128xf32>
    %c0_2 = arith.constant 0 : index
    %c0_3 = arith.constant 0 : index
    %10 = vector.load %arg16[%c0_2, %c0_3] : memref<1x128xf32, #tpu.memory_space<vmem>>, vector<1x128xf32>
    %11 = vector.broadcast %10 : vector<1x128xf32> to vector<128x128xf32>
    %12 = arith.mulf %9, %11 : vector<128x128xf32>
    %c0_4 = arith.constant 0 : index
    %c0_5 = arith.constant 0 : index
    %13 = vector.load %arg17[%c0_4, %c0_5] : memref<1x128xf32, #tpu.memory_space<vmem>>, vector<1x128xf32>
    %14 = vector.broadcast %13 : vector<1x128xf32> to vector<128x128xf32>
    %15 = arith.addf %12, %14 : vector<128x128xf32>
    %16 = arith.truncf %15 : vector<128x128xf32> to vector<128x128xbf16>
    %c0_6 = arith.constant 0 : index
    %c0_7 = arith.constant 0 : index
    %17 = vector.load %arg7[%c0_6, %c0_7] : memref<128x128xbf16, #tpu.memory_space<vmem>>, vector<128x128xbf16>
    %cst = arith.constant dense<0.000000e+00> : vector<128x128xf32>
    %18 = tpu.matmul %16, %17, %cst {dimension_numbers = #tpu.dot_dimension_numbers<[1], [0], [0], [1], [0, 0, 1, 1], [], []>} : vector<128x128xbf16>, vector<128x128xbf16>, vector<128x128xf32> -> vector<128x128xf32>
    %c0_8 = arith.constant 0 : index
    %c0_9 = arith.constant 0 : index
    %19 = vector.load %arg8[%c0_8, %c0_9] : memref<1x128xf32, #tpu.memory_space<vmem>>, vector<1x128xf32>
    %20 = vector.broadcast %19 : vector<1x128xf32> to vector<128x128xf32>
    %21 = arith.addf %18, %20 : vector<128x128xf32>
    %22 = arith.truncf %21 : vector<128x128xf32> to vector<128x128xbf16>
    %c0_10 = arith.constant 0 : index
    %c0_11 = arith.constant 0 : index
    %23 = vector.load %arg14[%c0_10, %c0_11] : memref<256x128xbf16, #tpu.memory_space<vmem>>, vector<256x128xbf16>
    %cst_12 = arith.constant dense<0.000000e+00> : vector<128x256xf32>
    %24 = tpu.matmul %22, %23, %cst_12 {dimension_numbers = #tpu.dot_dimension_numbers<[1], [1], [0], [0], [0, 0, 1, 0], [], []>} : vector<128x128xbf16>, vector<256x128xbf16>, vector<128x256xf32> -> vector<128x256xf32>
    %cst_13 = arith.constant dense<0xFF800000> : vector<128xf32>
    %25 = vector.multi_reduction <maximumf>, %24, %cst_13 [1] : vector<128x256xf32> to vector<128xf32>
    %26 = vector.shape_cast %25 : vector<128xf32> to vector<128x1xf32>
    %27 = vector.broadcast %26 : vector<128x1xf32> to vector<128x256xf32>
    %28 = arith.subf %24, %27 : vector<128x256xf32>
    %29 = arith.truncf %28 : vector<128x256xf32> to vector<128x256xbf16>
    %30 = math.exp %29 : vector<128x256xbf16>
    %31 = arith.extf %30 : vector<128x256xbf16> to vector<128x256xf32>
    %cst_14 = arith.constant dense<0.000000e+00> : vector<128xf32>
    %32 = vector.multi_reduction <add>, %31, %cst_14 [1] : vector<128x256xf32> to vector<128xf32>
    %33 = vector.shape_cast %32 : vector<128xf32> to vector<128x1xf32>
    %c0_15 = arith.constant 0 : index
    %c0_16 = arith.constant 0 : index
    %34 = vector.load %arg15[%c0_15, %c0_16] : memref<256x128xbf16, #tpu.memory_space<vmem>>, vector<256x128xbf16>
    %cst_17 = arith.constant dense<0.000000e+00> : vector<128x128xf32>
    %35 = tpu.matmul %30, %34, %cst_17 {dimension_numbers = #tpu.dot_dimension_numbers<[1], [0], [0], [1], [0, 0, 1, 1], [], []>} : vector<128x256xbf16>, vector<256x128xbf16>, vector<128x128xf32> -> vector<128x128xf32>
    %36 = tpu.reciprocal %33 {approx = true} : vector<128x1xf32> -> vector<128x1xf32>
    %37 = vector.broadcast %36 : vector<128x1xf32> to vector<128x128xf32>
    %38 = arith.mulf %35, %37 : vector<128x128xf32>
    %39 = arith.truncf %38 : vector<128x128xf32> to vector<128x128xbf16>
    %c0_18 = arith.constant 0 : index
    %c0_19 = arith.constant 0 : index
    %40 = vector.load %arg11[%c0_18, %c0_19] : memref<128x128xbf16, #tpu.memory_space<vmem>>, vector<128x128xbf16>
    %cst_20 = arith.constant dense<0.000000e+00> : vector<128x128xf32>
    %41 = tpu.matmul %39, %40, %cst_20 {dimension_numbers = #tpu.dot_dimension_numbers<[1], [0], [0], [1], [0, 0, 1, 1], [], []>} : vector<128x128xbf16>, vector<128x128xbf16>, vector<128x128xf32> -> vector<128x128xf32>
    %c0_21 = arith.constant 0 : index
    %c0_22 = arith.constant 0 : index
    %42 = vector.load %arg12[%c0_21, %c0_22] : memref<1x128xf32, #tpu.memory_space<vmem>>, vector<1x128xf32>
    %43 = vector.broadcast %42 : vector<1x128xf32> to vector<128x128xf32>
    %44 = arith.addf %41, %43 : vector<128x128xf32>
    %45 = arith.addf %9, %44 : vector<128x128xf32>
    %c0_23 = arith.constant 0 : index
    %c0_24 = arith.constant 0 : index
    %c0_25 = arith.constant 0 : index
    %46 = vector.load %arg13[%c0_23, %c0_24, %c0_25] : memref<1x128x128xf32, #tpu.memory_space<vmem>>, vector<1x128x128xf32>
    %47 = vector.shape_cast %46 : vector<1x128x128xf32> to vector<128x128xf32>
    %48 = vector.shape_cast %45 : vector<128x128xf32> to vector<1x128x128xf32>
    tpu.vector_store %arg13[%c0_23, %c0_24, %c0_25], %48 {strides = array<i32>} : memref<1x128x128xf32, #tpu.memory_space<vmem>>, vector<1x128x128xf32>,
    return
  }
  func.func @transform_0(%arg0: i32, %arg1: i32, %arg2: i32) -> (i32, i32, i32) {
    %c0_i32 = arith.constant 0 : i32
    %c0_i32_0 = arith.constant 0 : i32
    %c0_i32_1 = arith.constant 0 : i32
    return %arg0, %c0_i32, %c0_i32_0 : i32, i32, i32
  }
  func.func @transform_1(%arg0: i32, %arg1: i32, %arg2: i32) -> (i32, i32) {
    %c0_i32 = arith.constant 0 : i32
    %c0_i32_0 = arith.constant 0 : i32
    %c0_i32_1 = arith.constant 0 : i32
    return %c0_i32, %c0_i32_0 : i32, i32
  }
  func.func @transform_2(%arg0: i32, %arg1: i32, %arg2: i32) -> (i32, i32) {
    %c0_i32 = arith.constant 0 : i32
    %c0_i32_0 = arith.constant 0 : i32
    %c0_i32_1 = arith.constant 0 : i32
    return %c0_i32, %c0_i32_0 : i32, i32
  }
  func.func @transform_3(%arg0: i32, %arg1: i32, %arg2: i32) -> (i32, i32) {
    %c0_i32 = arith.constant 0 : i32
    %c0_i32_0 = arith.constant 0 : i32
    %c0_i32_1 = arith.constant 0 : i32
    return %c0_i32, %c0_i32_0 : i32, i32
  }
  func.func @transform_4(%arg0: i32, %arg1: i32, %arg2: i32) -> (i32, i32) {
    %c0_i32 = arith.constant 0 : i32
    %c0_i32_0 = arith.constant 0 : i32
    %c0_i32_1 = arith.constant 0 : i32
    return %c0_i32, %c0_i32_0 : i32, i32
  }
  func.func @transform_5(%arg0: i32, %arg1: i32, %arg2: i32) -> (i32, i32) {
    %c0_i32 = arith.constant 0 : i32
    %c0_i32_0 = arith.constant 0 : i32
    %c0_i32_1 = arith.constant 0 : i32
    return %c0_i32, %c0_i32_0 : i32, i32
  }
  func.func @transform_6(%arg0: i32, %arg1: i32, %arg2: i32) -> (i32, i32) {
    %c0_i32 = arith.constant 0 : i32
    %c0_i32_0 = arith.constant 0 : i32
    %c0_i32_1 = arith.constant 0 : i32
    return %c0_i32, %c0_i32_0 : i32, i32
  }
  func.func @transform_7(%arg0: i32, %arg1: i32, %arg2: i32) -> (i32, i32) {
    %c0_i32 = arith.constant 0 : i32
    %c0_i32_0 = arith.constant 0 : i32
    %c0_i32_1 = arith.constant 0 : i32
    return %c0_i32, %c0_i32_0 : i32, i32
  }
  func.func @transform_8(%arg0: i32, %arg1: i32, %arg2: i32) -> (i32, i32) {
    %c0_i32 = arith.constant 0 : i32
    %c0_i32_0 = arith.constant 0 : i32
    %c0_i32_1 = arith.constant 0 : i32
    return %c0_i32, %c0_i32_0 : i32, i32
  }
  func.func @transform_9(%arg0: i32, %arg1: i32, %arg2: i32) -> (i32, i32) {
    %c0_i32 = arith.constant 0 : i32
    %c0_i32_0 = arith.constant 0 : i32
    %c0_i32_1 = arith.constant 0 : i32
    return %c0_i32, %c0_i32_0 : i32, i32
  }
  func.func @transform_10(%arg0: i32, %arg1: i32, %arg2: i32) -> (i32, i32, i32) {
    %c2_i32 = arith.constant 2 : i32
    %0 = arith.muli %arg1, %c2_i32 : i32
    %1 = arith.addi %0, %arg2 : i32
    %c0_i32 = arith.constant 0 : i32
    %c0_i32_0 = arith.constant 0 : i32
    return %arg0, %1, %c0_i32 : i32, i32, i32
  }
}

module attributes {stable_mosaic.version = 11 : i64} {
  func.func @_attn_block_kernel(%arg0: i32, %arg1: i32, %arg2: i32, %arg3: memref<1x256x128xf32, #tpu.memory_space<vmem>>, %arg4: memref<128x128xf32, #tpu.memory_space<vmem>>, %arg5: memref<1x128xf32, #tpu.memory_space<vmem>>, %arg6: memref<1x128xf32, #tpu.memory_space<vmem>>, %arg7: memref<128x128xbf16, #tpu.memory_space<vmem>>, %arg8: memref<1x128xf32, #tpu.memory_space<vmem>>, %arg9: memref<128x256xbf16, #tpu.memory_space<vmem>>, %arg10: memref<1x128xf32, #tpu.memory_space<vmem>>, %arg11: memref<128x128xbf16, #tpu.memory_space<vmem>>, %arg12: memref<1x128xf32, #tpu.memory_space<vmem>>, %arg13: memref<1x128x128xf32, #tpu.memory_space<vmem>>, %arg14: memref<256x128xbf16, #tpu.memory_space<vmem>>, %arg15: memref<256x128xbf16, #tpu.memory_space<vmem>>, %arg16: memref<1x128xf32, #tpu.memory_space<vmem>>, %arg17: memref<1x128xf32, #tpu.memory_space<vmem>>) attributes {dimension_semantics = [#tpu.dimension_semantics<parallel>, #tpu.dimension_semantics<parallel>, #tpu.dimension_semantics<arbitrary>], iteration_bounds = array<i64: 2, 1, 2>, scalar_prefetch = 0 : i64, scratch_operands = 4 : i64, tpu.core_type = #tpu.core_type<tc>, window_params = [{transform_indices = @transform_0, window_bounds = array<i64: 1, 256, 128>}, {pipeline_mode = #tpu.pipeline_mode<synchronous>, transform_indices = @transform_1, window_bounds = array<i64: 128, 128>}, {pipeline_mode = #tpu.pipeline_mode<synchronous>, transform_indices = @transform_2, window_bounds = array<i64: 1, 128>}, {pipeline_mode = #tpu.pipeline_mode<synchronous>, transform_indices = @transform_3, window_bounds = array<i64: 1, 128>}, {pipeline_mode = #tpu.pipeline_mode<synchronous>, transform_indices = @transform_4, window_bounds = array<i64: 128, 128>}, {pipeline_mode = #tpu.pipeline_mode<synchronous>, transform_indices = @transform_5, window_bounds = array<i64: 1, 128>}, {pipeline_mode = #tpu.pipeline_mode<synchronous>, transform_indices = @transform_6, window_bounds = array<i64: 128, 256>}, {pipeline_mode = #tpu.pipeline_mode<synchronous>, transform_indices = @transform_7, window_bounds = array<i64: 1, 128>}, {pipeline_mode = #tpu.pipeline_mode<synchronous>, transform_indices = @transform_8, window_bounds = array<i64: 128, 128>}, {pipeline_mode = #tpu.pipeline_mode<synchronous>, transform_indices = @transform_9, window_bounds = array<i64: 1, 128>}, {transform_indices = @transform_10, window_bounds = array<i64: 1, 128, 128>}]} {
    %c0_i32 = arith.constant 0 : i32
    %0 = arith.cmpi eq, %arg2, %c0_i32 : i32
    %1 = arith.extui %0 : i1 to i32
    %c0_i32_0 = arith.constant 0 : i32
    %2 = arith.cmpi ne, %1, %c0_i32_0 : i32
    scf.if %2 {
      %cst_26 = arith.constant 1.000000e+00 : f32
      %49 = vector.broadcast %cst_26 : f32 to vector<1x128xf32>
      %cst_27 = arith.constant 0.000000e+00 : f32
      %50 = vector.broadcast %cst_27 : f32 to vector<1x128xf32>
      %c0_i32_28 = arith.constant 0 : i32
      %c2_i32_29 = arith.constant 2 : i32
      %51 = arith.addi %c0_i32_28, %c2_i32_29 : i32
      %c1_i32 = arith.constant 1 : i32
      %52 = scf.for %arg18 = %c0_i32_28 to %51 step %c1_i32 iter_args(%arg19 = %50) -> (vector<1x128xf32>)  : i32 {
        %c128_i32_59 = arith.constant 128 : i32
        %76 = arith.muli %arg18, %c128_i32_59 : i32
        %77 = tpu.assume_multiple %76, 128 : i32
        %c0_60 = arith.constant 0 : index
        %78 = arith.index_cast %77 : i32 to index
        %c0_61 = arith.constant 0 : index
        %79 = vector.load %arg3[%c0_60, %78, %c0_61] : memref<1x256x128xf32, #tpu.memory_space<vmem>>, vector<1x128x128xf32>
        %80 = vector.shape_cast %79 : vector<1x128x128xf32> to vector<128x128xf32>
        %cst_62 = arith.constant dense<0.000000e+00> : vector<1x128xf32>
        %81 = tpu.matmul %49, %80, %cst_62 {dimension_numbers = #tpu.dot_dimension_numbers<[1], [0], [0], [1], [0, 0, 1, 1], [], []>} : vector<1x128xf32>, vector<128x128xf32>, vector<1x128xf32> -> vector<1x128xf32>
        %82 = arith.addf %arg19, %81 : vector<1x128xf32>
        scf.yield %82 : vector<1x128xf32>
      }
      %c2_i32_30 = arith.constant 2 : i32
      %c0_31 = arith.constant 0 : index
      %c0_32 = arith.constant 0 : index
      %53 = vector.load %arg4[%c0_31, %c0_32] : memref<128x128xf32, #tpu.memory_space<vmem>>, vector<128x128xf32>
      %cst_33 = arith.constant dense<0.000000e+00> : vector<1x128xf32>
      %54 = tpu.matmul %52, %53, %cst_33 {dimension_numbers = #tpu.dot_dimension_numbers<[1], [0], [0], [1], [0, 0, 1, 1], [], []>} : vector<1x128xf32>, vector<128x128xf32>, vector<1x128xf32> -> vector<1x128xf32>
      %cst_34 = arith.constant 9.765625E-4 : f32
      %55 = vector.broadcast %cst_34 : f32 to vector<1x128xf32>
      %56 = arith.mulf %54, %55 : vector<1x128xf32>
      %cst_35 = arith.constant 0.000000e+00 : f32
      %57 = vector.broadcast %cst_35 : f32 to vector<1x128xf32>
      %c0_i32_36 = arith.constant 0 : i32
      %c2_i32_37 = arith.constant 2 : i32
      %58 = arith.addi %c0_i32_36, %c2_i32_37 : i32
      %c1_i32_38 = arith.constant 1 : i32
      %59 = scf.for %arg18 = %c0_i32_36 to %58 step %c1_i32_38 iter_args(%arg19 = %57) -> (vector<1x128xf32>)  : i32 {
        %c128_i32_59 = arith.constant 128 : i32
        %76 = arith.muli %arg18, %c128_i32_59 : i32
        %77 = tpu.assume_multiple %76, 128 : i32
        %c0_60 = arith.constant 0 : index
        %78 = arith.index_cast %77 : i32 to index
        %c0_61 = arith.constant 0 : index
        %79 = vector.load %arg3[%c0_60, %78, %c0_61] : memref<1x256x128xf32, #tpu.memory_space<vmem>>, vector<1x128x128xf32>
        %80 = vector.shape_cast %79 : vector<1x128x128xf32> to vector<128x128xf32>
        %81 = vector.broadcast %56 : vector<1x128xf32> to vector<128x128xf32>
        %82 = arith.subf %80, %81 : vector<128x128xf32>
        %83 = arith.mulf %82, %82 : vector<128x128xf32>
        %cst_62 = arith.constant dense<0.000000e+00> : vector<1x128xf32>
        %84 = tpu.matmul %49, %83, %cst_62 {dimension_numbers = #tpu.dot_dimension_numbers<[1], [0], [0], [1], [0, 0, 1, 1], [], []>} : vector<1x128xf32>, vector<128x128xf32>, vector<1x128xf32> -> vector<1x128xf32>
        %85 = arith.addf %arg19, %84 : vector<1x128xf32>
        scf.yield %85 : vector<1x128xf32>
      }
      %c2_i32_39 = arith.constant 2 : i32
      %c0_40 = arith.constant 0 : index
      %c0_41 = arith.constant 0 : index
      %60 = vector.load %arg4[%c0_40, %c0_41] : memref<128x128xf32, #tpu.memory_space<vmem>>, vector<128x128xf32>
      %cst_42 = arith.constant dense<0.000000e+00> : vector<1x128xf32>
      %61 = tpu.matmul %59, %60, %cst_42 {dimension_numbers = #tpu.dot_dimension_numbers<[1], [0], [0], [1], [0, 0, 1, 1], [], []>} : vector<1x128xf32>, vector<128x128xf32>, vector<1x128xf32> -> vector<1x128xf32>
      %cst_43 = arith.constant 9.765625E-4 : f32
      %62 = vector.broadcast %cst_43 : f32 to vector<1x128xf32>
      %63 = arith.mulf %61, %62 : vector<1x128xf32>
      %cst_44 = arith.constant 9.99999974E-6 : f32
      %64 = vector.broadcast %cst_44 : f32 to vector<1x128xf32>
      %65 = arith.addf %63, %64 : vector<1x128xf32>
      %66 = math.rsqrt %65 : vector<1x128xf32>
      %c0_45 = arith.constant 0 : index
      %c0_46 = arith.constant 0 : index
      %67 = vector.load %arg5[%c0_45, %c0_46] : memref<1x128xf32, #tpu.memory_space<vmem>>, vector<1x128xf32>
      %68 = arith.mulf %66, %67 : vector<1x128xf32>
      %c0_47 = arith.constant 0 : index
      %c0_48 = arith.constant 0 : index
      %69 = vector.load %arg6[%c0_47, %c0_48] : memref<1x128xf32, #tpu.memory_space<vmem>>, vector<1x128xf32>
      %70 = arith.mulf %56, %68 : vector<1x128xf32>
      %71 = arith.subf %69, %70 : vector<1x128xf32>
      %c0_49 = arith.constant 0 : index
      %c0_50 = arith.constant 0 : index
      %72 = vector.load %arg16[%c0_49, %c0_50] : memref<1x128xf32, #tpu.memory_space<vmem>>, vector<1x128xf32>
      tpu.vector_store %arg16[%c0_49, %c0_50], %68 {strides = array<i32>} : memref<1x128xf32, #tpu.memory_space<vmem>>, vector<1x128xf32>,
      %c0_51 = arith.constant 0 : index
      %c0_52 = arith.constant 0 : index
      %73 = vector.load %arg17[%c0_51, %c0_52] : memref<1x128xf32, #tpu.memory_space<vmem>>, vector<1x128xf32>
      tpu.vector_store %arg17[%c0_51, %c0_52], %71 {strides = array<i32>} : memref<1x128xf32, #tpu.memory_space<vmem>>, vector<1x128xf32>,
      %c0_53 = arith.constant 0 : index
      %c0_54 = arith.constant 0 : index
      %74 = vector.load %arg10[%c0_53, %c0_54] : memref<1x128xf32, #tpu.memory_space<vmem>>, vector<1x128xf32>
      %c0_i32_55 = arith.constant 0 : i32
      %c2_i32_56 = arith.constant 2 : i32
      %75 = arith.addi %c0_i32_55, %c2_i32_56 : i32
      %c1_i32_57 = arith.constant 1 : i32
      scf.for %arg18 = %c0_i32_55 to %75 step %c1_i32_57  : i32 {
        %c1_i32_59 = arith.constant 1 : i32
        %76 = arith.muli %arg18, %c1_i32_59 : i32
        %c0_i32_60 = arith.constant 0 : i32
        %77 = arith.addi %c0_i32_60, %76 : i32
        %c128_i32_61 = arith.constant 128 : i32
        %78 = arith.muli %77, %c128_i32_61 : i32
        %79 = tpu.assume_multiple %78, 128 : i32
        %c0_62 = arith.constant 0 : index
        %80 = arith.index_cast %79 : i32 to index
        %c0_63 = arith.constant 0 : index
        %81 = vector.load %arg3[%c0_62, %80, %c0_63] : memref<1x256x128xf32, #tpu.memory_space<vmem>>, vector<1x128x128xf32>
        %82 = vector.shape_cast %81 : vector<1x128x128xf32> to vector<128x128xf32>
        %83 = vector.broadcast %68 : vector<1x128xf32> to vector<128x128xf32>
        %84 = arith.mulf %82, %83 : vector<128x128xf32>
        %85 = vector.broadcast %71 : vector<1x128xf32> to vector<128x128xf32>
        %86 = arith.addf %84, %85 : vector<128x128xf32>
        %87 = arith.truncf %86 : vector<128x128xf32> to vector<128x128xbf16>
        %c0_64 = arith.constant 0 : index
        %c0_65 = arith.constant 0 : index
        %88 = vector.load %arg9[%c0_64, %c0_65] : memref<128x256xbf16, #tpu.memory_space<vmem>>, vector<128x256xbf16>
        %cst_66 = arith.constant dense<0.000000e+00> : vector<128x256xf32>
        %89 = tpu.matmul %87, %88, %cst_66 {dimension_numbers = #tpu.dot_dimension_numbers<[1], [0], [0], [1], [0, 0, 1, 1], [], []>} : vector<128x128xbf16>, vector<128x256xbf16>, vector<128x256xf32> -> vector<128x256xf32>
        %90 = vector.extract_strided_slice %89 {offsets = [0, 0], sizes = [128, 128], strides = [1, 1]} : vector<128x256xf32> to vector<128x128xf32>
        %91 = arith.truncf %90 : vector<128x128xf32> to vector<128x128xbf16>
        %92 = arith.index_cast %79 : i32 to index
        %c0_67 = arith.constant 0 : index
        %93 = vector.load %arg14[%92, %c0_67] : memref<256x128xbf16, #tpu.memory_space<vmem>>, vector<128x128xbf16>
        tpu.vector_store %arg14[%92, %c0_67], %91 {strides = array<i32>} : memref<256x128xbf16, #tpu.memory_space<vmem>>, vector<128x128xbf16>,
        %94 = vector.extract_strided_slice %89 {offsets = [0, 128], sizes = [128, 128], strides = [1, 1]} : vector<128x256xf32> to vector<128x128xf32>
        %95 = vector.broadcast %74 : vector<1x128xf32> to vector<128x128xf32>
        %96 = arith.addf %94, %95 : vector<128x128xf32>
        %97 = arith.truncf %96 : vector<128x128xf32> to vector<128x128xbf16>
        %98 = arith.index_cast %79 : i32 to index
        %c0_68 = arith.constant 0 : index
        %99 = vector.load %arg15[%98, %c0_68] : memref<256x128xbf16, #tpu.memory_space<vmem>>, vector<128x128xbf16>
        tpu.vector_store %arg15[%98, %c0_68], %97 {strides = array<i32>} : memref<256x128xbf16, #tpu.memory_space<vmem>>, vector<128x128xbf16>,
      }
      %c2_i32_58 = arith.constant 2 : i32
    } else {
    }
    %c2_i32 = arith.constant 2 : i32
    %3 = arith.muli %arg1, %c2_i32 : i32
    %4 = arith.addi %3, %arg2 : i32
    %c128_i32 = arith.constant 128 : i32
    %5 = arith.muli %4, %c128_i32 : i32
    %6 = tpu.assume_multiple %5, 128 : i32
    %c0 = arith.constant 0 : index
    %7 = arith.index_cast %6 : i32 to index
    %c0_1 = arith.constant 0 : index
    %8 = vector.load %arg3[%c0, %7, %c0_1] : memref<1x256x128xf32, #tpu.memory_space<vmem>>, vector<1x128x128xf32>
    %9 = vector.shape_cast %8 : vector<1x128x128xf32> to vector<128x128xf32>
    %c0_2 = arith.constant 0 : index
    %c0_3 = arith.constant 0 : index
    %10 = vector.load %arg16[%c0_2, %c0_3] : memref<1x128xf32, #tpu.memory_space<vmem>>, vector<1x128xf32>
    %11 = vector.broadcast %10 : vector<1x128xf32> to vector<128x128xf32>
    %12 = arith.mulf %9, %11 : vector<128x128xf32>
    %c0_4 = arith.constant 0 : index
    %c0_5 = arith.constant 0 : index
    %13 = vector.load %arg17[%c0_4, %c0_5] : memref<1x128xf32, #tpu.memory_space<vmem>>, vector<1x128xf32>
    %14 = vector.broadcast %13 : vector<1x128xf32> to vector<128x128xf32>
    %15 = arith.addf %12, %14 : vector<128x128xf32>
    %16 = arith.truncf %15 : vector<128x128xf32> to vector<128x128xbf16>
    %c0_6 = arith.constant 0 : index
    %c0_7 = arith.constant 0 : index
    %17 = vector.load %arg7[%c0_6, %c0_7] : memref<128x128xbf16, #tpu.memory_space<vmem>>, vector<128x128xbf16>
    %cst = arith.constant dense<0.000000e+00> : vector<128x128xf32>
    %18 = tpu.matmul %16, %17, %cst {dimension_numbers = #tpu.dot_dimension_numbers<[1], [0], [0], [1], [0, 0, 1, 1], [], []>} : vector<128x128xbf16>, vector<128x128xbf16>, vector<128x128xf32> -> vector<128x128xf32>
    %c0_8 = arith.constant 0 : index
    %c0_9 = arith.constant 0 : index
    %19 = vector.load %arg8[%c0_8, %c0_9] : memref<1x128xf32, #tpu.memory_space<vmem>>, vector<1x128xf32>
    %20 = vector.broadcast %19 : vector<1x128xf32> to vector<128x128xf32>
    %21 = arith.addf %18, %20 : vector<128x128xf32>
    %22 = arith.truncf %21 : vector<128x128xf32> to vector<128x128xbf16>
    %c0_10 = arith.constant 0 : index
    %c0_11 = arith.constant 0 : index
    %23 = vector.load %arg14[%c0_10, %c0_11] : memref<256x128xbf16, #tpu.memory_space<vmem>>, vector<256x128xbf16>
    %cst_12 = arith.constant dense<0.000000e+00> : vector<128x256xf32>
    %24 = tpu.matmul %22, %23, %cst_12 {dimension_numbers = #tpu.dot_dimension_numbers<[1], [1], [0], [0], [0, 0, 1, 0], [], []>} : vector<128x128xbf16>, vector<256x128xbf16>, vector<128x256xf32> -> vector<128x256xf32>
    %cst_13 = arith.constant dense<0xFF800000> : vector<128xf32>
    %25 = vector.multi_reduction <maximumf>, %24, %cst_13 [1] : vector<128x256xf32> to vector<128xf32>
    %26 = vector.shape_cast %25 : vector<128xf32> to vector<128x1xf32>
    %27 = vector.broadcast %26 : vector<128x1xf32> to vector<128x256xf32>
    %28 = arith.subf %24, %27 : vector<128x256xf32>
    %29 = arith.truncf %28 : vector<128x256xf32> to vector<128x256xbf16>
    %30 = math.exp %29 : vector<128x256xbf16>
    %31 = arith.extf %30 : vector<128x256xbf16> to vector<128x256xf32>
    %cst_14 = arith.constant dense<0.000000e+00> : vector<128xf32>
    %32 = vector.multi_reduction <add>, %31, %cst_14 [1] : vector<128x256xf32> to vector<128xf32>
    %33 = vector.shape_cast %32 : vector<128xf32> to vector<128x1xf32>
    %c0_15 = arith.constant 0 : index
    %c0_16 = arith.constant 0 : index
    %34 = vector.load %arg15[%c0_15, %c0_16] : memref<256x128xbf16, #tpu.memory_space<vmem>>, vector<256x128xbf16>
    %cst_17 = arith.constant dense<0.000000e+00> : vector<128x128xf32>
    %35 = tpu.matmul %30, %34, %cst_17 {dimension_numbers = #tpu.dot_dimension_numbers<[1], [0], [0], [1], [0, 0, 1, 1], [], []>} : vector<128x256xbf16>, vector<256x128xbf16>, vector<128x128xf32> -> vector<128x128xf32>
    %36 = tpu.reciprocal %33 {approx = true} : vector<128x1xf32> -> vector<128x1xf32>
    %37 = vector.broadcast %36 : vector<128x1xf32> to vector<128x128xf32>
    %38 = arith.mulf %35, %37 : vector<128x128xf32>
    %39 = arith.truncf %38 : vector<128x128xf32> to vector<128x128xbf16>
    %c0_18 = arith.constant 0 : index
    %c0_19 = arith.constant 0 : index
    %40 = vector.load %arg11[%c0_18, %c0_19] : memref<128x128xbf16, #tpu.memory_space<vmem>>, vector<128x128xbf16>
    %cst_20 = arith.constant dense<0.000000e+00> : vector<128x128xf32>
    %41 = tpu.matmul %39, %40, %cst_20 {dimension_numbers = #tpu.dot_dimension_numbers<[1], [0], [0], [1], [0, 0, 1, 1], [], []>} : vector<128x128xbf16>, vector<128x128xbf16>, vector<128x128xf32> -> vector<128x128xf32>
    %c0_21 = arith.constant 0 : index
    %c0_22 = arith.constant 0 : index
    %42 = vector.load %arg12[%c0_21, %c0_22] : memref<1x128xf32, #tpu.memory_space<vmem>>, vector<1x128xf32>
    %43 = vector.broadcast %42 : vector<1x128xf32> to vector<128x128xf32>
    %44 = arith.addf %41, %43 : vector<128x128xf32>
    %45 = arith.addf %9, %44 : vector<128x128xf32>
    %c0_23 = arith.constant 0 : index
    %c0_24 = arith.constant 0 : index
    %c0_25 = arith.constant 0 : index
    %46 = vector.load %arg13[%c0_23, %c0_24, %c0_25] : memref<1x128x128xf32, #tpu.memory_space<vmem>>, vector<1x128x128xf32>
    %47 = vector.shape_cast %46 : vector<1x128x128xf32> to vector<128x128xf32>
    %48 = vector.shape_cast %45 : vector<128x128xf32> to vector<1x128x128xf32>
    tpu.vector_store %arg13[%c0_23, %c0_24, %c0_25], %48 {strides = array<i32>} : memref<1x128x128xf32, #tpu.memory_space<vmem>>, vector<1x128x128xf32>,
    return
  }
  func.func @transform_0(%arg0: i32, %arg1: i32, %arg2: i32) -> (i32, i32, i32) {
    %c0_i32 = arith.constant 0 : i32
    %c0_i32_0 = arith.constant 0 : i32
    %c0_i32_1 = arith.constant 0 : i32
    return %arg0, %c0_i32, %c0_i32_0 : i32, i32, i32
  }
  func.func @transform_1(%arg0: i32, %arg1: i32, %arg2: i32) -> (i32, i32) {
    %c0_i32 = arith.constant 0 : i32
    %c0_i32_0 = arith.constant 0 : i32
    %c0_i32_1 = arith.constant 0 : i32
    return %c0_i32, %c0_i32_0 : i32, i32
  }
  func.func @transform_2(%arg0: i32, %arg1: i32, %arg2: i32) -> (i32, i32) {
    %c0_i32 = arith.constant 0 : i32
    %c0_i32_0 = arith.constant 0 : i32
    %c0_i32_1 = arith.constant 0 : i32
    return %c0_i32, %c0_i32_0 : i32, i32
  }
  func.func @transform_3(%arg0: i32, %arg1: i32, %arg2: i32) -> (i32, i32) {
    %c0_i32 = arith.constant 0 : i32
    %c0_i32_0 = arith.constant 0 : i32
    %c0_i32_1 = arith.constant 0 : i32
    return %c0_i32, %c0_i32_0 : i32, i32
  }
  func.func @transform_4(%arg0: i32, %arg1: i32, %arg2: i32) -> (i32, i32) {
    %c0_i32 = arith.constant 0 : i32
    %c0_i32_0 = arith.constant 0 : i32
    %c0_i32_1 = arith.constant 0 : i32
    return %c0_i32, %c0_i32_0 : i32, i32
  }
  func.func @transform_5(%arg0: i32, %arg1: i32, %arg2: i32) -> (i32, i32) {
    %c0_i32 = arith.constant 0 : i32
    %c0_i32_0 = arith.constant 0 : i32
    %c0_i32_1 = arith.constant 0 : i32
    return %c0_i32, %c0_i32_0 : i32, i32
  }
  func.func @transform_6(%arg0: i32, %arg1: i32, %arg2: i32) -> (i32, i32) {
    %c0_i32 = arith.constant 0 : i32
    %c0_i32_0 = arith.constant 0 : i32
    %c0_i32_1 = arith.constant 0 : i32
    return %c0_i32, %c0_i32_0 : i32, i32
  }
  func.func @transform_7(%arg0: i32, %arg1: i32, %arg2: i32) -> (i32, i32) {
    %c0_i32 = arith.constant 0 : i32
    %c0_i32_0 = arith.constant 0 : i32
    %c0_i32_1 = arith.constant 0 : i32
    return %c0_i32, %c0_i32_0 : i32, i32
  }
  func.func @transform_8(%arg0: i32, %arg1: i32, %arg2: i32) -> (i32, i32) {
    %c0_i32 = arith.constant 0 : i32
    %c0_i32_0 = arith.constant 0 : i32
    %c0_i32_1 = arith.constant 0 : i32
    return %c0_i32, %c0_i32_0 : i32, i32
  }
  func.func @transform_9(%arg0: i32, %arg1: i32, %arg2: i32) -> (i32, i32) {
    %c0_i32 = arith.constant 0 : i32
    %c0_i32_0 = arith.constant 0 : i32
    %c0_i32_1 = arith.constant 0 : i32
    return %c0_i32, %c0_i32_0 : i32, i32
  }
  func.func @transform_10(%arg0: i32, %arg1: i32, %arg2: i32) -> (i32, i32, i32) {
    %c2_i32 = arith.constant 2 : i32
    %0 = arith.muli %arg1, %c2_i32 : i32
    %1 = arith.addi %0, %arg2 : i32
    %c0_i32 = arith.constant 0 : i32
    %c0_i32_0 = arith.constant 0 : i32
    return %arg0, %1, %c0_i32 : i32, i32, i32
  }
}

</mosaic_0001>

<llo_original>
// kernel: tpu_custom_call.1
$region0: #{tpu_custom_call.1}
  #allocation0 [shape = 'u32[]', space=smem, size = 0x4, offset = 0x4, fixed_abs, tag = 'smem constant byte address 0x4 - core index']
  #allocation1 [shape = 'u32[144,128]{1,0:T(1,128)}', space=vmem, size = 0x12000, scoped, tag = 'internal scratch']
  #allocation2 [shape = 'bf16[256,128]{1,0:T(8,128)(2,1)}', space=vmem, size = 0x10000, scoped, tag = 'scratch operand']
  #allocation3 [shape = 'bf16[256,128]{1,0:T(8,128)(2,1)}', space=vmem, size = 0x10000, scoped, tag = 'scratch operand']
  #allocation4 [shape = 'f32[1,128]{1,0:T(1,128)}', space=vmem, size = 0x200, scoped, tag = 'scratch operand']
  #allocation5 [shape = 'f32[1,128]{1,0:T(1,128)}', space=vmem, size = 0x200, scoped, tag = 'scratch operand']
  %s0 = inlined_call_operand.hbm [shape: f32[2,256,128], index: 0, kind: input, shape index: {}]
  %s1 = inlined_call_operand.hbm [shape: f32[128,128], index: 1, kind: input, shape index: {}]
  %s2 = inlined_call_operand.vmem [shape: f32[1,128], index: 2, kind: input, shape index: {}]
  %s3 = inlined_call_operand.vmem [shape: f32[1,128], index: 3, kind: input, shape index: {}]
  %s4 = inlined_call_operand.hbm [shape: bf16[128,128], index: 4, kind: input, shape index: {}]
  %s5 = inlined_call_operand.vmem [shape: f32[1,128], index: 5, kind: input, shape index: {}]
  %s6 = inlined_call_operand.hbm [shape: bf16[128,256], index: 6, kind: input, shape index: {}]
  %s7 = inlined_call_operand.vmem [shape: f32[1,128], index: 7, kind: input, shape index: {}]
  %s8 = inlined_call_operand.hbm [shape: bf16[128,128], index: 8, kind: input, shape index: {}]
  %s9 = inlined_call_operand.vmem [shape: f32[1,128], index: 9, kind: input, shape index: {}]
  %s10 = inlined_call_operand.hbm [shape: f32[2,256,128], index: 10, kind: output, shape index: {}]
  %s11 = sld [smem:[#allocation0]]
  $region118: #{tpu_custom_call.1} parent=0
    _
  %s13 = ssub.s32 1, %s11
  %s14 = scalar_select 0, %s13, %s11
  $region1: #{tpu_custom_call.1} parent=0
    #allocation6 [shape = 'u8[131072]{0}', space=vmem, size = 0x20000, scoped, tag = 'input window, operand 0, single buffered']
    #allocation7 [shape = 's32[2]{0}', space=sflag, size = 0x8, scoped, tag = 'scoped memory for tpu_custom_call.1']
    #allocation8 [shape = 's32[2]{0}', space=sflag, size = 0x8, scoped, tag = 'scoped memory for tpu_custom_call.1']
    #allocation9 [shape = 'u8[65536]{0}', space=vmem, size = 0x10000, scoped, tag = 'input window, operand 1, single buffered']
    #allocation10 [shape = 's32[1]{0}', space=sflag, size = 0x4, scoped, tag = 'scoped memory for tpu_custom_call.1']
    #allocation11 [shape = 'u8[32768]{0}', space=vmem, size = 0x8000, scoped, tag = 'input window, operand 4, single buffered']
    #allocation12 [shape = 'u8[65536]{0}', space=vmem, size = 0x10000, scoped, tag = 'input window, operand 6, single buffered']
    #allocation13 [shape = 's32[1]{0}', space=sflag, size = 0x4, scoped, tag = 'scoped memory for tpu_custom_call.1']
    #allocation14 [shape = 'u8[32768]{0}', space=vmem, size = 0x8000, scoped, tag = 'input window, operand 8, single buffered']
    #allocation15 [shape = 'u8[131072]{0}', space=vmem, size = 0x20000, scoped, tag = 'output window, operand 0']
    %15 = vsyncpa [#allocation7], 0
    %16 = vsyncpa [#allocation10], 0
    %17 = vsyncpa [#allocation13], 0
    %18 = vsyncpa [#allocation8], 0
    %s19 = scalar_lea.sflag [#allocation8], 1
    %20 = vsyncpa %s19, 0
    loop: start=0, step=1, limit=6
    $region2: #{tpu_custom_call.1} parent=1 // loop_pre_header
      _
    $region3: #{tpu_custom_call.1} parent=1 // loop_header
      %s22 = sphi 0, %s26
      %p23 = scmp.ge.s32.totalorder %s22, 6
      %s29 = sphi 0, %s48
      %s30 = sphi 0, %s44
      %s31 = sphi 0, %s40
      %s32 = sphi 0, %s29
      %s33 = sphi 0, %s30
      %s34 = sphi 0, %s31
      %s35 = sphi 0, %s32
      %s36 = sphi 0, %s33
      %s37 = sphi 0, %s34
      %s51 = sphi 0, %s53
      %s54 = sphi 0, %s51
      %s55 = sphi 0, %s54
      %s71 = sphi 0, %s55
      %s75 = sphi 0, %s75
      %s77 = sphi 0, %s75
      %s78 = sphi 0, %s77
      %s92 = sphi 0, %s78
      %s96 = sphi 0, %s96
      %s98 = sphi 0, %s96
      %s99 = sphi 0, %s98
      %s113 = sphi 0, %s99
      %s117 = sphi 0, %s117
      %s119 = sphi 0, %s117
      %s120 = sphi 0, %s119
      %s134 = sphi 0, %s120
      %s138 = sphi 0, %s138
      %s140 = sphi 0, %s138
      %s141 = sphi 0, %s140
      %s155 = sphi 0, %s141
      %s159 = sphi 0, %s159
      %s161 = sphi 0, %s159
      %s162 = sphi 0, %s161
      %s176 = sphi 0, %s162
      %s180 = sphi 0, %s180
      %s182 = sphi 0, %s180
      %s183 = sphi 0, %s182
      %s197 = sphi 0, %s183
      %s201 = sphi 0, %s201
      %s203 = sphi 0, %s201
      %s204 = sphi 0, %s203
      %s218 = sphi 0, %s204
      %s222 = sphi 0, %s222
      %s224 = sphi 0, %s222
      %s225 = sphi 0, %s224
      %s239 = sphi 0, %s225
      %s243 = sphi 0, %s243
      %s245 = sphi 0, %s243
      %s246 = sphi 0, %s245
      %s260 = sphi 0, %s246
      %s272 = sphi 0, %s274
      %s275 = sphi 0, %s272
      %s276 = sphi 0, %s275
      %s292 = sphi 0, %s276
    $region4: #{tpu_custom_call.1} parent=1 // loop_header_branch
      %25 = sbr.rel (%p23) target = $region8
    $region5: #{tpu_custom_call.1} parent=1 // loop_body
      %s27 = ssub.s32 %s22, 1
      %s28 = ssub.s32 %s22, 2
      %s38 = sadd.s32 1, %s31
      %p39 = scmp.ge.s32.totalorder %s38, 2
      %s40 = scalar_select %p39, 0, %s38
      %s41 = sadd.s32 1, %s30
      %s42 = scalar_select %p39, %s41, %s30
      %p43 = scmp.ge.s32.totalorder %s42, 1
      %s44 = scalar_select %p43, 0, %s42
      %s45 = sadd.s32 1, %s29
      %s46 = scalar_select %p43, %s45, %s29
      %p47 = scmp.ge.s32.totalorder %s46, 2
      %s48 = scalar_select %p47, 0, %s46
      %s49 = ssub.s32 %s29, %s48
      %p50 = scmp.eq.s32.totalorder %s49, 0
      %s52 = sadd.s32 %s51, 1
      %s53 = scalar_select %p50, %s51, %s52
      %p56 = pneg %p50
      %p57 = scmp.eq.s32.totalorder %s22, 3
      %p58 = por %p56, %p57
      %p59 = scmp.ne.s32.totalorder %s51, %s54
      %p60 = scmp.eq.s32.totalorder %s22, 0
      %p61 = por %p59, %p60
      %p62 = scmp.ne.s32.totalorder %s51, %s54
      %p63 = scmp.eq.s32.totalorder %s27, 3
      %p64 = por %p62, %p63
      %p65 = scmp.ne.s32.totalorder %s54, %s55
      %p66 = scmp.eq.s32.totalorder %s27, 0
      %p67 = por %p65, %p66
      %p68 = scmp.ne.s32.totalorder %s54, %s55
      %p69 = scmp.eq.s32.totalorder %s28, 3
      %p70 = por %p68, %p69
      %p72 = scmp.ne.s32.totalorder %s55, %s71
      %p73 = scmp.eq.s32.totalorder %s28, 0
      %p74 = por %p72, %p73
      %s76 = sadd.s32 %s75, 1
      %p79 = scmp.eq.s32.totalorder %s22, 3
      %p80 = scmp.ne.s32.totalorder %s75, %s77
      %p81 = scmp.eq.s32.totalorder %s22, 0
      %p82 = por %p80, %p81
      %p83 = scmp.ne.s32.totalorder %s75, %s77
      %p84 = scmp.eq.s32.totalorder %s27, 3
      %p85 = por %p83, %p84
      %p86 = scmp.ne.s32.totalorder %s77, %s78
      %p87 = scmp.eq.s32.totalorder %s27, 0
      %p88 = por %p86, %p87
      %p89 = scmp.ne.s32.totalorder %s77, %s78
      %p90 = scmp.eq.s32.totalorder %s28, 3
      %p91 = por %p89, %p90
      %p93 = scmp.ne.s32.totalorder %s78, %s92
      %p94 = scmp.eq.s32.totalorder %s28, 0
      %p95 = por %p93, %p94
      %s97 = sadd.s32 %s96, 1
      %p100 = scmp.eq.s32.totalorder %s22, 3
      %p101 = scmp.ne.s32.totalorder %s96, %s98
      %p102 = scmp.eq.s32.totalorder %s22, 0
      %p103 = por %p101, %p102
      %p104 = scmp.ne.s32.totalorder %s96, %s98
      %p105 = scmp.eq.s32.totalorder %s27, 3
      %p106 = por %p104, %p105
      %p107 = scmp.ne.s32.totalorder %s98, %s99
      %p108 = scmp.eq.s32.totalorder %s27, 0
      %p109 = por %p107, %p108
      %p110 = scmp.ne.s32.totalorder %s98, %s99
      %p111 = scmp.eq.s32.totalorder %s28, 3
      %p112 = por %p110, %p111
      %p114 = scmp.ne.s32.totalorder %s99, %s113
      %p115 = scmp.eq.s32.totalorder %s28, 0
      %p116 = por %p114, %p115
      %s118 = sadd.s32 %s117, 1
      %p121 = scmp.eq.s32.totalorder %s22, 3
      %p122 = scmp.ne.s32.totalorder %s117, %s119
      %p123 = scmp.eq.s32.totalorder %s22, 0
      %p124 = por %p122, %p123
      %p125 = scmp.ne.s32.totalorder %s117, %s119
      %p126 = scmp.eq.s32.totalorder %s27, 3
      %p127 = por %p125, %p126
      %p128 = scmp.ne.s32.totalorder %s119, %s120
      %p129 = scmp.eq.s32.totalorder %s27, 0
      %p130 = por %p128, %p129
      %p131 = scmp.ne.s32.totalorder %s119, %s120
      %p132 = scmp.eq.s32.totalorder %s28, 3
      %p133 = por %p131, %p132
      %p135 = scmp.ne.s32.totalorder %s120, %s134
      %p136 = scmp.eq.s32.totalorder %s28, 0
      %p137 = por %p135, %p136
      %s139 = sadd.s32 %s138, 1
      %p142 = scmp.eq.s32.totalorder %s22, 3
      %p143 = scmp.ne.s32.totalorder %s138, %s140
      %p144 = scmp.eq.s32.totalorder %s22, 0
      %p145 = por %p143, %p144
      %p146 = scmp.ne.s32.totalorder %s138, %s140
      %p147 = scmp.eq.s32.totalorder %s27, 3
      %p148 = por %p146, %p147
      %p149 = scmp.ne.s32.totalorder %s140, %s141
      %p150 = scmp.eq.s32.totalorder %s27, 0
      %p151 = por %p149, %p150
      %p152 = scmp.ne.s32.totalorder %s140, %s141
      %p153 = scmp.eq.s32.totalorder %s28, 3
      %p154 = por %p152, %p153
      %p156 = scmp.ne.s32.totalorder %s141, %s155
      %p157 = scmp.eq.s32.totalorder %s28, 0
      %p158 = por %p156, %p157
      %s160 = sadd.s32 %s159, 1
      %p163 = scmp.eq.s32.totalorder %s22, 3
      %p164 = scmp.ne.s32.totalorder %s159, %s161
      %p165 = scmp.eq.s32.totalorder %s22, 0
      %p166 = por %p164, %p165
      %p167 = scmp.ne.s32.totalorder %s159, %s161
      %p168 = scmp.eq.s32.totalorder %s27, 3
      %p169 = por %p167, %p168
      %p170 = scmp.ne.s32.totalorder %s161, %s162
      %p171 = scmp.eq.s32.totalorder %s27, 0
      %p172 = por %p170, %p171
      %p173 = scmp.ne.s32.totalorder %s161, %s162
      %p174 = scmp.eq.s32.totalorder %s28, 3
      %p175 = por %p173, %p174
      %p177 = scmp.ne.s32.totalorder %s162, %s176
      %p178 = scmp.eq.s32.totalorder %s28, 0
      %p179 = por %p177, %p178
      %s181 = sadd.s32 %s180, 1
      %p184 = scmp.eq.s32.totalorder %s22, 3
      %p185 = scmp.ne.s32.totalorder %s180, %s182
      %p186 = scmp.eq.s32.totalorder %s22, 0
      %p187 = por %p185, %p186
      %p188 = scmp.ne.s32.totalorder %s180, %s182
      %p189 = scmp.eq.s32.totalorder %s27, 3
      %p190 = por %p188, %p189
      %p191 = scmp.ne.s32.totalorder %s182, %s183
      %p192 = scmp.eq.s32.totalorder %s27, 0
      %p193 = por %p191, %p192
      %p194 = scmp.ne.s32.totalorder %s182, %s183
      %p195 = scmp.eq.s32.totalorder %s28, 3
      %p196 = por %p194, %p195
      %p198 = scmp.ne.s32.totalorder %s183, %s197
      %p199 = scmp.eq.s32.totalorder %s28, 0
      %p200 = por %p198, %p199
      %s202 = sadd.s32 %s201, 1
      %p205 = scmp.eq.s32.totalorder %s22, 3
      %p206 = scmp.ne.s32.totalorder %s201, %s203
      %p207 = scmp.eq.s32.totalorder %s22, 0
      %p208 = por %p206, %p207
      %p209 = scmp.ne.s32.totalorder %s201, %s203
      %p210 = scmp.eq.s32.totalorder %s27, 3
      %p211 = por %p209, %p210
      %p212 = scmp.ne.s32.totalorder %s203, %s204
      %p213 = scmp.eq.s32.totalorder %s27, 0
      %p214 = por %p212, %p213
      %p215 = scmp.ne.s32.totalorder %s203, %s204
      %p216 = scmp.eq.s32.totalorder %s28, 3
      %p217 = por %p215, %p216
      %p219 = scmp.ne.s32.totalorder %s204, %s218
      %p220 = scmp.eq.s32.totalorder %s28, 0
      %p221 = por %p219, %p220
      %s223 = sadd.s32 %s222, 1
      %p226 = scmp.eq.s32.totalorder %s22, 3
      %p227 = scmp.ne.s32.totalorder %s222, %s224
      %p228 = scmp.eq.s32.totalorder %s22, 0
      %p229 = por %p227, %p228
      %p230 = scmp.ne.s32.totalorder %s222, %s224
      %p231 = scmp.eq.s32.totalorder %s27, 3
      %p232 = por %p230, %p231
      %p233 = scmp.ne.s32.totalorder %s224, %s225
      %p234 = scmp.eq.s32.totalorder %s27, 0
      %p235 = por %p233, %p234
      %p236 = scmp.ne.s32.totalorder %s224, %s225
      %p237 = scmp.eq.s32.totalorder %s28, 3
      %p238 = por %p236, %p237
      %p240 = scmp.ne.s32.totalorder %s225, %s239
      %p241 = scmp.eq.s32.totalorder %s28, 0
      %p242 = por %p240, %p241
      %s244 = sadd.s32 %s243, 1
      %p247 = scmp.eq.s32.totalorder %s22, 3
      %p248 = scmp.ne.s32.totalorder %s243, %s245
      %p249 = scmp.eq.s32.totalorder %s22, 0
      %p250 = por %p248, %p249
      %p251 = scmp.ne.s32.totalorder %s243, %s245
      %p252 = scmp.eq.s32.totalorder %s27, 3
      %p253 = por %p251, %p252
      %p254 = scmp.ne.s32.totalorder %s245, %s246
      %p255 = scmp.eq.s32.totalorder %s27, 0
      %p256 = por %p254, %p255
      %p257 = scmp.ne.s32.totalorder %s245, %s246
      %p258 = scmp.eq.s32.totalorder %s28, 3
      %p259 = por %p257, %p258
      %p261 = scmp.ne.s32.totalorder %s246, %s260
      %p262 = scmp.eq.s32.totalorder %s28, 0
      %p263 = por %p261, %p262
      %s264 = smul.u32 %s30, 2
      %s265 = sadd.s32 %s264, %s31
      %s266 = smul.u32 %s44, 2
      %s267 = sadd.s32 %s266, %s40
      %s268 = ssub.s32 %s29, %s48
      %s269 = ssub.s32 %s265, %s267
      %s270 = sor.u32 %s268, %s269
      %p271 = scmp.eq.s32.totalorder %s270, 0
      %s273 = sadd.s32 %s272, 1
      %s274 = scalar_select %p271, %s272, %s273
      %p277 = pneg %p271
      %p278 = scmp.eq.s32.totalorder %s22, 3
      %p279 = por %p277, %p278
      %p280 = scmp.ne.s32.totalorder %s272, %s275
      %p281 = scmp.eq.s32.totalorder %s22, 0
      %p282 = por %p280, %p281
      %p283 = scmp.ne.s32.totalorder %s272, %s275
      %p284 = scmp.eq.s32.totalorder %s27, 3
      %p285 = por %p283, %p284
      %p286 = scmp.ne.s32.totalorder %s275, %s276
      %p287 = scmp.eq.s32.totalorder %s27, 0
      %p288 = por %p286, %p287
      %p289 = scmp.ne.s32.totalorder %s275, %s276
      %p290 = scmp.eq.s32.totalorder %s28, 3
      %p291 = por %p289, %p290
      %p293 = scmp.ne.s32.totalorder %s276, %s292
      %p294 = scmp.eq.s32.totalorder %s28, 0
      %p295 = por %p293, %p294
      %p296 = scmp.le.s32.totalorder 1, %s22
      %p297 = scmp.lt.s32.totalorder %s22, 5
      %p298 = pnand %p296, %p297
      %p299 = pneg %p298
      // Predicated region
      $region9: #{tpu_custom_call.1} parent=5 // pred_check
        _
      $region10: #{tpu_custom_call.1} parent=5 // pred_check_branch
        %301 = sbr.rel (%p298) target = $region12
      $region11: #{tpu_custom_call.1} parent=5 // pred_region
        %s302 = ssub.s32 %s22, 1
        // Predicated region
        $region13: #{tpu_custom_call.1} parent=11 // pred_check
          %p303 = pneg %p67
        $region14: #{tpu_custom_call.1} parent=11 // pred_check_branch
          %305 = sbr.rel (%p303) target = $region16
        $region15: #{tpu_custom_call.1} parent=11 // pred_region
          %s307 = ssub.s32 4096, 4096
          %308 = vsyncadd [#allocation7], %s307
          %s309 = smul.addr %s32, 32
          %s310 = smul.addr %s309, 128
          %s311 = scalar_lea.hbm %s0, %s310
          %s312 = sshll.u32 [#allocation6], 4
          %s313 = int_to_ptr.vmem [resolvable:$true] %s312
          %318 = dma.hbm_to_vmem [thread:$0]  %s311, 4096, %s313, [#allocation7], 128, 128, 8
        $region16: #{tpu_custom_call.1} parent=11 // pred_fallthru
          _
        // Predicated region
        $region17: #{tpu_custom_call.1} parent=11 // pred_check
          %p319 = pneg %p88
        $region18: #{tpu_custom_call.1} parent=11 // pred_check_branch
          %321 = sbr.rel (%p319) target = $region20
        $region19: #{tpu_custom_call.1} parent=11 // pred_region
          %s323 = ssub.s32 2048, 2048
          %324 = vsyncadd [#allocation10], %s323
          %s325 = sshll.u32 [#allocation9], 4
          %s326 = int_to_ptr.vmem [resolvable:$true] %s325
          %331 = dma.hbm_to_vmem [thread:$0]  %s1, 2048, %s326, [#allocation10], 128, 128, 8
        $region20: #{tpu_custom_call.1} parent=11 // pred_fallthru
          _
        // Predicated region
        $region21: #{tpu_custom_call.1} parent=11 // pred_check
          %p332 = pneg %p109
        $region22: #{tpu_custom_call.1} parent=11 // pred_check_branch
          %334 = sbr.rel (%p332) target = $region24
        $region23: #{tpu_custom_call.1} parent=11 // pred_region
          _
        $region24: #{tpu_custom_call.1} parent=11 // pred_fallthru
          _
        // Predicated region
        $region25: #{tpu_custom_call.1} parent=11 // pred_check
          %p335 = pneg %p130
        $region26: #{tpu_custom_call.1} parent=11 // pred_check_branch
          %337 = sbr.rel (%p335) target = $region28
        $region27: #{tpu_custom_call.1} parent=11 // pred_region
          _
        $region28: #{tpu_custom_call.1} parent=11 // pred_fallthru
          _
        // Predicated region
        $region29: #{tpu_custom_call.1} parent=11 // pred_check
          %p338 = pneg %p151
        $region30: #{tpu_custom_call.1} parent=11 // pred_check_branch
          %340 = sbr.rel (%p338) target = $region32
        $region31: #{tpu_custom_call.1} parent=11 // pred_region
          %s342 = ssub.s32 1024, 1024
          %343 = vsyncadd [#allocation10], %s342
          %s344 = sshll.u32 [#allocation11], 4
          %s345 = int_to_ptr.vmem [resolvable:$true] %s344
          %350 = dma.hbm_to_vmem [thread:$0]  %s4, 1024, %s345, [#allocation10], 64, 64, 4
        $region32: #{tpu_custom_call.1} parent=11 // pred_fallthru
          _
        // Predicated region
        $region33: #{tpu_custom_call.1} parent=11 // pred_check
          %p351 = pneg %p172
        $region34: #{tpu_custom_call.1} parent=11 // pred_check_branch
          %353 = sbr.rel (%p351) target = $region36
        $region35: #{tpu_custom_call.1} parent=11 // pred_region
          _
        $region36: #{tpu_custom_call.1} parent=11 // pred_fallthru
          _
        // Predicated region
        $region37: #{tpu_custom_call.1} parent=11 // pred_check
          %p354 = pneg %p193
        $region38: #{tpu_custom_call.1} parent=11 // pred_check_branch
          %356 = sbr.rel (%p354) target = $region40
        $region39: #{tpu_custom_call.1} parent=11 // pred_region
          %s358 = ssub.s32 2048, 2048
          %359 = vsyncadd [#allocation13], %s358
          %s360 = sshll.u32 [#allocation12], 4
          %s361 = int_to_ptr.vmem [resolvable:$true] %s360
          %366 = dma.hbm_to_vmem [thread:$0]  %s6, 2048, %s361, [#allocation13], 128, 128, 8
        $region40: #{tpu_custom_call.1} parent=11 // pred_fallthru
          _
        // Predicated region
        $region41: #{tpu_custom_call.1} parent=11 // pred_check
          %p367 = pneg %p214
        $region42: #{tpu_custom_call.1} parent=11 // pred_check_branch
          %369 = sbr.rel (%p367) target = $region44
        $region43: #{tpu_custom_call.1} parent=11 // pred_region
          _
        $region44: #{tpu_custom_call.1} parent=11 // pred_fallthru
          _
        // Predicated region
        $region45: #{tpu_custom_call.1} parent=11 // pred_check
          %p370 = pneg %p235
        $region46: #{tpu_custom_call.1} parent=11 // pred_check_branch
          %372 = sbr.rel (%p370) target = $region48
        $region47: #{tpu_custom_call.1} parent=11 // pred_region
          %s374 = ssub.s32 1024, 1024
          %375 = vsyncadd [#allocation13], %s374
          %s376 = sshll.u32 [#allocation14], 4
          %s377 = int_to_ptr.vmem [resolvable:$true] %s376
          %382 = dma.hbm_to_vmem [thread:$0]  %s8, 1024, %s377, [#allocation13], 64, 64, 4
        $region48: #{tpu_custom_call.1} parent=11 // pred_fallthru
          _
        // Predicated region
        $region49: #{tpu_custom_call.1} parent=11 // pred_check
          %p383 = pneg %p256
        $region50: #{tpu_custom_call.1} parent=11 // pred_check_branch
          %385 = sbr.rel (%p383) target = $region52
        $region51: #{tpu_custom_call.1} parent=11 // pred_region
          _
        $region52: #{tpu_custom_call.1} parent=11 // pred_fallthru
          _
      $region12: #{tpu_custom_call.1} parent=5 // pred_fallthru
        _
      %p386 = scmp.lt.s32.totalorder %s22, 4
      // Predicated region
      $region53: #{tpu_custom_call.1} parent=5 // pred_check
        %p387 = pneg %p386
      $region54: #{tpu_custom_call.1} parent=5 // pred_check_branch
        %389 = sbr.rel (%p387) target = $region56
      $region55: #{tpu_custom_call.1} parent=5 // pred_region
        _
      $region56: #{tpu_custom_call.1} parent=5 // pred_fallthru
        _
      %p390 = scmp.le.s32.totalorder 1, %s22
      %p391 = scmp.lt.s32.totalorder %s22, 5
      %p392 = pnand %p390, %p391
      %p393 = pneg %p392
      // Predicated region
      $region57: #{tpu_custom_call.1} parent=5 // pred_check
        _
      $region58: #{tpu_custom_call.1} parent=5 // pred_check_branch
        %395 = sbr.rel (%p392) target = $region60
      $region59: #{tpu_custom_call.1} parent=5 // pred_region
        %s396 = ssub.s32 %s22, 1
        // Predicated region
        $region61: #{tpu_custom_call.1} parent=59 // pred_check
          %p397 = pneg %p67
        $region62: #{tpu_custom_call.1} parent=59 // pred_check_branch
          %399 = sbr.rel (%p397) target = $region64
        $region63: #{tpu_custom_call.1} parent=59 // pred_region
          %400 = dma.done [#allocation7], 4096
        $region64: #{tpu_custom_call.1} parent=59 // pred_fallthru
          _
        // Predicated region
        $region65: #{tpu_custom_call.1} parent=59 // pred_check
          %p401 = pneg %p88
        $region66: #{tpu_custom_call.1} parent=59 // pred_check_branch
          %403 = sbr.rel (%p401) target = $region68
        $region67: #{tpu_custom_call.1} parent=59 // pred_region
          %404 = dma.done [#allocation10], 2048
        $region68: #{tpu_custom_call.1} parent=59 // pred_fallthru
          _
        // Predicated region
        $region69: #{tpu_custom_call.1} parent=59 // pred_check
          %p405 = pneg %p151
        $region70: #{tpu_custom_call.1} parent=59 // pred_check_branch
          %407 = sbr.rel (%p405) target = $region72
        $region71: #{tpu_custom_call.1} parent=59 // pred_region
          %408 = dma.done [#allocation10], 1024
        $region72: #{tpu_custom_call.1} parent=59 // pred_fallthru
          _
        // Predicated region
        $region73: #{tpu_custom_call.1} parent=59 // pred_check
          %p409 = pneg %p193
        $region74: #{tpu_custom_call.1} parent=59 // pred_check_branch
          %411 = sbr.rel (%p409) target = $region76
        $region75: #{tpu_custom_call.1} parent=59 // pred_region
          %412 = dma.done [#allocation13], 2048
        $region76: #{tpu_custom_call.1} parent=59 // pred_fallthru
          _
        // Predicated region
        $region77: #{tpu_custom_call.1} parent=59 // pred_check
          %p413 = pneg %p235
        $region78: #{tpu_custom_call.1} parent=59 // pred_check_branch
          %415 = sbr.rel (%p413) target = $region80
        $region79: #{tpu_custom_call.1} parent=59 // pred_region
          %416 = dma.done [#allocation13], 1024
        $region80: #{tpu_custom_call.1} parent=59 // pred_fallthru
          _
        %p417 = pneg %p67
        %p418 = pneg %p64
        %p419 = pneg %p88
        %p420 = pneg %p85
        %p421 = pneg %p109
        %p422 = pneg %p106
        %p423 = pneg %p130
        %p424 = pneg %p127
        %p425 = pneg %p151
        %p426 = pneg %p148
        %p427 = pneg %p172
        %p428 = pneg %p169
        %p429 = pneg %p193
        %p430 = pneg %p190
        %p431 = pneg %p214
        %p432 = pneg %p211
        %p433 = pneg %p235
        %p434 = pneg %p232
        %p435 = pneg %p256
        %p436 = pneg %p253
        %p437 = pneg %p288
        %p438 = pneg %p285
        %s439 = sand.u32 %s275, 1
        %s440 = scalar_lea.sflag [#allocation8], %s439
        %s441 = sand.u32 %s275, 1
        %s442 = smul.addr %s441, 128
        %s443 = scalar_lea.vmem [#allocation15], %s442
        %s444 = smul.u32 %s33, 2
        %s445 = sadd.s32 %s444, %s34
        %s446 = smul.u32 16, %s445
        %p448 = scmp.eq.s32.totalorder %s34, 0
        // Predicated region
        $region81: #{tpu_custom_call.1} parent=59 // pred_check
          %p449 = pneg %p448
        $region82: #{tpu_custom_call.1} parent=59 // pred_check_branch
          %451 = sbr.rel (%p449) target = $region84
        $region83: #{tpu_custom_call.1} parent=59 // pred_region
          loop: start=0, step=1, limit=2
          $region85: #{tpu_custom_call.1} parent=83 // loop_pre_header
            _
          $region86: #{tpu_custom_call.1} parent=83 // loop_header
            %s453 = sphi 0, %s457
            %p454 = scmp.ge.s32.totalorder %s453, 2
            %v458 = vphi 0.0, %v547
          $region87: #{tpu_custom_call.1} parent=83 // loop_header_branch
            %456 = sbr.rel (%p454) target = $region91
          $region88: #{tpu_custom_call.1} parent=83 // loop_body
            %s459 = smul.u32 %s453, 128
            %s460 = scalar_lea.vmem [#allocation6], %s459
            %v461 = vld [vmem:[%s460] sm:$0xff]
            %v462 = vld [vmem:[%s460 + $0x8] sm:$0xff]
            %v463 = vld [vmem:[%s460 + $0x10] sm:$0xff]
            %v464 = vld [vmem:[%s460 + $0x18] sm:$0xff]
            %v465 = vld [vmem:[%s460 + $0x20] sm:$0xff]
            %v466 = vld [vmem:[%s460 + $0x28] sm:$0xff]
            %v467 = vld [vmem:[%s460 + $0x30] sm:$0xff]
            %v468 = vld [vmem:[%s460 + $0x38] sm:$0xff]
            %v469 = vld [vmem:[%s460 + $0x40] sm:$0xff]
            %v470 = vld [vmem:[%s460 + $0x48] sm:$0xff]
            %v471 = vld [vmem:[%s460 + $0x50] sm:$0xff]
            %v472 = vld [vmem:[%s460 + $0x58] sm:$0xff]
            %v473 = vld [vmem:[%s460 + $0x60] sm:$0xff]
            %v474 = vld [vmem:[%s460 + $0x68] sm:$0xff]
            %v475 = vld [vmem:[%s460 + $0x70] sm:$0xff]
            %v476 = vld [vmem:[%s460 + $0x78] sm:$0xff]
            %477 = vmatprep.subr.mxu0 0.0
            %478 = vmatpush1.msra.mxu0 %v476
            %479 = vmatprep.subr.mxu0 0.0
            %480 = vmatpush1.msra.mxu0 %v475
            %481 = vmatprep.subr.mxu0 0.0
            %482 = vmatpush1.msra.mxu0 %v474
            %483 = vmatprep.subr.mxu0 0.0
            %484 = vmatpush1.msra.mxu0 %v473
            %485 = vmatprep.subr.mxu0 0.0
            %486 = vmatpush1.msra.mxu0 %v472
            %487 = vmatprep.subr.mxu0 0.0
            %488 = vmatpush1.msra.mxu0 %v471
            %489 = vmatprep.subr.mxu0 0.0
            %490 = vmatpush1.msra.mxu0 %v470
            %491 = vmatprep.subr.mxu0 0.0
            %492 = vmatpush1.msra.mxu0 %v469
            %493 = vmatprep.subr.mxu0 0.0
            %494 = vmatpush1.msra.mxu0 %v468
            %495 = vmatprep.subr.mxu0 0.0
            %496 = vmatpush1.msra.mxu0 %v467
            %497 = vmatprep.subr.mxu0 0.0
            %498 = vmatpush1.msra.mxu0 %v466
            %499 = vmatprep.subr.mxu0 0.0
            %500 = vmatpush1.msra.mxu0 %v465
            %501 = vmatprep.subr.mxu0 0.0
            %502 = vmatpush1.msra.mxu0 %v464
            %503 = vmatprep.subr.mxu0 0.0
            %504 = vmatpush1.msra.mxu0 %v463
            %505 = vmatprep.subr.mxu0 0.0
            %506 = vmatpush1.msra.mxu0 %v462
            %507 = vmatprep.subr.mxu0 0.0
            %508 = vmatpush1.msra.mxu0 %v461
            %509 = vmatprep.subr.mxu0 0.0
            %510 = vmatpush2.msra.mxu0 0.0
            %511 = vmatprep.subr.mxu0 0.0
            %512 = vmatpush2.msra.mxu0 0.0
            %513 = vmatprep.subr.mxu0 0.0
            %514 = vmatpush2.msra.mxu0 0.0
            %515 = vmatprep.subr.mxu0 0.0
            %516 = vmatpush2.msra.mxu0 0.0
            %517 = vmatprep.subr.mxu0 0.0
            %518 = vmatpush2.msra.mxu0 0.0
            %519 = vmatprep.subr.mxu0 0.0
            %520 = vmatpush2.msra.mxu0 0.0
            %521 = vmatprep.subr.mxu0 0.0
            %522 = vmatpush2.msra.mxu0 0.0
            %523 = vmatprep.subr.mxu0 0.0
            %524 = vmatpush2.msra.mxu0 0.0
            %525 = vmatprep.subr.mxu0 0.0
            %526 = vmatpush2.msra.mxu0 0.0
            %527 = vmatprep.subr.mxu0 0.0
            %528 = vmatpush2.msra.mxu0 0.0
            %529 = vmatprep.subr.mxu0 0.0
            %530 = vmatpush2.msra.mxu0 0.0
            %531 = vmatprep.subr.mxu0 0.0
            %532 = vmatpush2.msra.mxu0 0.0
            %533 = vmatprep.subr.mxu0 0.0
            %534 = vmatpush2.msra.mxu0 0.0
            %535 = vmatprep.subr.mxu0 0.0
            %536 = vmatpush2.msra.mxu0 0.0
            %537 = vmatprep.subr.mxu0 0.0
            %538 = vmatpush2.msra.mxu0 0.0
            %539 = vmatprep.subr.mxu0 0.0
            %540 = vmatpush2.msra.mxu0 0.0
            %541 = vmatprep.mubr.f32.mxu0 0.0
            %542 = vmatmul.mubr.f32.gmra.mxu0 1.0
            %v543 = vpop.f32.mrf.mxu0
            %v544 = vadd.f32 0.0, %v543
            %v545 = vpop.f32.mrf.mxu0
            %546 = vdwg.mxu0
            %v547 = vadd.f32 %v458, %v544
          $region89: #{tpu_custom_call.1} parent=83 // loop_footer
            %s457 = sadd.s32 1, %s453
          $region90: #{tpu_custom_call.1} parent=83 // loop_footer_branch
            %452 = sbr.rel target = $region86
          $region91: #{tpu_custom_call.1} parent=83 // loop_exit
            _
          %v548 = vld [vmem:[#allocation9] sm:$0xff]
          %v549 = vld [vmem:[#allocation9 + $0x8] sm:$0xff]
          %v550 = vld [vmem:[#allocation9 + $0x10] sm:$0xff]
          %v551 = vld [vmem:[#allocation9 + $0x18] sm:$0xff]
          %v552 = vld [vmem:[#allocation9 + $0x20] sm:$0xff]
          %v553 = vld [vmem:[#allocation9 + $0x28] sm:$0xff]
          %v554 = vld [vmem:[#allocation9 + $0x30] sm:$0xff]
          %v555 = vld [vmem:[#allocation9 + $0x38] sm:$0xff]
          %v556 = vld [vmem:[#allocation9 + $0x40] sm:$0xff]
          %v557 = vld [vmem:[#allocation9 + $0x48] sm:$0xff]
          %v558 = vld [vmem:[#allocation9 + $0x50] sm:$0xff]
          %v559 = vld [vmem:[#allocation9 + $0x58] sm:$0xff]
          %v560 = vld [vmem:[#allocation9 + $0x60] sm:$0xff]
          %v561 = vld [vmem:[#allocation9 + $0x68] sm:$0xff]
          %v562 = vld [vmem:[#allocation9 + $0x70] sm:$0xff]
          %v563 = vld [vmem:[#allocation9 + $0x78] sm:$0xff]
          %564 = vmatprep.subr.mxu0 0.0
          %565 = vmatpush1.msra.mxu0 %v563
          %566 = vmatprep.subr.mxu0 0.0
          %567 = vmatpush1.msra.mxu0 %v562
          %568 = vmatprep.subr.mxu0 0.0
          %569 = vmatpush1.msra.mxu0 %v561
          %570 = vmatprep.subr.mxu0 0.0
          %571 = vmatpush1.msra.mxu0 %v560
          %572 = vmatprep.subr.mxu0 0.0
          %573 = vmatpush1.msra.mxu0 %v559
          %574 = vmatprep.subr.mxu0 0.0
          %575 = vmatpush1.msra.mxu0 %v558
          %576 = vmatprep.subr.mxu0 0.0
          %577 = vmatpush1.msra.mxu0 %v557
          %578 = vmatprep.subr.mxu0 0.0
          %579 = vmatpush1.msra.mxu0 %v556
          %580 = vmatprep.subr.mxu0 0.0
          %581 = vmatpush1.msra.mxu0 %v555
          %582 = vmatprep.subr.mxu0 0.0
          %583 = vmatpush1.msra.mxu0 %v554
          %584 = vmatprep.subr.mxu0 0.0
          %585 = vmatpush1.msra.mxu0 %v553
          %586 = vmatprep.subr.mxu0 0.0
          %587 = vmatpush1.msra.mxu0 %v552
          %588 = vmatprep.subr.mxu0 0.0
          %589 = vmatpush1.msra.mxu0 %v551
          %590 = vmatprep.subr.mxu0 0.0
          %591 = vmatpush1.msra.mxu0 %v550
          %592 = vmatprep.subr.mxu0 0.0
          %593 = vmatpush1.msra.mxu0 %v549
          %594 = vmatprep.subr.mxu0 0.0
          %595 = vmatpush1.msra.mxu0 %v548
          %596 = vmatprep.subr.mxu0 0.0
          %597 = vmatpush2.msra.mxu0 0.0
          %598 = vmatprep.subr.mxu0 0.0
          %599 = vmatpush2.msra.mxu0 0.0
          %600 = vmatprep.subr.mxu0 0.0
          %601 = vmatpush2.msra.mxu0 0.0
          %602 = vmatprep.subr.mxu0 0.0
          %603 = vmatpush2.msra.mxu0 0.0
          %604 = vmatprep.subr.mxu0 0.0
          %605 = vmatpush2.msra.mxu0 0.0
          %606 = vmatprep.subr.mxu0 0.0
          %607 = vmatpush2.msra.mxu0 0.0
          %608 = vmatprep.subr.mxu0 0.0
          %609 = vmatpush2.msra.mxu0 0.0
          %610 = vmatprep.subr.mxu0 0.0
          %611 = vmatpush2.msra.mxu0 0.0
          %612 = vmatprep.subr.mxu0 0.0
          %613 = vmatpush2.msra.mxu0 0.0
          %614 = vmatprep.subr.mxu0 0.0
          %615 = vmatpush2.msra.mxu0 0.0
          %616 = vmatprep.subr.mxu0 0.0
          %617 = vmatpush2.msra.mxu0 0.0
          %618 = vmatprep.subr.mxu0 0.0
          %619 = vmatpush2.msra.mxu0 0.0
          %620 = vmatprep.subr.mxu0 0.0
          %621 = vmatpush2.msra.mxu0 0.0
          %622 = vmatprep.subr.mxu0 0.0
          %623 = vmatpush2.msra.mxu0 0.0
          %624 = vmatprep.subr.mxu0 0.0
          %625 = vmatpush2.msra.mxu0 0.0
          %626 = vmatprep.subr.mxu0 0.0
          %627 = vmatpush2.msra.mxu0 0.0
          %628 = vmatprep.mubr.f32.mxu0 0.0
          %629 = vmatmul.mubr.f32.gmra.mxu0 %v458
          %v630 = vpop.f32.mrf.mxu0
          %v631 = vadd.f32 0.0, %v630
          %v632 = vpop.f32.mrf.mxu0
          %633 = vdwg.mxu0
          %v634 = vmul.f32 %v631, 0.0009765625
          loop: start=0, step=1, limit=2
          $region92: #{tpu_custom_call.1} parent=83 // loop_pre_header
            _
          $region93: #{tpu_custom_call.1} parent=83 // loop_header
            %s636 = sphi 0, %s640
            %p637 = scmp.ge.s32.totalorder %s636, 2
            %v641 = vphi 0.0, %v766
          $region94: #{tpu_custom_call.1} parent=83 // loop_header_branch
            %639 = sbr.rel (%p637) target = $region98
          $region95: #{tpu_custom_call.1} parent=83 // loop_body
            %s642 = smul.u32 %s636, 128
            %s643 = scalar_lea.vmem [#allocation6], %s642
            %v644 = vld [vmem:[%s643] sm:$0xff]
            %v645 = vld [vmem:[%s643 + $0x8] sm:$0xff]
            %v646 = vld [vmem:[%s643 + $0x10] sm:$0xff]
            %v647 = vld [vmem:[%s643 + $0x18] sm:$0xff]
            %v648 = vld [vmem:[%s643 + $0x20] sm:$0xff]
            %v649 = vld [vmem:[%s643 + $0x28] sm:$0xff]
            %v650 = vld [vmem:[%s643 + $0x30] sm:$0xff]
            %v651 = vld [vmem:[%s643 + $0x38] sm:$0xff]
            %v652 = vld [vmem:[%s643 + $0x40] sm:$0xff]
            %v653 = vld [vmem:[%s643 + $0x48] sm:$0xff]
            %v654 = vld [vmem:[%s643 + $0x50] sm:$0xff]
            %v655 = vld [vmem:[%s643 + $0x58] sm:$0xff]
            %v656 = vld [vmem:[%s643 + $0x60] sm:$0xff]
            %v657 = vld [vmem:[%s643 + $0x68] sm:$0xff]
            %v658 = vld [vmem:[%s643 + $0x70] sm:$0xff]
            %v659 = vld [vmem:[%s643 + $0x78] sm:$0xff]
            %v660 = vlaneseq
            %v661 = vshrl.u32 %v660, 7
            %v662 = vsub.s32 0, %v661
            %v663 = vrot.slane %v634, %v662
            %v664 = vsub.f32 %v644, %v663
            %v665 = vsub.f32 %v645, %v663
            %v666 = vsub.f32 %v646, %v663
            %v667 = vsub.f32 %v647, %v663
            %v668 = vsub.f32 %v648, %v663
            %v669 = vsub.f32 %v649, %v663
            %v670 = vsub.f32 %v650, %v663
            %v671 = vsub.f32 %v651, %v663
            %v672 = vsub.f32 %v652, %v663
            %v673 = vsub.f32 %v653, %v663
            %v674 = vsub.f32 %v654, %v663
            %v675 = vsub.f32 %v655, %v663
            %v676 = vsub.f32 %v656, %v663
            %v677 = vsub.f32 %v657, %v663
            %v678 = vsub.f32 %v658, %v663
            %v679 = vsub.f32 %v659, %v663
            %v680 = vmul.f32 %v664, %v664
            %v681 = vmul.f32 %v665, %v665
            %v682 = vmul.f32 %v666, %v666
            %v683 = vmul.f32 %v667, %v667
            %v684 = vmul.f32 %v668, %v668
            %v685 = vmul.f32 %v669, %v669
            %v686 = vmul.f32 %v670, %v670
            %v687 = vmul.f32 %v671, %v671
            %v688 = vmul.f32 %v672, %v672
            %v689 = vmul.f32 %v673, %v673
            %v690 = vmul.f32 %v674, %v674
            %v691 = vmul.f32 %v675, %v675
            %v692 = vmul.f32 %v676, %v676
            %v693 = vmul.f32 %v677, %v677
            %v694 = vmul.f32 %v678, %v678
            %v695 = vmul.f32 %v679, %v679
            %696 = vmatprep.subr.mxu0 0.0
            %697 = vmatpush1.msra.mxu0 %v695
            %698 = vmatprep.subr.mxu0 0.0
            %699 = vmatpush1.msra.mxu0 %v694
            %700 = vmatprep.subr.mxu0 0.0
            %701 = vmatpush1.msra.mxu0 %v693
            %702 = vmatprep.subr.mxu0 0.0
            %703 = vmatpush1.msra.mxu0 %v692
            %704 = vmatprep.subr.mxu0 0.0
            %705 = vmatpush1.msra.mxu0 %v691
            %706 = vmatprep.subr.mxu0 0.0
            %707 = vmatpush1.msra.mxu0 %v690
            %708 = vmatprep.subr.mxu0 0.0
            %709 = vmatpush1.msra.mxu0 %v689
            %710 = vmatprep.subr.mxu0 0.0
            %711 = vmatpush1.msra.mxu0 %v688
            %712 = vmatprep.subr.mxu0 0.0
            %713 = vmatpush1.msra.mxu0 %v687
            %714 = vmatprep.subr.mxu0 0.0
            %715 = vmatpush1.msra.mxu0 %v686
            %716 = vmatprep.subr.mxu0 0.0
            %717 = vmatpush1.msra.mxu0 %v685
            %718 = vmatprep.subr.mxu0 0.0
            %719 = vmatpush1.msra.mxu0 %v684
            %720 = vmatprep.subr.mxu0 0.0
            %721 = vmatpush1.msra.mxu0 %v683
            %722 = vmatprep.subr.mxu0 0.0
            %723 = vmatpush1.msra.mxu0 %v682
            %724 = vmatprep.subr.mxu0 0.0
            %725 = vmatpush1.msra.mxu0 %v681
            %726 = vmatprep.subr.mxu0 0.0
            %727 = vmatpush1.msra.mxu0 %v680
            %728 = vmatprep.subr.mxu0 0.0
            %729 = vmatpush2.msra.mxu0 0.0
            %730 = vmatprep.subr.mxu0 0.0
            %731 = vmatpush2.msra.mxu0 0.0
            %732 = vmatprep.subr.mxu0 0.0
            %733 = vmatpush2.msra.mxu0 0.0
            %734 = vmatprep.subr.mxu0 0.0
            %735 = vmatpush2.msra.mxu0 0.0
            %736 = vmatprep.subr.mxu0 0.0
            %737 = vmatpush2.msra.mxu0 0.0
            %738 = vmatprep.subr.mxu0 0.0
            %739 = vmatpush2.msra.mxu0 0.0
            %740 = vmatprep.subr.mxu0 0.0
            %741 = vmatpush2.msra.mxu0 0.0
            %742 = vmatprep.subr.mxu0 0.0
            %743 = vmatpush2.msra.mxu0 0.0
            %744 = vmatprep.subr.mxu0 0.0
            %745 = vmatpush2.msra.mxu0 0.0
            %746 = vmatprep.subr.mxu0 0.0
            %747 = vmatpush2.msra.mxu0 0.0
            %748 = vmatprep.subr.mxu0 0.0
            %749 = vmatpush2.msra.mxu0 0.0
            %750 = vmatprep.subr.mxu0 0.0
            %751 = vmatpush2.msra.mxu0 0.0
            %752 = vmatprep.subr.mxu0 0.0
            %753 = vmatpush2.msra.mxu0 0.0
            %754 = vmatprep.subr.mxu0 0.0
            %755 = vmatpush2.msra.mxu0 0.0
            %756 = vmatprep.subr.mxu0 0.0
            %757 = vmatpush2.msra.mxu0 0.0
            %758 = vmatprep.subr.mxu0 0.0
            %759 = vmatpush2.msra.mxu0 0.0
            %760 = vmatprep.mubr.f32.mxu0 0.0
            %761 = vmatmul.mubr.f32.gmra.mxu0 1.0
            %v762 = vpop.f32.mrf.mxu0
            %v763 = vadd.f32 0.0, %v762
            %v764 = vpop.f32.mrf.mxu0
            %765 = vdwg.mxu0
            %v766 = vadd.f32 %v641, %v763
          $region96: #{tpu_custom_call.1} parent=83 // loop_footer
            %s640 = sadd.s32 1, %s636
          $region97: #{tpu_custom_call.1} parent=83 // loop_footer_branch
            %635 = sbr.rel target = $region93
          $region98: #{tpu_custom_call.1} parent=83 // loop_exit
            _
          %767 = vmatprep.subr.mxu0 0.0
          %768 = vmatpush1.msra.mxu0 %v563
          %769 = vmatprep.subr.mxu0 0.0
          %770 = vmatpush1.msra.mxu0 %v562
          %771 = vmatprep.subr.mxu0 0.0
          %772 = vmatpush1.msra.mxu0 %v561
          %773 = vmatprep.subr.mxu0 0.0
          %774 = vmatpush1.msra.mxu0 %v560
          %775 = vmatprep.subr.mxu0 0.0
          %776 = vmatpush1.msra.mxu0 %v559
          %777 = vmatprep.subr.mxu0 0.0
          %778 = vmatpush1.msra.mxu0 %v558
          %779 = vmatprep.subr.mxu0 0.0
          %780 = vmatpush1.msra.mxu0 %v557
          %781 = vmatprep.subr.mxu0 0.0
          %782 = vmatpush1.msra.mxu0 %v556
          %783 = vmatprep.subr.mxu0 0.0
          %784 = vmatpush1.msra.mxu0 %v555
          %785 = vmatprep.subr.mxu0 0.0
          %786 = vmatpush1.msra.mxu0 %v554
          %787 = vmatprep.subr.mxu0 0.0
          %788 = vmatpush1.msra.mxu0 %v553
          %789 = vmatprep.subr.mxu0 0.0
          %790 = vmatpush1.msra.mxu0 %v552
          %791 = vmatprep.subr.mxu0 0.0
          %792 = vmatpush1.msra.mxu0 %v551
          %793 = vmatprep.subr.mxu0 0.0
          %794 = vmatpush1.msra.mxu0 %v550
          %795 = vmatprep.subr.mxu0 0.0
          %796 = vmatpush1.msra.mxu0 %v549
          %797 = vmatprep.subr.mxu0 0.0
          %798 = vmatpush1.msra.mxu0 %v548
          %799 = vmatprep.subr.mxu0 0.0
          %800 = vmatpush2.msra.mxu0 0.0
          %801 = vmatprep.subr.mxu0 0.0
          %802 = vmatpush2.msra.mxu0 0.0
          %803 = vmatprep.subr.mxu0 0.0
          %804 = vmatpush2.msra.mxu0 0.0
          %805 = vmatprep.subr.mxu0 0.0
          %806 = vmatpush2.msra.mxu0 0.0
          %807 = vmatprep.subr.mxu0 0.0
          %808 = vmatpush2.msra.mxu0 0.0
          %809 = vmatprep.subr.mxu0 0.0
          %810 = vmatpush2.msra.mxu0 0.0
          %811 = vmatprep.subr.mxu0 0.0
          %812 = vmatpush2.msra.mxu0 0.0
          %813 = vmatprep.subr.mxu0 0.0
          %814 = vmatpush2.msra.mxu0 0.0
          %815 = vmatprep.subr.mxu0 0.0
          %816 = vmatpush2.msra.mxu0 0.0
          %817 = vmatprep.subr.mxu0 0.0
          %818 = vmatpush2.msra.mxu0 0.0
          %819 = vmatprep.subr.mxu0 0.0
          %820 = vmatpush2.msra.mxu0 0.0
          %821 = vmatprep.subr.mxu0 0.0
          %822 = vmatpush2.msra.mxu0 0.0
          %823 = vmatprep.subr.mxu0 0.0
          %824 = vmatpush2.msra.mxu0 0.0
          %825 = vmatprep.subr.mxu0 0.0
          %826 = vmatpush2.msra.mxu0 0.0
          %827 = vmatprep.subr.mxu0 0.0
          %828 = vmatpush2.msra.mxu0 0.0
          %829 = vmatprep.subr.mxu0 0.0
          %830 = vmatpush2.msra.mxu0 0.0
          %831 = vmatprep.mubr.f32.mxu0 0.0
          %832 = vmatmul.mubr.f32.gmra.mxu0 %v641
          %v833 = vpop.f32.mrf.mxu0
          %v834 = vadd.f32 0.0, %v833
          %v835 = vpop.f32.mrf.mxu0
          %836 = vdwg.mxu0
          %v837 = vmul.f32 %v834, 0.0009765625
          %v838 = vadd.f32 %v837, 1e-05
          %v839 = vrsqrt.pop %v838
          %v840 = vld [vmem:[%s2] sm:$0x1]
          %v841 = vmul.f32 %v839, %v840
          %v842 = vld [vmem:[%s3] sm:$0x1]
          %v843 = vmul.f32 %v634, %v841
          %v844 = vsub.f32 %v842, %v843
          %845 = vst [vmem:[#allocation4] sm:$0x1] %v841
          %846 = vst [vmem:[#allocation5] sm:$0x1] %v844
          %v847 = vld [vmem:[%s7] sm:$0x1]
          loop: start=0, step=1, limit=2
          $region99: #{tpu_custom_call.1} parent=83 // loop_pre_header
            _
          $region100: #{tpu_custom_call.1} parent=83 // loop_header
            %s849 = sphi 0, %s853
            %p850 = scmp.ge.s32.totalorder %s849, 2
          $region101: #{tpu_custom_call.1} parent=83 // loop_header_branch
            %852 = sbr.rel (%p850) target = $region105
          $region102: #{tpu_custom_call.1} parent=83 // loop_body
            %s854 = smul.u32 %s849, 128
            %s855 = scalar_lea.vmem [#allocation6], %s854
            %v856 = vld [vmem:[%s855] sm:$0xff]
            %v857 = vld [vmem:[%s855 + $0x8] sm:$0xff]
            %v858 = vld [vmem:[%s855 + $0x10] sm:$0xff]
            %v859 = vld [vmem:[%s855 + $0x18] sm:$0xff]
            %v860 = vld [vmem:[%s855 + $0x20] sm:$0xff]
            %v861 = vld [vmem:[%s855 + $0x28] sm:$0xff]
            %v862 = vld [vmem:[%s855 + $0x30] sm:$0xff]
            %v863 = vld [vmem:[%s855 + $0x38] sm:$0xff]
            %v864 = vld [vmem:[%s855 + $0x40] sm:$0xff]
            %v865 = vld [vmem:[%s855 + $0x48] sm:$0xff]
            %v866 = vld [vmem:[%s855 + $0x50] sm:$0xff]
            %v867 = vld [vmem:[%s855 + $0x58] sm:$0xff]
            %v868 = vld [vmem:[%s855 + $0x60] sm:$0xff]
            %v869 = vld [vmem:[%s855 + $0x68] sm:$0xff]
            %v870 = vld [vmem:[%s855 + $0x70] sm:$0xff]
            %v871 = vld [vmem:[%s855 + $0x78] sm:$0xff]
            %v872 = vlaneseq
            %v873 = vshrl.u32 %v872, 7
            %v874 = vsub.s32 0, %v873
            %v875 = vrot.slane %v841, %v874
            %v876 = vmul.f32 %v856, %v875
            %v877 = vmul.f32 %v857, %v875
            %v878 = vmul.f32 %v858, %v875
            %v879 = vmul.f32 %v859, %v875
            %v880 = vmul.f32 %v860, %v875
            %v881 = vmul.f32 %v861, %v875
            %v882 = vmul.f32 %v862, %v875
            %v883 = vmul.f32 %v863, %v875
            %v884 = vmul.f32 %v864, %v875
            %v885 = vmul.f32 %v865, %v875
            %v886 = vmul.f32 %v866, %v875
            %v887 = vmul.f32 %v867, %v875
            %v888 = vmul.f32 %v868, %v875
            %v889 = vmul.f32 %v869, %v875
            %v890 = vmul.f32 %v870, %v875
            %v891 = vmul.f32 %v871, %v875
            %v893 = vlaneseq
            %v894 = vshrl.u32 %v893, 7
            %v895 = vsub.s32 0, %v894
            %v896 = vrot.slane %v844, %v895
            %v898 = vadd.f32 %v876, %v896
            %v899 = vadd.f32 %v877, %v896
            %v900 = vadd.f32 %v878, %v896
            %v901 = vadd.f32 %v879, %v896
            %v902 = vadd.f32 %v880, %v896
            %v903 = vadd.f32 %v881, %v896
            %v904 = vadd.f32 %v882, %v896
            %v905 = vadd.f32 %v883, %v896
            %v906 = vadd.f32 %v884, %v896
            %v907 = vadd.f32 %v885, %v896
            %v908 = vadd.f32 %v886, %v896
            %v909 = vadd.f32 %v887, %v896
            %v910 = vadd.f32 %v888, %v896
            %v911 = vadd.f32 %v889, %v896
            %v912 = vadd.f32 %v890, %v896
            %v913 = vadd.f32 %v891, %v896
            %v914 = vpack.c.bf16 %v899, %v898
            %v915 = vpack.c.bf16 %v901, %v900
            %v916 = vpack.c.bf16 %v903, %v902
            %v917 = vpack.c.bf16 %v905, %v904
            %v918 = vpack.c.bf16 %v907, %v906
            %v919 = vpack.c.bf16 %v909, %v908
            %v920 = vpack.c.bf16 %v911, %v910
            %v921 = vpack.c.bf16 %v913, %v912
            %v922 = vld [vmem:[#allocation12] sm:$0xff]
            %v923 = vld [vmem:[#allocation12 + $0x8] sm:$0xff]
            %v924 = vld [vmem:[#allocation12 + $0x10] sm:$0xff]
            %v925 = vld [vmem:[#allocation12 + $0x18] sm:$0xff]
            %v926 = vld [vmem:[#allocation12 + $0x20] sm:$0xff]
            %v927 = vld [vmem:[#allocation12 + $0x28] sm:$0xff]
            %v928 = vld [vmem:[#allocation12 + $0x30] sm:$0xff]
            %v929 = vld [vmem:[#allocation12 + $0x38] sm:$0xff]
            %v930 = vld [vmem:[#allocation12 + $0x40] sm:$0xff]
            %v931 = vld [vmem:[#allocation12 + $0x48] sm:$0xff]
            %v932 = vld [vmem:[#allocation12 + $0x50] sm:$0xff]
            %v933 = vld [vmem:[#allocation12 + $0x58] sm:$0xff]
            %v934 = vld [vmem:[#allocation12 + $0x60] sm:$0xff]
            %v935 = vld [vmem:[#allocation12 + $0x68] sm:$0xff]
            %v936 = vld [vmem:[#allocation12 + $0x70] sm:$0xff]
            %v937 = vld [vmem:[#allocation12 + $0x78] sm:$0xff]
            %v954 = vunpack.c.l.b16 %v922
            %v955 = vunpack.c.h.b16 %v922
            %v956 = vunpack.c.l.b16 %v923
            %v957 = vunpack.c.h.b16 %v923
            %v958 = vunpack.c.l.b16 %v924
            %v959 = vunpack.c.h.b16 %v924
            %v960 = vunpack.c.l.b16 %v925
            %v961 = vunpack.c.h.b16 %v925
            %v962 = vunpack.c.l.b16 %v926
            %v963 = vunpack.c.h.b16 %v926
            %v964 = vunpack.c.l.b16 %v927
            %v965 = vunpack.c.h.b16 %v927
            %v966 = vunpack.c.l.b16 %v928
            %v967 = vunpack.c.h.b16 %v928
            %v968 = vunpack.c.l.b16 %v929
            %v969 = vunpack.c.h.b16 %v929
            %v970 = vunpack.c.l.b16 %v930
            %v971 = vunpack.c.h.b16 %v930
            %v972 = vunpack.c.l.b16 %v931
            %v973 = vunpack.c.h.b16 %v931
            %v974 = vunpack.c.l.b16 %v932
            %v975 = vunpack.c.h.b16 %v932
            %v976 = vunpack.c.l.b16 %v933
            %v977 = vunpack.c.h.b16 %v933
            %v978 = vunpack.c.l.b16 %v934
            %v979 = vunpack.c.h.b16 %v934
            %v980 = vunpack.c.l.b16 %v935
            %v981 = vunpack.c.h.b16 %v935
            %v982 = vunpack.c.l.b16 %v936
            %v983 = vunpack.c.h.b16 %v936
            %v984 = vunpack.c.l.b16 %v937
            %v985 = vunpack.c.h.b16 %v937
            %v986 = vpack.c.b16 %v956, %v954
            %v987 = vpack.c.b16 %v957, %v955
            %v988 = vpack.c.b16 %v960, %v958
            %v989 = vpack.c.b16 %v961, %v959
            %v990 = vpack.c.b16 %v964, %v962
            %v991 = vpack.c.b16 %v965, %v963
            %v992 = vpack.c.b16 %v968, %v966
            %v993 = vpack.c.b16 %v969, %v967
            %v994 = vpack.c.b16 %v972, %v970
            %v995 = vpack.c.b16 %v973, %v971
            %v996 = vpack.c.b16 %v976, %v974
            %v997 = vpack.c.b16 %v977, %v975
            %v998 = vpack.c.b16 %v980, %v978
            %v999 = vpack.c.b16 %v981, %v979
            %v1000 = vpack.c.b16 %v984, %v982
            %v1001 = vpack.c.b16 %v985, %v983
            %1018 = vmatprep.subr.bf16.mxu0 %v1001
            %1019 = vmatpush1.bf16.msra.mxu0 %v1000
            %1020 = vmatprep.subr.bf16.mxu0 %v999
            %1021 = vmatpush1.bf16.msra.mxu0 %v998
            %1022 = vmatprep.subr.bf16.mxu0 %v997
            %1023 = vmatpush1.bf16.msra.mxu0 %v996
            %1024 = vmatprep.subr.bf16.mxu0 %v995
            %1025 = vmatpush1.bf16.msra.mxu0 %v994
            %1026 = vmatprep.subr.bf16.mxu0 %v993
            %1027 = vmatpush1.bf16.msra.mxu0 %v992
            %1028 = vmatprep.subr.bf16.mxu0 %v991
            %1029 = vmatpush1.bf16.msra.mxu0 %v990
            %1030 = vmatprep.subr.bf16.mxu0 %v989
            %1031 = vmatpush1.bf16.msra.mxu0 %v988
            %1032 = vmatprep.subr.bf16.mxu0 %v987
            %1033 = vmatpush1.bf16.msra.mxu0 %v986
            %1034 = vmatprep.subr.bf16.mxu0 0
            %1035 = vmatpush2.bf16.msra.mxu0 0
            %1036 = vmatprep.subr.bf16.mxu0 0
            %1037 = vmatpush2.bf16.msra.mxu0 0
            %1038 = vmatprep.subr.bf16.mxu0 0
            %1039 = vmatpush2.bf16.msra.mxu0 0
            %1040 = vmatprep.subr.bf16.mxu0 0
            %1041 = vmatpush2.bf16.msra.mxu0 0
            %1042 = vmatprep.subr.bf16.mxu0 0
            %1043 = vmatpush2.bf16.msra.mxu0 0
            %1044 = vmatprep.subr.bf16.mxu0 0
            %1045 = vmatpush2.bf16.msra.mxu0 0
            %1046 = vmatprep.subr.bf16.mxu0 0
            %1047 = vmatpush2.bf16.msra.mxu0 0
            %1048 = vmatprep.subr.bf16.mxu0 0
            %1049 = vmatpush2.bf16.msra.mxu0 0
            %1050 = vmatprep.mubr.bf16.mxu0 0
            %1051 = vmatmul.mubr.bf16.gmra.mxu0 %v914
            %v1052 = vpop.f32.mrf.mxu0
            %v1053 = vadd.f32 0.0, %v1052
            %v1054 = vpop.f32.mrf.mxu0
            %v1055 = vadd.f32 0.0, %v1054
            %v1056 = vpop.f32.mrf.mxu0
            %v1057 = vadd.f32 0.0, %v1056
            %v1058 = vpop.f32.mrf.mxu0
            %v1059 = vadd.f32 0.0, %v1058
            %1060 = vmatprep.mubr.bf16.mxu0 0
            %1061 = vmatmul.mubr.bf16.gmra.mxu0 %v915
            %v1062 = vpop.f32.mrf.mxu0
            %v1063 = vadd.f32 0.0, %v1062
            %v1064 = vpop.f32.mrf.mxu0
            %v1065 = vadd.f32 0.0, %v1064
            %v1066 = vpop.f32.mrf.mxu0
            %v1067 = vadd.f32 0.0, %v1066
            %v1068 = vpop.f32.mrf.mxu0
            %v1069 = vadd.f32 0.0, %v1068
            %1070 = vmatprep.mubr.bf16.mxu0 0
            %1071 = vmatmul.mubr.bf16.gmra.mxu0 %v916
            %v1072 = vpop.f32.mrf.mxu0
            %v1073 = vadd.f32 0.0, %v1072
            %v1074 = vpop.f32.mrf.mxu0
            %v1075 = vadd.f32 0.0, %v1074
            %v1076 = vpop.f32.mrf.mxu0
            %v1077 = vadd.f32 0.0, %v1076
            %v1078 = vpop.f32.mrf.mxu0
            %v1079 = vadd.f32 0.0, %v1078
            %1080 = vmatprep.mubr.bf16.mxu0 0
            %1081 = vmatmul.mubr.bf16.gmra.mxu0 %v917
            %v1082 = vpop.f32.mrf.mxu0
            %v1083 = vadd.f32 0.0, %v1082
            %v1084 = vpop.f32.mrf.mxu0
            %v1085 = vadd.f32 0.0, %v1084
            %v1086 = vpop.f32.mrf.mxu0
            %v1087 = vadd.f32 0.0, %v1086
            %v1088 = vpop.f32.mrf.mxu0
            %v1089 = vadd.f32 0.0, %v1088
            %1090 = vmatprep.mubr.bf16.mxu0 0
            %1091 = vmatmul.mubr.bf16.gmra.mxu0 %v918
            %v1092 = vpop.f32.mrf.mxu0
            %v1093 = vadd.f32 0.0, %v1092
            %v1094 = vpop.f32.mrf.mxu0
            %v1095 = vadd.f32 0.0, %v1094
            %v1096 = vpop.f32.mrf.mxu0
            %v1097 = vadd.f32 0.0, %v1096
            %v1098 = vpop.f32.mrf.mxu0
            %v1099 = vadd.f32 0.0, %v1098
            %1100 = vmatprep.mubr.bf16.mxu0 0
            %1101 = vmatmul.mubr.bf16.gmra.mxu0 %v919
            %v1102 = vpop.f32.mrf.mxu0
            %v1103 = vadd.f32 0.0, %v1102
            %v1104 = vpop.f32.mrf.mxu0
            %v1105 = vadd.f32 0.0, %v1104
            %v1106 = vpop.f32.mrf.mxu0
            %v1107 = vadd.f32 0.0, %v1106
            %v1108 = vpop.f32.mrf.mxu0
            %v1109 = vadd.f32 0.0, %v1108
            %1110 = vmatprep.mubr.bf16.mxu0 0
            %1111 = vmatmul.mubr.bf16.gmra.mxu0 %v920
            %v1112 = vpop.f32.mrf.mxu0
            %v1113 = vadd.f32 0.0, %v1112
            %v1114 = vpop.f32.mrf.mxu0
            %v1115 = vadd.f32 0.0, %v1114
            %v1116 = vpop.f32.mrf.mxu0
            %v1117 = vadd.f32 0.0, %v1116
            %v1118 = vpop.f32.mrf.mxu0
            %v1119 = vadd.f32 0.0, %v1118
            %1120 = vmatprep.mubr.bf16.mxu0 0
            %1121 = vmatmul.mubr.bf16.gmra.mxu0 %v921
            %v1122 = vpop.f32.mrf.mxu0
            %v1123 = vadd.f32 0.0, %v1122
            %v1124 = vpop.f32.mrf.mxu0
            %v1125 = vadd.f32 0.0, %v1124
            %v1126 = vpop.f32.mrf.mxu0
            %v1127 = vadd.f32 0.0, %v1126
            %v1128 = vpop.f32.mrf.mxu0
            %v1129 = vadd.f32 0.0, %v1128
            %1130 = vdwg.mxu0
            %v1131 = vpack.c.bf16 %v1057, %v1053
            %v1132 = vpack.c.bf16 %v1067, %v1063
            %v1133 = vpack.c.bf16 %v1077, %v1073
            %v1134 = vpack.c.bf16 %v1087, %v1083
            %v1135 = vpack.c.bf16 %v1097, %v1093
            %v1136 = vpack.c.bf16 %v1107, %v1103
            %v1137 = vpack.c.bf16 %v1117, %v1113
            %v1138 = vpack.c.bf16 %v1127, %v1123
            %v1147 = vunpack.c.l.b16 %v1131
            %v1148 = vunpack.c.h.b16 %v1131
            %v1149 = vunpack.c.l.b16 %v1132
            %v1150 = vunpack.c.h.b16 %v1132
            %v1151 = vunpack.c.l.b16 %v1133
            %v1152 = vunpack.c.h.b16 %v1133
            %v1153 = vunpack.c.l.b16 %v1134
            %v1154 = vunpack.c.h.b16 %v1134
            %v1155 = vunpack.c.l.b16 %v1135
            %v1156 = vunpack.c.h.b16 %v1135
            %v1157 = vunpack.c.l.b16 %v1136
            %v1158 = vunpack.c.h.b16 %v1136
            %v1159 = vunpack.c.l.b16 %v1137
            %v1160 = vunpack.c.h.b16 %v1137
            %v1161 = vunpack.c.l.b16 %v1138
            %v1162 = vunpack.c.h.b16 %v1138
            %v1163 = vpack.c.b16 %v1147, %v1147
            %v1164 = vpack.c.b16 %v1148, %v1148
            %v1165 = vpack.c.b16 %v1149, %v1149
            %v1166 = vpack.c.b16 %v1150, %v1150
            %v1167 = vpack.c.b16 %v1151, %v1151
            %v1168 = vpack.c.b16 %v1152, %v1152
            %v1169 = vpack.c.b16 %v1153, %v1153
            %v1170 = vpack.c.b16 %v1154, %v1154
            %v1171 = vpack.c.b16 %v1155, %v1155
            %v1172 = vpack.c.b16 %v1156, %v1156
            %v1173 = vpack.c.b16 %v1157, %v1157
            %v1174 = vpack.c.b16 %v1158, %v1158
            %v1175 = vpack.c.b16 %v1159, %v1159
            %v1176 = vpack.c.b16 %v1160, %v1160
            %v1177 = vpack.c.b16 %v1161, %v1161
            %v1178 = vpack.c.b16 %v1162, %v1162
            %s1195 = sshra.s32 %s854, 3
            %s1196 = sand.u32 %s854, 7
            %s1197 = smul.addr %s1195, 4
            %s1198 = scalar_lea.vmem [#allocation2], %s1197
            %1199 = vst [vmem:[%s1198] sm:$0xf] %v1163
            %1200 = vst [vmem:[%s1198 + $0x4] sm:$0xf] %v1164
            %1201 = vst [vmem:[%s1198 + $0x8] sm:$0xf] %v1165
            %1202 = vst [vmem:[%s1198 + $0xc] sm:$0xf] %v1166
            %1203 = vst [vmem:[%s1198 + $0x10] sm:$0xf] %v1167
            %1204 = vst [vmem:[%s1198 + $0x14] sm:$0xf] %v1168
            %1205 = vst [vmem:[%s1198 + $0x18] sm:$0xf] %v1169
            %1206 = vst [vmem:[%s1198 + $0x1c] sm:$0xf] %v1170
            %1207 = vst [vmem:[%s1198 + $0x20] sm:$0xf] %v1171
            %1208 = vst [vmem:[%s1198 + $0x24] sm:$0xf] %v1172
            %1209 = vst [vmem:[%s1198 + $0x28] sm:$0xf] %v1173
            %1210 = vst [vmem:[%s1198 + $0x2c] sm:$0xf] %v1174
            %1211 = vst [vmem:[%s1198 + $0x30] sm:$0xf] %v1175
            %1212 = vst [vmem:[%s1198 + $0x34] sm:$0xf] %v1176
            %1213 = vst [vmem:[%s1198 + $0x38] sm:$0xf] %v1177
            %1214 = vst [vmem:[%s1198 + $0x3c] sm:$0xf] %v1178
            %v1216 = vlaneseq
            %v1217 = vshrl.u32 %v1216, 7
            %v1218 = vsub.s32 0, %v1217
            %v1219 = vrot.slane %v847, %v1218
            %v1221 = vadd.f32 %v1055, %v1219
            %v1222 = vadd.f32 %v1059, %v1219
            %v1223 = vadd.f32 %v1065, %v1219
            %v1224 = vadd.f32 %v1069, %v1219
            %v1225 = vadd.f32 %v1075, %v1219
            %v1226 = vadd.f32 %v1079, %v1219
            %v1227 = vadd.f32 %v1085, %v1219
            %v1228 = vadd.f32 %v1089, %v1219
            %v1229 = vadd.f32 %v1095, %v1219
            %v1230 = vadd.f32 %v1099, %v1219
            %v1231 = vadd.f32 %v1105, %v1219
            %v1232 = vadd.f32 %v1109, %v1219
            %v1233 = vadd.f32 %v1115, %v1219
            %v1234 = vadd.f32 %v1119, %v1219
            %v1235 = vadd.f32 %v1125, %v1219
            %v1236 = vadd.f32 %v1129, %v1219
            %v1237 = vpack.c.bf16 %v1222, %v1221
            %v1238 = vpack.c.bf16 %v1224, %v1223
            %v1239 = vpack.c.bf16 %v1226, %v1225
            %v1240 = vpack.c.bf16 %v1228, %v1227
            %v1241 = vpack.c.bf16 %v1230, %v1229
            %v1242 = vpack.c.bf16 %v1232, %v1231
            %v1243 = vpack.c.bf16 %v1234, %v1233
            %v1244 = vpack.c.bf16 %v1236, %v1235
            %v1253 = vunpack.c.l.b16 %v1237
            %v1254 = vunpack.c.h.b16 %v1237
            %v1255 = vunpack.c.l.b16 %v1238
            %v1256 = vunpack.c.h.b16 %v1238
            %v1257 = vunpack.c.l.b16 %v1239
            %v1258 = vunpack.c.h.b16 %v1239
            %v1259 = vunpack.c.l.b16 %v1240
            %v1260 = vunpack.c.h.b16 %v1240
            %v1261 = vunpack.c.l.b16 %v1241
            %v1262 = vunpack.c.h.b16 %v1241
            %v1263 = vunpack.c.l.b16 %v1242
            %v1264 = vunpack.c.h.b16 %v1242
            %v1265 = vunpack.c.l.b16 %v1243
            %v1266 = vunpack.c.h.b16 %v1243
            %v1267 = vunpack.c.l.b16 %v1244
            %v1268 = vunpack.c.h.b16 %v1244
            %v1269 = vpack.c.b16 %v1253, %v1253
            %v1270 = vpack.c.b16 %v1254, %v1254
            %v1271 = vpack.c.b16 %v1255, %v1255
            %v1272 = vpack.c.b16 %v1256, %v1256
            %v1273 = vpack.c.b16 %v1257, %v1257
            %v1274 = vpack.c.b16 %v1258, %v1258
            %v1275 = vpack.c.b16 %v1259, %v1259
            %v1276 = vpack.c.b16 %v1260, %v1260
            %v1277 = vpack.c.b16 %v1261, %v1261
            %v1278 = vpack.c.b16 %v1262, %v1262
            %v1279 = vpack.c.b16 %v1263, %v1263
            %v1280 = vpack.c.b16 %v1264, %v1264
            %v1281 = vpack.c.b16 %v1265, %v1265
            %v1282 = vpack.c.b16 %v1266, %v1266
            %v1283 = vpack.c.b16 %v1267, %v1267
            %v1284 = vpack.c.b16 %v1268, %v1268
            %s1301 = smul.addr %s1195, 4
            %s1302 = scalar_lea.vmem [#allocation3], %s1301
            %1303 = vst [vmem:[%s1302] sm:$0xf] %v1269
            %1304 = vst [vmem:[%s1302 + $0x4] sm:$0xf] %v1270
            %1305 = vst [vmem:[%s1302 + $0x8] sm:$0xf] %v1271
            %1306 = vst [vmem:[%s1302 + $0xc] sm:$0xf] %v1272
            %1307 = vst [vmem:[%s1302 + $0x10] sm:$0xf] %v1273
            %1308 = vst [vmem:[%s1302 + $0x14] sm:$0xf] %v1274
            %1309 = vst [vmem:[%s1302 + $0x18] sm:$0xf] %v1275
            %1310 = vst [vmem:[%s1302 + $0x1c] sm:$0xf] %v1276
            %1311 = vst [vmem:[%s1302 + $0x20] sm:$0xf] %v1277
            %1312 = vst [vmem:[%s1302 + $0x24] sm:$0xf] %v1278
            %1313 = vst [vmem:[%s1302 + $0x28] sm:$0xf] %v1279
            %1314 = vst [vmem:[%s1302 + $0x2c] sm:$0xf] %v1280
            %1315 = vst [vmem:[%s1302 + $0x30] sm:$0xf] %v1281
            %1316 = vst [vmem:[%s1302 + $0x34] sm:$0xf] %v1282
            %1317 = vst [vmem:[%s1302 + $0x38] sm:$0xf] %v1283
            %1318 = vst [vmem:[%s1302 + $0x3c] sm:$0xf] %v1284
          $region103: #{tpu_custom_call.1} parent=83 // loop_footer
            %s853 = sadd.s32 1, %s849
          $region104: #{tpu_custom_call.1} parent=83 // loop_footer_branch
            %848 = sbr.rel target = $region100
          $region105: #{tpu_custom_call.1} parent=83 // loop_exit
            _
        $region84: #{tpu_custom_call.1} parent=59 // pred_fallthru
          _
        %s1319 = smul.u32 %s33, 2
        %s1320 = sadd.s32 %s1319, %s34
        %s1321 = smul.u32 %s1320, 128
        %s1322 = scalar_lea.vmem [#allocation6], %s1321
        %v1323 = vld [vmem:[%s1322] sm:$0xff]
        %v1324 = vld [vmem:[%s1322 + $0x8] sm:$0xff]
        %v1325 = vld [vmem:[%s1322 + $0x10] sm:$0xff]
        %v1326 = vld [vmem:[%s1322 + $0x18] sm:$0xff]
        %v1327 = vld [vmem:[%s1322 + $0x20] sm:$0xff]
        %v1328 = vld [vmem:[%s1322 + $0x28] sm:$0xff]
        %v1329 = vld [vmem:[%s1322 + $0x30] sm:$0xff]
        %v1330 = vld [vmem:[%s1322 + $0x38] sm:$0xff]
        %v1331 = vld [vmem:[%s1322 + $0x40] sm:$0xff]
        %v1332 = vld [vmem:[%s1322 + $0x48] sm:$0xff]
        %v1333 = vld [vmem:[%s1322 + $0x50] sm:$0xff]
        %v1334 = vld [vmem:[%s1322 + $0x58] sm:$0xff]
        %v1335 = vld [vmem:[%s1322 + $0x60] sm:$0xff]
        %v1336 = vld [vmem:[%s1322 + $0x68] sm:$0xff]
        %v1337 = vld [vmem:[%s1322 + $0x70] sm:$0xff]
        %v1338 = vld [vmem:[%s1322 + $0x78] sm:$0xff]
        %v1339 = vld [vmem:[#allocation4] sm:$0x1]
        %v1341 = vlaneseq
        %v1342 = vshrl.u32 %v1341, 7
        %v1343 = vsub.s32 0, %v1342
        %v1344 = vrot.slane %v1339, %v1343
        %v1346 = vmul.f32 %v1323, %v1344
        %v1347 = vmul.f32 %v1324, %v1344
        %v1348 = vmul.f32 %v1325, %v1344
        %v1349 = vmul.f32 %v1326, %v1344
        %v1350 = vmul.f32 %v1327, %v1344
        %v1351 = vmul.f32 %v1328, %v1344
        %v1352 = vmul.f32 %v1329, %v1344
        %v1353 = vmul.f32 %v1330, %v1344
        %v1354 = vmul.f32 %v1331, %v1344
        %v1355 = vmul.f32 %v1332, %v1344
        %v1356 = vmul.f32 %v1333, %v1344
        %v1357 = vmul.f32 %v1334, %v1344
        %v1358 = vmul.f32 %v1335, %v1344
        %v1359 = vmul.f32 %v1336, %v1344
        %v1360 = vmul.f32 %v1337, %v1344
        %v1361 = vmul.f32 %v1338, %v1344
        %v1362 = vld [vmem:[#allocation5] sm:$0x1]
        %v1364 = vlaneseq
        %v1365 = vshrl.u32 %v1364, 7
        %v1366 = vsub.s32 0, %v1365
        %v1367 = vrot.slane %v1362, %v1366
        %v1369 = vadd.f32 %v1346, %v1367
        %v1370 = vadd.f32 %v1347, %v1367
        %v1371 = vadd.f32 %v1348, %v1367
        %v1372 = vadd.f32 %v1349, %v1367
        %v1373 = vadd.f32 %v1350, %v1367
        %v1374 = vadd.f32 %v1351, %v1367
        %v1375 = vadd.f32 %v1352, %v1367
        %v1376 = vadd.f32 %v1353, %v1367
        %v1377 = vadd.f32 %v1354, %v1367
        %v1378 = vadd.f32 %v1355, %v1367
        %v1379 = vadd.f32 %v1356, %v1367
        %v1380 = vadd.f32 %v1357, %v1367
        %v1381 = vadd.f32 %v1358, %v1367
        %v1382 = vadd.f32 %v1359, %v1367
        %v1383 = vadd.f32 %v1360, %v1367
        %v1384 = vadd.f32 %v1361, %v1367
        %v1385 = vpack.c.bf16 %v1370, %v1369
        %v1386 = vpack.c.bf16 %v1372, %v1371
        %v1387 = vpack.c.bf16 %v1374, %v1373
        %v1388 = vpack.c.bf16 %v1376, %v1375
        %v1389 = vpack.c.bf16 %v1378, %v1377
        %v1390 = vpack.c.bf16 %v1380, %v1379
        %v1391 = vpack.c.bf16 %v1382, %v1381
        %v1392 = vpack.c.bf16 %v1384, %v1383
        %v1393 = vld [vmem:[#allocation11] sm:$0xf]
        %v1394 = vld [vmem:[#allocation11 + $0x4] sm:$0xf]
        %v1395 = vld [vmem:[#allocation11 + $0x8] sm:$0xf]
        %v1396 = vld [vmem:[#allocation11 + $0xc] sm:$0xf]
        %v1397 = vld [vmem:[#allocation11 + $0x10] sm:$0xf]
        %v1398 = vld [vmem:[#allocation11 + $0x14] sm:$0xf]
        %v1399 = vld [vmem:[#allocation11 + $0x18] sm:$0xf]
        %v1400 = vld [vmem:[#allocation11 + $0x1c] sm:$0xf]
        %v1401 = vld [vmem:[#allocation11 + $0x20] sm:$0xf]
        %v1402 = vld [vmem:[#allocation11 + $0x24] sm:$0xf]
        %v1403 = vld [vmem:[#allocation11 + $0x28] sm:$0xf]
        %v1404 = vld [vmem:[#allocation11 + $0x2c] sm:$0xf]
        %v1405 = vld [vmem:[#allocation11 + $0x30] sm:$0xf]
        %v1406 = vld [vmem:[#allocation11 + $0x34] sm:$0xf]
        %v1407 = vld [vmem:[#allocation11 + $0x38] sm:$0xf]
        %v1408 = vld [vmem:[#allocation11 + $0x3c] sm:$0xf]
        %v1409 = vld [vmem:[%s5] sm:$0x1]
        %v1411 = vlaneseq
        %v1412 = vshrl.u32 %v1411, 7
        %v1413 = vsub.s32 0, %v1412
        %v1414 = vrot.slane %v1409, %v1413
        %v1432 = vunpack.c.l.b16 %v1393
        %v1433 = vunpack.c.l.b16 %v1394
        %v1434 = vunpack.c.l.b16 %v1395
        %v1435 = vunpack.c.l.b16 %v1396
        %v1436 = vunpack.c.l.b16 %v1397
        %v1437 = vunpack.c.l.b16 %v1398
        %v1438 = vunpack.c.l.b16 %v1399
        %v1439 = vunpack.c.l.b16 %v1400
        %v1440 = vunpack.c.l.b16 %v1401
        %v1441 = vunpack.c.l.b16 %v1402
        %v1442 = vunpack.c.l.b16 %v1403
        %v1443 = vunpack.c.l.b16 %v1404
        %v1444 = vunpack.c.l.b16 %v1405
        %v1445 = vunpack.c.l.b16 %v1406
        %v1446 = vunpack.c.l.b16 %v1407
        %v1447 = vunpack.c.l.b16 %v1408
        %v1448 = vpack.c.b16 %v1433, %v1432
        %v1449 = vpack.c.b16 %v1435, %v1434
        %v1450 = vpack.c.b16 %v1437, %v1436
        %v1451 = vpack.c.b16 %v1439, %v1438
        %v1452 = vpack.c.b16 %v1441, %v1440
        %v1453 = vpack.c.b16 %v1443, %v1442
        %v1454 = vpack.c.b16 %v1445, %v1444
        %v1455 = vpack.c.b16 %v1447, %v1446
        %1464 = vmatprep.subr.bf16.mxu0 0
        %1465 = vmatpush1.bf16.msra.mxu0 %v1455
        %1466 = vmatprep.subr.bf16.mxu0 0
        %1467 = vmatpush1.bf16.msra.mxu0 %v1454
        %1468 = vmatprep.subr.bf16.mxu0 0
        %1469 = vmatpush1.bf16.msra.mxu0 %v1453
        %1470 = vmatprep.subr.bf16.mxu0 0
        %1471 = vmatpush1.bf16.msra.mxu0 %v1452
        %1472 = vmatprep.subr.bf16.mxu0 0
        %1473 = vmatpush1.bf16.msra.mxu0 %v1451
        %1474 = vmatprep.subr.bf16.mxu0 0
        %1475 = vmatpush1.bf16.msra.mxu0 %v1450
        %1476 = vmatprep.subr.bf16.mxu0 0
        %1477 = vmatpush1.bf16.msra.mxu0 %v1449
        %1478 = vmatprep.subr.bf16.mxu0 0
        %1479 = vmatpush1.bf16.msra.mxu0 %v1448
        %1480 = vmatprep.subr.bf16.mxu0 0
        %1481 = vmatpush2.bf16.msra.mxu0 0
        %1482 = vmatprep.subr.bf16.mxu0 0
        %1483 = vmatpush2.bf16.msra.mxu0 0
        %1484 = vmatprep.subr.bf16.mxu0 0
        %1485 = vmatpush2.bf16.msra.mxu0 0
        %1486 = vmatprep.subr.bf16.mxu0 0
        %1487 = vmatpush2.bf16.msra.mxu0 0
        %1488 = vmatprep.subr.bf16.mxu0 0
        %1489 = vmatpush2.bf16.msra.mxu0 0
        %1490 = vmatprep.subr.bf16.mxu0 0
        %1491 = vmatpush2.bf16.msra.mxu0 0
        %1492 = vmatprep.subr.bf16.mxu0 0
        %1493 = vmatpush2.bf16.msra.mxu0 0
        %1494 = vmatprep.subr.bf16.mxu0 0
        %1495 = vmatpush2.bf16.msra.mxu0 0
        %1496 = vmatprep.mubr.bf16.mxu0 0
        %1497 = vmatmul.mubr.bf16.gmra.mxu0 %v1385
        %v1498 = vpop.f32.mrf.mxu0
        %v1499 = vadd.f32 %v1414, %v1498
        %v1500 = vpop.f32.mrf.mxu0
        %v1501 = vpop.f32.mrf.mxu0
        %v1502 = vadd.f32 %v1414, %v1501
        %v1503 = vpop.f32.mrf.mxu0
        %1504 = vmatprep.mubr.bf16.mxu0 0
        %1505 = vmatmul.mubr.bf16.gmra.mxu0 %v1386
        %v1506 = vpop.f32.mrf.mxu0
        %v1507 = vadd.f32 %v1414, %v1506
        %v1508 = vpop.f32.mrf.mxu0
        %v1509 = vpop.f32.mrf.mxu0
        %v1510 = vadd.f32 %v1414, %v1509
        %v1511 = vpop.f32.mrf.mxu0
        %1512 = vmatprep.mubr.bf16.mxu0 0
        %1513 = vmatmul.mubr.bf16.gmra.mxu0 %v1387
        %v1514 = vpop.f32.mrf.mxu0
        %v1515 = vadd.f32 %v1414, %v1514
        %v1516 = vpop.f32.mrf.mxu0
        %v1517 = vpop.f32.mrf.mxu0
        %v1518 = vadd.f32 %v1414, %v1517
        %v1519 = vpop.f32.mrf.mxu0
        %1520 = vmatprep.mubr.bf16.mxu0 0
        %1521 = vmatmul.mubr.bf16.gmra.mxu0 %v1388
        %v1522 = vpop.f32.mrf.mxu0
        %v1523 = vadd.f32 %v1414, %v1522
        %v1524 = vpop.f32.mrf.mxu0
        %v1525 = vpop.f32.mrf.mxu0
        %v1526 = vadd.f32 %v1414, %v1525
        %v1527 = vpop.f32.mrf.mxu0
        %1528 = vmatprep.mubr.bf16.mxu0 0
        %1529 = vmatmul.mubr.bf16.gmra.mxu0 %v1389
        %v1530 = vpop.f32.mrf.mxu0
        %v1531 = vadd.f32 %v1414, %v1530
        %v1532 = vpop.f32.mrf.mxu0
        %v1533 = vpop.f32.mrf.mxu0
        %v1534 = vadd.f32 %v1414, %v1533
        %v1535 = vpop.f32.mrf.mxu0
        %1536 = vmatprep.mubr.bf16.mxu0 0
        %1537 = vmatmul.mubr.bf16.gmra.mxu0 %v1390
        %v1538 = vpop.f32.mrf.mxu0
        %v1539 = vadd.f32 %v1414, %v1538
        %v1540 = vpop.f32.mrf.mxu0
        %v1541 = vpop.f32.mrf.mxu0
        %v1542 = vadd.f32 %v1414, %v1541
        %v1543 = vpop.f32.mrf.mxu0
        %1544 = vmatprep.mubr.bf16.mxu0 0
        %1545 = vmatmul.mubr.bf16.gmra.mxu0 %v1391
        %v1546 = vpop.f32.mrf.mxu0
        %v1547 = vadd.f32 %v1414, %v1546
        %v1548 = vpop.f32.mrf.mxu0
        %v1549 = vpop.f32.mrf.mxu0
        %v1550 = vadd.f32 %v1414, %v1549
        %v1551 = vpop.f32.mrf.mxu0
        %1552 = vmatprep.mubr.bf16.mxu0 0
        %1553 = vmatmul.mubr.bf16.gmra.mxu0 %v1392
        %v1554 = vpop.f32.mrf.mxu0
        %v1555 = vadd.f32 %v1414, %v1554
        %v1556 = vpop.f32.mrf.mxu0
        %v1557 = vpop.f32.mrf.mxu0
        %v1558 = vadd.f32 %v1414, %v1557
        %v1559 = vpop.f32.mrf.mxu0
        %1560 = vdwg.mxu0
        %v1561 = vpack.c.bf16 %v1502, %v1499
        %v1562 = vpack.c.bf16 %v1510, %v1507
        %v1563 = vpack.c.bf16 %v1518, %v1515
        %v1564 = vpack.c.bf16 %v1526, %v1523
        %v1565 = vpack.c.bf16 %v1534, %v1531
        %v1566 = vpack.c.bf16 %v1542, %v1539
        %v1567 = vpack.c.bf16 %v1550, %v1547
        %v1568 = vpack.c.bf16 %v1558, %v1555
        %v1569 = vld [vmem:[#allocation2] sm:$0xf]
        %v1570 = vld [vmem:[#allocation2 + $0x4] sm:$0xf]
        %v1571 = vld [vmem:[#allocation2 + $0x8] sm:$0xf]
        %v1572 = vld [vmem:[#allocation2 + $0xc] sm:$0xf]
        %v1573 = vld [vmem:[#allocation2 + $0x10] sm:$0xf]
        %v1574 = vld [vmem:[#allocation2 + $0x14] sm:$0xf]
        %v1575 = vld [vmem:[#allocation2 + $0x18] sm:$0xf]
        %v1576 = vld [vmem:[#allocation2 + $0x1c] sm:$0xf]
        %v1577 = vld [vmem:[#allocation2 + $0x20] sm:$0xf]
        %v1578 = vld [vmem:[#allocation2 + $0x24] sm:$0xf]
        %v1579 = vld [vmem:[#allocation2 + $0x28] sm:$0xf]
        %v1580 = vld [vmem:[#allocation2 + $0x2c] sm:$0xf]
        %v1581 = vld [vmem:[#allocation2 + $0x30] sm:$0xf]
        %v1582 = vld [vmem:[#allocation2 + $0x34] sm:$0xf]
        %v1583 = vld [vmem:[#allocation2 + $0x38] sm:$0xf]
        %v1584 = vld [vmem:[#allocation2 + $0x3c] sm:$0xf]
        %v1585 = vld [vmem:[#allocation2 + $0x40] sm:$0xf]
        %v1586 = vld [vmem:[#allocation2 + $0x44] sm:$0xf]
        %v1587 = vld [vmem:[#allocation2 + $0x48] sm:$0xf]
        %v1588 = vld [vmem:[#allocation2 + $0x4c] sm:$0xf]
        %v1589 = vld [vmem:[#allocation2 + $0x50] sm:$0xf]
        %v1590 = vld [vmem:[#allocation2 + $0x54] sm:$0xf]
        %v1591 = vld [vmem:[#allocation2 + $0x58] sm:$0xf]
        %v1592 = vld [vmem:[#allocation2 + $0x5c] sm:$0xf]
        %v1593 = vld [vmem:[#allocation2 + $0x60] sm:$0xf]
        %v1594 = vld [vmem:[#allocation2 + $0x64] sm:$0xf]
        %v1595 = vld [vmem:[#allocation2 + $0x68] sm:$0xf]
        %v1596 = vld [vmem:[#allocation2 + $0x6c] sm:$0xf]
        %v1597 = vld [vmem:[#allocation2 + $0x70] sm:$0xf]
        %v1598 = vld [vmem:[#allocation2 + $0x74] sm:$0xf]
        %v1599 = vld [vmem:[#allocation2 + $0x78] sm:$0xf]
        %v1600 = vld [vmem:[#allocation2 + $0x7c] sm:$0xf]
        %v1633 = vunpack.c.l.b16 %v1569
        %v1634 = vunpack.c.l.b16 %v1570
        %v1635 = vunpack.c.l.b16 %v1571
        %v1636 = vunpack.c.l.b16 %v1572
        %v1637 = vunpack.c.l.b16 %v1573
        %v1638 = vunpack.c.l.b16 %v1574
        %v1639 = vunpack.c.l.b16 %v1575
        %v1640 = vunpack.c.l.b16 %v1576
        %v1641 = vunpack.c.l.b16 %v1577
        %v1642 = vunpack.c.l.b16 %v1578
        %v1643 = vunpack.c.l.b16 %v1579
        %v1644 = vunpack.c.l.b16 %v1580
        %v1645 = vunpack.c.l.b16 %v1581
        %v1646 = vunpack.c.l.b16 %v1582
        %v1647 = vunpack.c.l.b16 %v1583
        %v1648 = vunpack.c.l.b16 %v1584
        %v1649 = vunpack.c.l.b16 %v1585
        %v1650 = vunpack.c.l.b16 %v1586
        %v1651 = vunpack.c.l.b16 %v1587
        %v1652 = vunpack.c.l.b16 %v1588
        %v1653 = vunpack.c.l.b16 %v1589
        %v1654 = vunpack.c.l.b16 %v1590
        %v1655 = vunpack.c.l.b16 %v1591
        %v1656 = vunpack.c.l.b16 %v1592
        %v1657 = vunpack.c.l.b16 %v1593
        %v1658 = vunpack.c.l.b16 %v1594
        %v1659 = vunpack.c.l.b16 %v1595
        %v1660 = vunpack.c.l.b16 %v1596
        %v1661 = vunpack.c.l.b16 %v1597
        %v1662 = vunpack.c.l.b16 %v1598
        %v1663 = vunpack.c.l.b16 %v1599
        %v1664 = vunpack.c.l.b16 %v1600
        %v1665 = vpack.c.b16 %v1634, %v1633
        %v1666 = vpack.c.b16 %v1636, %v1635
        %v1667 = vpack.c.b16 %v1638, %v1637
        %v1668 = vpack.c.b16 %v1640, %v1639
        %v1669 = vpack.c.b16 %v1642, %v1641
        %v1670 = vpack.c.b16 %v1644, %v1643
        %v1671 = vpack.c.b16 %v1646, %v1645
        %v1672 = vpack.c.b16 %v1648, %v1647
        %v1673 = vpack.c.b16 %v1650, %v1649
        %v1674 = vpack.c.b16 %v1652, %v1651
        %v1675 = vpack.c.b16 %v1654, %v1653
        %v1676 = vpack.c.b16 %v1656, %v1655
        %v1677 = vpack.c.b16 %v1658, %v1657
        %v1678 = vpack.c.b16 %v1660, %v1659
        %v1679 = vpack.c.b16 %v1662, %v1661
        %v1680 = vpack.c.b16 %v1664, %v1663
        %1697 = vmatprep.subr.bf16.mxu0 0
        %1698 = vmatpush1.bf16.xpose.msra.mxu0 %v1672
        %1699 = vmatprep.subr.bf16.mxu0 0
        %1700 = vmatpush1.bf16.xpose.msra.mxu0 %v1671
        %1701 = vmatprep.subr.bf16.mxu0 0
        %1702 = vmatpush1.bf16.xpose.msra.mxu0 %v1670
        %1703 = vmatprep.subr.bf16.mxu0 0
        %1704 = vmatpush1.bf16.xpose.msra.mxu0 %v1669
        %1705 = vmatprep.subr.bf16.mxu0 0
        %1706 = vmatpush1.bf16.xpose.msra.mxu0 %v1668
        %1707 = vmatprep.subr.bf16.mxu0 0
        %1708 = vmatpush1.bf16.xpose.msra.mxu0 %v1667
        %1709 = vmatprep.subr.bf16.mxu0 0
        %1710 = vmatpush1.bf16.xpose.msra.mxu0 %v1666
        %1711 = vmatprep.subr.bf16.mxu0 0
        %1712 = vmatpush1.bf16.xpose.msra.mxu0 %v1665
        %1713 = vmatprep.subr.bf16.mxu0 0
        %1714 = vmatpush2.bf16.xpose.msra.mxu0 %v1680
        %1715 = vmatprep.subr.bf16.mxu0 0
        %1716 = vmatpush2.bf16.xpose.msra.mxu0 %v1679
        %1717 = vmatprep.subr.bf16.mxu0 0
        %1718 = vmatpush2.bf16.xpose.msra.mxu0 %v1678
        %1719 = vmatprep.subr.bf16.mxu0 0
        %1720 = vmatpush2.bf16.xpose.msra.mxu0 %v1677
        %1721 = vmatprep.subr.bf16.mxu0 0
        %1722 = vmatpush2.bf16.xpose.msra.mxu0 %v1676
        %1723 = vmatprep.subr.bf16.mxu0 0
        %1724 = vmatpush2.bf16.xpose.msra.mxu0 %v1675
        %1725 = vmatprep.subr.bf16.mxu0 0
        %1726 = vmatpush2.bf16.xpose.msra.mxu0 %v1674
        %1727 = vmatprep.subr.bf16.mxu0 0
        %1728 = vmatpush2.bf16.xpose.msra.mxu0 %v1673
        %1729 = vmatprep.mubr.bf16.mxu0 0
        %1730 = vmatmul.mubr.bf16.gmra.mxu0 %v1561
        %v1731 = vpop.f32.mrf.mxu0
        %v1732 = vadd.f32 0.0, %v1731
        %v1733 = vpop.f32.mrf.mxu0
        %v1734 = vadd.f32 0.0, %v1733
        %v1735 = vpop.f32.mrf.mxu0
        %v1736 = vadd.f32 0.0, %v1735
        %v1737 = vpop.f32.mrf.mxu0
        %v1738 = vadd.f32 0.0, %v1737
        %1739 = vmatprep.mubr.bf16.mxu0 0
        %1740 = vmatmul.mubr.bf16.gmra.mxu0 %v1562
        %v1741 = vpop.f32.mrf.mxu0
        %v1742 = vadd.f32 0.0, %v1741
        %v1743 = vpop.f32.mrf.mxu0
        %v1744 = vadd.f32 0.0, %v1743
        %v1745 = vpop.f32.mrf.mxu0
        %v1746 = vadd.f32 0.0, %v1745
        %v1747 = vpop.f32.mrf.mxu0
        %v1748 = vadd.f32 0.0, %v1747
        %1749 = vmatprep.mubr.bf16.mxu0 0
        %1750 = vmatmul.mubr.bf16.gmra.mxu0 %v1563
        %v1751 = vpop.f32.mrf.mxu0
        %v1752 = vadd.f32 0.0, %v1751
        %v1753 = vpop.f32.mrf.mxu0
        %v1754 = vadd.f32 0.0, %v1753
        %v1755 = vpop.f32.mrf.mxu0
        %v1756 = vadd.f32 0.0, %v1755
        %v1757 = vpop.f32.mrf.mxu0
        %v1758 = vadd.f32 0.0, %v1757
        %1759 = vmatprep.mubr.bf16.mxu0 0
        %1760 = vmatmul.mubr.bf16.gmra.mxu0 %v1564
        %v1761 = vpop.f32.mrf.mxu0
        %v1762 = vadd.f32 0.0, %v1761
        %v1763 = vpop.f32.mrf.mxu0
        %v1764 = vadd.f32 0.0, %v1763
        %v1765 = vpop.f32.mrf.mxu0
        %v1766 = vadd.f32 0.0, %v1765
        %v1767 = vpop.f32.mrf.mxu0
        %v1768 = vadd.f32 0.0, %v1767
        %1769 = vmatprep.mubr.bf16.mxu0 0
        %1770 = vmatmul.mubr.bf16.gmra.mxu0 %v1565
        %v1771 = vpop.f32.mrf.mxu0
        %v1772 = vadd.f32 0.0, %v1771
        %v1773 = vpop.f32.mrf.mxu0
        %v1774 = vadd.f32 0.0, %v1773
        %v1775 = vpop.f32.mrf.mxu0
        %v1776 = vadd.f32 0.0, %v1775
        %v1777 = vpop.f32.mrf.mxu0
        %v1778 = vadd.f32 0.0, %v1777
        %1779 = vmatprep.mubr.bf16.mxu0 0
        %1780 = vmatmul.mubr.bf16.gmra.mxu0 %v1566
        %v1781 = vpop.f32.mrf.mxu0
        %v1782 = vadd.f32 0.0, %v1781
        %v1783 = vpop.f32.mrf.mxu0
        %v1784 = vadd.f32 0.0, %v1783
        %v1785 = vpop.f32.mrf.mxu0
        %v1786 = vadd.f32 0.0, %v1785
        %v1787 = vpop.f32.mrf.mxu0
        %v1788 = vadd.f32 0.0, %v1787
        %1789 = vmatprep.mubr.bf16.mxu0 0
        %1790 = vmatmul.mubr.bf16.gmra.mxu0 %v1567
        %v1791 = vpop.f32.mrf.mxu0
        %v1792 = vadd.f32 0.0, %v1791
        %v1793 = vpop.f32.mrf.mxu0
        %v1794 = vadd.f32 0.0, %v1793
        %v1795 = vpop.f32.mrf.mxu0
        %v1796 = vadd.f32 0.0, %v1795
        %v1797 = vpop.f32.mrf.mxu0
        %v1798 = vadd.f32 0.0, %v1797
        %1799 = vmatprep.mubr.bf16.mxu0 0
        %1800 = vmatmul.mubr.bf16.gmra.mxu0 %v1568
        %v1801 = vpop.f32.mrf.mxu0
        %v1802 = vadd.f32 0.0, %v1801
        %v1803 = vpop.f32.mrf.mxu0
        %v1804 = vadd.f32 0.0, %v1803
        %v1805 = vpop.f32.mrf.mxu0
        %v1806 = vadd.f32 0.0, %v1805
        %v1807 = vpop.f32.mrf.mxu0
        %v1808 = vadd.f32 0.0, %v1807
        %1809 = vdwg.mxu0
        %v1810 = vmax.f32 %v1732, %v1734
        %1811 = vmax.xlane.f32.xlu0 %v1810
        %v1812 = vpop.xlane.xlu0 %1811
        %v1813 = vmax.f32 %v1736, %v1738
        %1814 = vmax.xlane.f32.xlu0 %v1813
        %v1815 = vpop.xlane.xlu0 %1814
        %v1816 = vmax.f32 %v1742, %v1744
        %1817 = vmax.xlane.f32.xlu0 %v1816
        %v1818 = vpop.xlane.xlu0 %1817
        %v1819 = vmax.f32 %v1746, %v1748
        %1820 = vmax.xlane.f32.xlu0 %v1819
        %v1821 = vpop.xlane.xlu0 %1820
        %v1822 = vmax.f32 %v1752, %v1754
        %1823 = vmax.xlane.f32.xlu0 %v1822
        %v1824 = vpop.xlane.xlu0 %1823
        %v1825 = vmax.f32 %v1756, %v1758
        %1826 = vmax.xlane.f32.xlu0 %v1825
        %v1827 = vpop.xlane.xlu0 %1826
        %v1828 = vmax.f32 %v1762, %v1764
        %1829 = vmax.xlane.f32.xlu0 %v1828
        %v1830 = vpop.xlane.xlu0 %1829
        %v1831 = vmax.f32 %v1766, %v1768
        %1832 = vmax.xlane.f32.xlu0 %v1831
        %v1833 = vpop.xlane.xlu0 %1832
        %v1834 = vmax.f32 %v1772, %v1774
        %1835 = vmax.xlane.f32.xlu0 %v1834
        %v1836 = vpop.xlane.xlu0 %1835
        %v1837 = vmax.f32 %v1776, %v1778
        %1838 = vmax.xlane.f32.xlu0 %v1837
        %v1839 = vpop.xlane.xlu0 %1838
        %v1840 = vmax.f32 %v1782, %v1784
        %1841 = vmax.xlane.f32.xlu0 %v1840
        %v1842 = vpop.xlane.xlu0 %1841
        %v1843 = vmax.f32 %v1786, %v1788
        %1844 = vmax.xlane.f32.xlu0 %v1843
        %v1845 = vpop.xlane.xlu0 %1844
        %v1846 = vmax.f32 %v1792, %v1794
        %1847 = vmax.xlane.f32.xlu0 %v1846
        %v1848 = vpop.xlane.xlu0 %1847
        %v1849 = vmax.f32 %v1796, %v1798
        %1850 = vmax.xlane.f32.xlu0 %v1849
        %v1851 = vpop.xlane.xlu0 %1850
        %v1852 = vmax.f32 %v1802, %v1804
        %1853 = vmax.xlane.f32.xlu0 %v1852
        %v1854 = vpop.xlane.xlu0 %1853
        %v1855 = vmax.f32 %v1806, %v1808
        %1856 = vmax.xlane.f32.xlu0 %v1855
        %v1857 = vpop.xlane.xlu0 %1856
        %v1858 = vsub.f32 %v1732, %v1812
        %v1859 = vsub.f32 %v1734, %v1812
        %v1860 = vsub.f32 %v1736, %v1815
        %v1861 = vsub.f32 %v1738, %v1815
        %v1862 = vsub.f32 %v1742, %v1818
        %v1863 = vsub.f32 %v1744, %v1818
        %v1864 = vsub.f32 %v1746, %v1821
        %v1865 = vsub.f32 %v1748, %v1821
        %v1866 = vsub.f32 %v1752, %v1824
        %v1867 = vsub.f32 %v1754, %v1824
        %v1868 = vsub.f32 %v1756, %v1827
        %v1869 = vsub.f32 %v1758, %v1827
        %v1870 = vsub.f32 %v1762, %v1830
        %v1871 = vsub.f32 %v1764, %v1830
        %v1872 = vsub.f32 %v1766, %v1833
        %v1873 = vsub.f32 %v1768, %v1833
        %v1874 = vsub.f32 %v1772, %v1836
        %v1875 = vsub.f32 %v1774, %v1836
        %v1876 = vsub.f32 %v1776, %v1839
        %v1877 = vsub.f32 %v1778, %v1839
        %v1878 = vsub.f32 %v1782, %v1842
        %v1879 = vsub.f32 %v1784, %v1842
        %v1880 = vsub.f32 %v1786, %v1845
        %v1881 = vsub.f32 %v1788, %v1845
        %v1882 = vsub.f32 %v1792, %v1848
        %v1883 = vsub.f32 %v1794, %v1848
        %v1884 = vsub.f32 %v1796, %v1851
        %v1885 = vsub.f32 %v1798, %v1851
        %v1886 = vsub.f32 %v1802, %v1854
        %v1887 = vsub.f32 %v1804, %v1854
        %v1888 = vsub.f32 %v1806, %v1857
        %v1889 = vsub.f32 %v1808, %v1857
        %v1890 = vpack.c.bf16 %v1860, %v1858
        %v1891 = vpack.c.bf16 %v1861, %v1859
        %v1892 = vpack.c.bf16 %v1864, %v1862
        %v1893 = vpack.c.bf16 %v1865, %v1863
        %v1894 = vpack.c.bf16 %v1868, %v1866
        %v1895 = vpack.c.bf16 %v1869, %v1867
        %v1896 = vpack.c.bf16 %v1872, %v1870
        %v1897 = vpack.c.bf16 %v1873, %v1871
        %v1898 = vpack.c.bf16 %v1876, %v1874
        %v1899 = vpack.c.bf16 %v1877, %v1875
        %v1900 = vpack.c.bf16 %v1880, %v1878
        %v1901 = vpack.c.bf16 %v1881, %v1879
        %v1902 = vpack.c.bf16 %v1884, %v1882
        %v1903 = vpack.c.bf16 %v1885, %v1883
        %v1904 = vpack.c.bf16 %v1888, %v1886
        %v1905 = vpack.c.bf16 %v1889, %v1887
        %v1907 = vmul.bf16 %v1890, 1069105081
        %v1908 = vpow.bf16.pop %v1907
        %v1910 = vmul.bf16 %v1891, 1069105081
        %v1911 = vpow.bf16.pop %v1910
        %v1913 = vmul.bf16 %v1892, 1069105081
        %v1914 = vpow.bf16.pop %v1913
        %v1916 = vmul.bf16 %v1893, 1069105081
        %v1917 = vpow.bf16.pop %v1916
        %v1919 = vmul.bf16 %v1894, 1069105081
        %v1920 = vpow.bf16.pop %v1919
        %v1922 = vmul.bf16 %v1895, 1069105081
        %v1923 = vpow.bf16.pop %v1922
        %v1925 = vmul.bf16 %v1896, 1069105081
        %v1926 = vpow.bf16.pop %v1925
        %v1928 = vmul.bf16 %v1897, 1069105081
        %v1929 = vpow.bf16.pop %v1928
        %v1931 = vmul.bf16 %v1898, 1069105081
        %v1932 = vpow.bf16.pop %v1931
        %v1934 = vmul.bf16 %v1899, 1069105081
        %v1935 = vpow.bf16.pop %v1934
        %v1937 = vmul.bf16 %v1900, 1069105081
        %v1938 = vpow.bf16.pop %v1937
        %v1940 = vmul.bf16 %v1901, 1069105081
        %v1941 = vpow.bf16.pop %v1940
        %v1943 = vmul.bf16 %v1902, 1069105081
        %v1944 = vpow.bf16.pop %v1943
        %v1946 = vmul.bf16 %v1903, 1069105081
        %v1947 = vpow.bf16.pop %v1946
        %v1949 = vmul.bf16 %v1904, 1069105081
        %v1950 = vpow.bf16.pop %v1949
        %v1952 = vmul.bf16 %v1905, 1069105081
        %v1953 = vpow.bf16.pop %v1952
        %v1954 = vunpack.c.l.bf16 %v1908
        %v1955 = vunpack.c.l.bf16 %v1911
        %v1956 = vunpack.c.h.bf16 %v1908
        %v1957 = vunpack.c.h.bf16 %v1911
        %v1958 = vunpack.c.l.bf16 %v1914
        %v1959 = vunpack.c.l.bf16 %v1917
        %v1960 = vunpack.c.h.bf16 %v1914
        %v1961 = vunpack.c.h.bf16 %v1917
        %v1962 = vunpack.c.l.bf16 %v1920
        %v1963 = vunpack.c.l.bf16 %v1923
        %v1964 = vunpack.c.h.bf16 %v1920
        %v1965 = vunpack.c.h.bf16 %v1923
        %v1966 = vunpack.c.l.bf16 %v1926
        %v1967 = vunpack.c.l.bf16 %v1929
        %v1968 = vunpack.c.h.bf16 %v1926
        %v1969 = vunpack.c.h.bf16 %v1929
        %v1970 = vunpack.c.l.bf16 %v1932
        %v1971 = vunpack.c.l.bf16 %v1935
        %v1972 = vunpack.c.h.bf16 %v1932
        %v1973 = vunpack.c.h.bf16 %v1935
        %v1974 = vunpack.c.l.bf16 %v1938
        %v1975 = vunpack.c.l.bf16 %v1941
        %v1976 = vunpack.c.h.bf16 %v1938
        %v1977 = vunpack.c.h.bf16 %v1941
        %v1978 = vunpack.c.l.bf16 %v1944
        %v1979 = vunpack.c.l.bf16 %v1947
        %v1980 = vunpack.c.h.bf16 %v1944
        %v1981 = vunpack.c.h.bf16 %v1947
        %v1982 = vunpack.c.l.bf16 %v1950
        %v1983 = vunpack.c.l.bf16 %v1953
        %v1984 = vunpack.c.h.bf16 %v1950
        %v1985 = vunpack.c.h.bf16 %v1953
        %v1986 = vadd.f32 %v1954, %v1955
        %1987 = vadd.xlane.f32.xlu0 %v1986
        %v1988 = vpop.xlane.xlu0 %1987
        %v1989 = vadd.f32 %v1956, %v1957
        %1990 = vadd.xlane.f32.xlu0 %v1989
        %v1991 = vpop.xlane.xlu0 %1990
        %v1992 = vadd.f32 %v1958, %v1959
        %1993 = vadd.xlane.f32.xlu0 %v1992
        %v1994 = vpop.xlane.xlu0 %1993
        %v1995 = vadd.f32 %v1960, %v1961
        %1996 = vadd.xlane.f32.xlu0 %v1995
        %v1997 = vpop.xlane.xlu0 %1996
        %v1998 = vadd.f32 %v1962, %v1963
        %1999 = vadd.xlane.f32.xlu0 %v1998
        %v2000 = vpop.xlane.xlu0 %1999
        %v2001 = vadd.f32 %v1964, %v1965
        %2002 = vadd.xlane.f32.xlu0 %v2001
        %v2003 = vpop.xlane.xlu0 %2002
        %v2004 = vadd.f32 %v1966, %v1967
        %2005 = vadd.xlane.f32.xlu0 %v2004
        %v2006 = vpop.xlane.xlu0 %2005
        %v2007 = vadd.f32 %v1968, %v1969
        %2008 = vadd.xlane.f32.xlu0 %v2007
        %v2009 = vpop.xlane.xlu0 %2008
        %v2010 = vadd.f32 %v1970, %v1971
        %2011 = vadd.xlane.f32.xlu0 %v2010
        %v2012 = vpop.xlane.xlu0 %2011
        %v2013 = vadd.f32 %v1972, %v1973
        %2014 = vadd.xlane.f32.xlu0 %v2013
        %v2015 = vpop.xlane.xlu0 %2014
        %v2016 = vadd.f32 %v1974, %v1975
        %2017 = vadd.xlane.f32.xlu0 %v2016
        %v2018 = vpop.xlane.xlu0 %2017
        %v2019 = vadd.f32 %v1976, %v1977
        %2020 = vadd.xlane.f32.xlu0 %v2019
        %v2021 = vpop.xlane.xlu0 %2020
        %v2022 = vadd.f32 %v1978, %v1979
        %2023 = vadd.xlane.f32.xlu0 %v2022
        %v2024 = vpop.xlane.xlu0 %2023
        %v2025 = vadd.f32 %v1980, %v1981
        %2026 = vadd.xlane.f32.xlu0 %v2025
        %v2027 = vpop.xlane.xlu0 %2026
        %v2028 = vadd.f32 %v1982, %v1983
        %2029 = vadd.xlane.f32.xlu0 %v2028
        %v2030 = vpop.xlane.xlu0 %2029
        %v2031 = vadd.f32 %v1984, %v1985
        %2032 = vadd.xlane.f32.xlu0 %v2031
        %v2033 = vpop.xlane.xlu0 %2032
        %v2034 = vld [vmem:[#allocation3] sm:$0xf]
        %v2035 = vld [vmem:[#allocation3 + $0x4] sm:$0xf]
        %v2036 = vld [vmem:[#allocation3 + $0x8] sm:$0xf]
        %v2037 = vld [vmem:[#allocation3 + $0xc] sm:$0xf]
        %v2038 = vld [vmem:[#allocation3 + $0x10] sm:$0xf]
        %v2039 = vld [vmem:[#allocation3 + $0x14] sm:$0xf]
        %v2040 = vld [vmem:[#allocation3 + $0x18] sm:$0xf]
        %v2041 = vld [vmem:[#allocation3 + $0x1c] sm:$0xf]
        %v2042 = vld [vmem:[#allocation3 + $0x20] sm:$0xf]
        %v2043 = vld [vmem:[#allocation3 + $0x24] sm:$0xf]
        %v2044 = vld [vmem:[#allocation3 + $0x28] sm:$0xf]
        %v2045 = vld [vmem:[#allocation3 + $0x2c] sm:$0xf]
        %v2046 = vld [vmem:[#allocation3 + $0x30] sm:$0xf]
        %v2047 = vld [vmem:[#allocation3 + $0x34] sm:$0xf]
        %v2048 = vld [vmem:[#allocation3 + $0x38] sm:$0xf]
        %v2049 = vld [vmem:[#allocation3 + $0x3c] sm:$0xf]
        %v2050 = vld [vmem:[#allocation3 + $0x40] sm:$0xf]
        %v2051 = vld [vmem:[#allocation3 + $0x44] sm:$0xf]
        %v2052 = vld [vmem:[#allocation3 + $0x48] sm:$0xf]
        %v2053 = vld [vmem:[#allocation3 + $0x4c] sm:$0xf]
        %v2054 = vld [vmem:[#allocation3 + $0x50] sm:$0xf]
        %v2055 = vld [vmem:[#allocation3 + $0x54] sm:$0xf]
        %v2056 = vld [vmem:[#allocation3 + $0x58] sm:$0xf]
        %v2057 = vld [vmem:[#allocation3 + $0x5c] sm:$0xf]
        %v2058 = vld [vmem:[#allocation3 + $0x60] sm:$0xf]
        %v2059 = vld [vmem:[#allocation3 + $0x64] sm:$0xf]
        %v2060 = vld [vmem:[#allocation3 + $0x68] sm:$0xf]
        %v2061 = vld [vmem:[#allocation3 + $0x6c] sm:$0xf]
        %v2062 = vld [vmem:[#allocation3 + $0x70] sm:$0xf]
        %v2063 = vld [vmem:[#allocation3 + $0x74] sm:$0xf]
        %v2064 = vld [vmem:[#allocation3 + $0x78] sm:$0xf]
        %v2065 = vld [vmem:[#allocation3 + $0x7c] sm:$0xf]
        %v2098 = vunpack.c.l.b16 %v2034
        %v2099 = vunpack.c.l.b16 %v2035
        %v2100 = vunpack.c.l.b16 %v2036
        %v2101 = vunpack.c.l.b16 %v2037
        %v2102 = vunpack.c.l.b16 %v2038
        %v2103 = vunpack.c.l.b16 %v2039
        %v2104 = vunpack.c.l.b16 %v2040
        %v2105 = vunpack.c.l.b16 %v2041
        %v2106 = vunpack.c.l.b16 %v2042
        %v2107 = vunpack.c.l.b16 %v2043
        %v2108 = vunpack.c.l.b16 %v2044
        %v2109 = vunpack.c.l.b16 %v2045
        %v2110 = vunpack.c.l.b16 %v2046
        %v2111 = vunpack.c.l.b16 %v2047
        %v2112 = vunpack.c.l.b16 %v2048
        %v2113 = vunpack.c.l.b16 %v2049
        %v2114 = vunpack.c.l.b16 %v2050
        %v2115 = vunpack.c.l.b16 %v2051
        %v2116 = vunpack.c.l.b16 %v2052
        %v2117 = vunpack.c.l.b16 %v2053
        %v2118 = vunpack.c.l.b16 %v2054
        %v2119 = vunpack.c.l.b16 %v2055
        %v2120 = vunpack.c.l.b16 %v2056
        %v2121 = vunpack.c.l.b16 %v2057
        %v2122 = vunpack.c.l.b16 %v2058
        %v2123 = vunpack.c.l.b16 %v2059
        %v2124 = vunpack.c.l.b16 %v2060
        %v2125 = vunpack.c.l.b16 %v2061
        %v2126 = vunpack.c.l.b16 %v2062
        %v2127 = vunpack.c.l.b16 %v2063
        %v2128 = vunpack.c.l.b16 %v2064
        %v2129 = vunpack.c.l.b16 %v2065
        %v2130 = vpack.c.b16 %v2099, %v2098
        %v2131 = vpack.c.b16 %v2101, %v2100
        %v2132 = vpack.c.b16 %v2103, %v2102
        %v2133 = vpack.c.b16 %v2105, %v2104
        %v2134 = vpack.c.b16 %v2107, %v2106
        %v2135 = vpack.c.b16 %v2109, %v2108
        %v2136 = vpack.c.b16 %v2111, %v2110
        %v2137 = vpack.c.b16 %v2113, %v2112
        %v2138 = vpack.c.b16 %v2115, %v2114
        %v2139 = vpack.c.b16 %v2117, %v2116
        %v2140 = vpack.c.b16 %v2119, %v2118
        %v2141 = vpack.c.b16 %v2121, %v2120
        %v2142 = vpack.c.b16 %v2123, %v2122
        %v2143 = vpack.c.b16 %v2125, %v2124
        %v2144 = vpack.c.b16 %v2127, %v2126
        %v2145 = vpack.c.b16 %v2129, %v2128
        %2162 = vmatprep.subr.bf16.mxu0 0
        %2163 = vmatpush1.bf16.msra.mxu0 %v2137
        %2164 = vmatprep.subr.bf16.mxu0 0
        %2165 = vmatpush1.bf16.msra.mxu0 %v2136
        %2166 = vmatprep.subr.bf16.mxu0 0
        %2167 = vmatpush1.bf16.msra.mxu0 %v2135
        %2168 = vmatprep.subr.bf16.mxu0 0
        %2169 = vmatpush1.bf16.msra.mxu0 %v2134
        %2170 = vmatprep.subr.bf16.mxu0 0
        %2171 = vmatpush1.bf16.msra.mxu0 %v2133
        %2172 = vmatprep.subr.bf16.mxu0 0
        %2173 = vmatpush1.bf16.msra.mxu0 %v2132
        %2174 = vmatprep.subr.bf16.mxu0 0
        %2175 = vmatpush1.bf16.msra.mxu0 %v2131
        %2176 = vmatprep.subr.bf16.mxu0 0
        %2177 = vmatpush1.bf16.msra.mxu0 %v2130
        %2178 = vmatprep.subr.bf16.mxu0 0
        %2179 = vmatpush2.bf16.msra.mxu0 %v2145
        %2180 = vmatprep.subr.bf16.mxu0 0
        %2181 = vmatpush2.bf16.msra.mxu0 %v2144
        %2182 = vmatprep.subr.bf16.mxu0 0
        %2183 = vmatpush2.bf16.msra.mxu0 %v2143
        %2184 = vmatprep.subr.bf16.mxu0 0
        %2185 = vmatpush2.bf16.msra.mxu0 %v2142
        %2186 = vmatprep.subr.bf16.mxu0 0
        %2187 = vmatpush2.bf16.msra.mxu0 %v2141
        %2188 = vmatprep.subr.bf16.mxu0 0
        %2189 = vmatpush2.bf16.msra.mxu0 %v2140
        %2190 = vmatprep.subr.bf16.mxu0 0
        %2191 = vmatpush2.bf16.msra.mxu0 %v2139
        %2192 = vmatprep.subr.bf16.mxu0 0
        %2193 = vmatpush2.bf16.msra.mxu0 %v2138
        %2194 = vmatprep.mubr.bf16.mxu0 %v1911
        %2195 = vmatmul.mubr.bf16.gmra.mxu0 %v1908
        %v2196 = vpop.f32.mrf.mxu0
        %v2197 = vadd.f32 0.0, %v2196
        %v2198 = vpop.f32.mrf.mxu0
        %v2199 = vpop.f32.mrf.mxu0
        %v2200 = vadd.f32 0.0, %v2199
        %v2201 = vpop.f32.mrf.mxu0
        %2202 = vmatprep.mubr.bf16.mxu0 %v1917
        %2203 = vmatmul.mubr.bf16.gmra.mxu0 %v1914
        %v2204 = vpop.f32.mrf.mxu0
        %v2205 = vadd.f32 0.0, %v2204
        %v2206 = vpop.f32.mrf.mxu0
        %v2207 = vpop.f32.mrf.mxu0
        %v2208 = vadd.f32 0.0, %v2207
        %v2209 = vpop.f32.mrf.mxu0
        %2210 = vmatprep.mubr.bf16.mxu0 %v1923
        %2211 = vmatmul.mubr.bf16.gmra.mxu0 %v1920
        %v2212 = vpop.f32.mrf.mxu0
        %v2213 = vadd.f32 0.0, %v2212
        %v2214 = vpop.f32.mrf.mxu0
        %v2215 = vpop.f32.mrf.mxu0
        %v2216 = vadd.f32 0.0, %v2215
        %v2217 = vpop.f32.mrf.mxu0
        %2218 = vmatprep.mubr.bf16.mxu0 %v1929
        %2219 = vmatmul.mubr.bf16.gmra.mxu0 %v1926
        %v2220 = vpop.f32.mrf.mxu0
        %v2221 = vadd.f32 0.0, %v2220
        %v2222 = vpop.f32.mrf.mxu0
        %v2223 = vpop.f32.mrf.mxu0
        %v2224 = vadd.f32 0.0, %v2223
        %v2225 = vpop.f32.mrf.mxu0
        %2226 = vmatprep.mubr.bf16.mxu0 %v1935
        %2227 = vmatmul.mubr.bf16.gmra.mxu0 %v1932
        %v2228 = vpop.f32.mrf.mxu0
        %v2229 = vadd.f32 0.0, %v2228
        %v2230 = vpop.f32.mrf.mxu0
        %v2231 = vpop.f32.mrf.mxu0
        %v2232 = vadd.f32 0.0, %v2231
        %v2233 = vpop.f32.mrf.mxu0
        %2234 = vmatprep.mubr.bf16.mxu0 %v1941
        %2235 = vmatmul.mubr.bf16.gmra.mxu0 %v1938
        %v2236 = vpop.f32.mrf.mxu0
        %v2237 = vadd.f32 0.0, %v2236
        %v2238 = vpop.f32.mrf.mxu0
        %v2239 = vpop.f32.mrf.mxu0
        %v2240 = vadd.f32 0.0, %v2239
        %v2241 = vpop.f32.mrf.mxu0
        %2242 = vmatprep.mubr.bf16.mxu0 %v1947
        %2243 = vmatmul.mubr.bf16.gmra.mxu0 %v1944
        %v2244 = vpop.f32.mrf.mxu0
        %v2245 = vadd.f32 0.0, %v2244
        %v2246 = vpop.f32.mrf.mxu0
        %v2247 = vpop.f32.mrf.mxu0
        %v2248 = vadd.f32 0.0, %v2247
        %v2249 = vpop.f32.mrf.mxu0
        %2250 = vmatprep.mubr.bf16.mxu0 %v1953
        %2251 = vmatmul.mubr.bf16.gmra.mxu0 %v1950
        %v2252 = vpop.f32.mrf.mxu0
        %v2253 = vadd.f32 0.0, %v2252
        %v2254 = vpop.f32.mrf.mxu0
        %v2255 = vpop.f32.mrf.mxu0
        %v2256 = vadd.f32 0.0, %v2255
        %v2257 = vpop.f32.mrf.mxu0
        %2258 = vdwg.mxu0
        %v2259 = vrcp.pop %v1988
        %v2260 = vrcp.pop %v1991
        %v2261 = vrcp.pop %v1994
        %v2262 = vrcp.pop %v1997
        %v2263 = vrcp.pop %v2000
        %v2264 = vrcp.pop %v2003
        %v2265 = vrcp.pop %v2006
        %v2266 = vrcp.pop %v2009
        %v2267 = vrcp.pop %v2012
        %v2268 = vrcp.pop %v2015
        %v2269 = vrcp.pop %v2018
        %v2270 = vrcp.pop %v2021
        %v2271 = vrcp.pop %v2024
        %v2272 = vrcp.pop %v2027
        %v2273 = vrcp.pop %v2030
        %v2274 = vrcp.pop %v2033
        %v2275 = vmul.f32 %v2197, %v2259
        %v2276 = vmul.f32 %v2200, %v2260
        %v2277 = vmul.f32 %v2205, %v2261
        %v2278 = vmul.f32 %v2208, %v2262
        %v2279 = vmul.f32 %v2213, %v2263
        %v2280 = vmul.f32 %v2216, %v2264
        %v2281 = vmul.f32 %v2221, %v2265
        %v2282 = vmul.f32 %v2224, %v2266
        %v2283 = vmul.f32 %v2229, %v2267
        %v2284 = vmul.f32 %v2232, %v2268
        %v2285 = vmul.f32 %v2237, %v2269
        %v2286 = vmul.f32 %v2240, %v2270
        %v2287 = vmul.f32 %v2245, %v2271
        %v2288 = vmul.f32 %v2248, %v2272
        %v2289 = vmul.f32 %v2253, %v2273
        %v2290 = vmul.f32 %v2256, %v2274
        %v2291 = vpack.c.bf16 %v2276, %v2275
        %v2292 = vpack.c.bf16 %v2278, %v2277
        %v2293 = vpack.c.bf16 %v2280, %v2279
        %v2294 = vpack.c.bf16 %v2282, %v2281
        %v2295 = vpack.c.bf16 %v2284, %v2283
        %v2296 = vpack.c.bf16 %v2286, %v2285
        %v2297 = vpack.c.bf16 %v2288, %v2287
        %v2298 = vpack.c.bf16 %v2290, %v2289
        %v2299 = vld [vmem:[#allocation14] sm:$0xf]
        %v2300 = vld [vmem:[#allocation14 + $0x4] sm:$0xf]
        %v2301 = vld [vmem:[#allocation14 + $0x8] sm:$0xf]
        %v2302 = vld [vmem:[#allocation14 + $0xc] sm:$0xf]
        %v2303 = vld [vmem:[#allocation14 + $0x10] sm:$0xf]
        %v2304 = vld [vmem:[#allocation14 + $0x14] sm:$0xf]
        %v2305 = vld [vmem:[#allocation14 + $0x18] sm:$0xf]
        %v2306 = vld [vmem:[#allocation14 + $0x1c] sm:$0xf]
        %v2307 = vld [vmem:[#allocation14 + $0x20] sm:$0xf]
        %v2308 = vld [vmem:[#allocation14 + $0x24] sm:$0xf]
        %v2309 = vld [vmem:[#allocation14 + $0x28] sm:$0xf]
        %v2310 = vld [vmem:[#allocation14 + $0x2c] sm:$0xf]
        %v2311 = vld [vmem:[#allocation14 + $0x30] sm:$0xf]
        %v2312 = vld [vmem:[#allocation14 + $0x34] sm:$0xf]
        %v2313 = vld [vmem:[#allocation14 + $0x38] sm:$0xf]
        %v2314 = vld [vmem:[#allocation14 + $0x3c] sm:$0xf]
        %v2315 = vld [vmem:[%s9] sm:$0x1]
        %v2317 = vlaneseq
        %v2318 = vshrl.u32 %v2317, 7
        %v2319 = vsub.s32 0, %v2318
        %v2320 = vrot.slane %v2315, %v2319
        %v2338 = vunpack.c.l.b16 %v2299
        %v2339 = vunpack.c.l.b16 %v2300
        %v2340 = vunpack.c.l.b16 %v2301
        %v2341 = vunpack.c.l.b16 %v2302
        %v2342 = vunpack.c.l.b16 %v2303
        %v2343 = vunpack.c.l.b16 %v2304
        %v2344 = vunpack.c.l.b16 %v2305
        %v2345 = vunpack.c.l.b16 %v2306
        %v2346 = vunpack.c.l.b16 %v2307
        %v2347 = vunpack.c.l.b16 %v2308
        %v2348 = vunpack.c.l.b16 %v2309
        %v2349 = vunpack.c.l.b16 %v2310
        %v2350 = vunpack.c.l.b16 %v2311
        %v2351 = vunpack.c.l.b16 %v2312
        %v2352 = vunpack.c.l.b16 %v2313
        %v2353 = vunpack.c.l.b16 %v2314
        %v2354 = vpack.c.b16 %v2339, %v2338
        %v2355 = vpack.c.b16 %v2341, %v2340
        %v2356 = vpack.c.b16 %v2343, %v2342
        %v2357 = vpack.c.b16 %v2345, %v2344
        %v2358 = vpack.c.b16 %v2347, %v2346
        %v2359 = vpack.c.b16 %v2349, %v2348
        %v2360 = vpack.c.b16 %v2351, %v2350
        %v2361 = vpack.c.b16 %v2353, %v2352
        %2370 = vmatprep.subr.bf16.mxu0 0
        %2371 = vmatpush1.bf16.msra.mxu0 %v2361
        %2372 = vmatprep.subr.bf16.mxu0 0
        %2373 = vmatpush1.bf16.msra.mxu0 %v2360
        %2374 = vmatprep.subr.bf16.mxu0 0
        %2375 = vmatpush1.bf16.msra.mxu0 %v2359
        %2376 = vmatprep.subr.bf16.mxu0 0
        %2377 = vmatpush1.bf16.msra.mxu0 %v2358
        %2378 = vmatprep.subr.bf16.mxu0 0
        %2379 = vmatpush1.bf16.msra.mxu0 %v2357
        %2380 = vmatprep.subr.bf16.mxu0 0
        %2381 = vmatpush1.bf16.msra.mxu0 %v2356
        %2382 = vmatprep.subr.bf16.mxu0 0
        %2383 = vmatpush1.bf16.msra.mxu0 %v2355
        %2384 = vmatprep.subr.bf16.mxu0 0
        %2385 = vmatpush1.bf16.msra.mxu0 %v2354
        %2386 = vmatprep.subr.bf16.mxu0 0
        %2387 = vmatpush2.bf16.msra.mxu0 0
        %2388 = vmatprep.subr.bf16.mxu0 0
        %2389 = vmatpush2.bf16.msra.mxu0 0
        %2390 = vmatprep.subr.bf16.mxu0 0
        %2391 = vmatpush2.bf16.msra.mxu0 0
        %2392 = vmatprep.subr.bf16.mxu0 0
        %2393 = vmatpush2.bf16.msra.mxu0 0
        %2394 = vmatprep.subr.bf16.mxu0 0
        %2395 = vmatpush2.bf16.msra.mxu0 0
        %2396 = vmatprep.subr.bf16.mxu0 0
        %2397 = vmatpush2.bf16.msra.mxu0 0
        %2398 = vmatprep.subr.bf16.mxu0 0
        %2399 = vmatpush2.bf16.msra.mxu0 0
        %2400 = vmatprep.subr.bf16.mxu0 0
        %2401 = vmatpush2.bf16.msra.mxu0 0
        %2402 = vmatprep.mubr.bf16.mxu0 0
        %2403 = vmatmul.mubr.bf16.gmra.mxu0 %v2291
        %v2404 = vpop.f32.mrf.mxu0
        %v2405 = vadd.f32 %v2320, %v2404
        %v2406 = vpop.f32.mrf.mxu0
        %v2407 = vpop.f32.mrf.mxu0
        %v2408 = vadd.f32 %v2320, %v2407
        %v2409 = vpop.f32.mrf.mxu0
        %2410 = vmatprep.mubr.bf16.mxu0 0
        %2411 = vmatmul.mubr.bf16.gmra.mxu0 %v2292
        %v2412 = vpop.f32.mrf.mxu0
        %v2413 = vadd.f32 %v2320, %v2412
        %v2414 = vpop.f32.mrf.mxu0
        %v2415 = vpop.f32.mrf.mxu0
        %v2416 = vadd.f32 %v2320, %v2415
        %v2417 = vpop.f32.mrf.mxu0
        %2418 = vmatprep.mubr.bf16.mxu0 0
        %2419 = vmatmul.mubr.bf16.gmra.mxu0 %v2293
        %v2420 = vpop.f32.mrf.mxu0
        %v2421 = vadd.f32 %v2320, %v2420
        %v2422 = vpop.f32.mrf.mxu0
        %v2423 = vpop.f32.mrf.mxu0
        %v2424 = vadd.f32 %v2320, %v2423
        %v2425 = vpop.f32.mrf.mxu0
        %2426 = vmatprep.mubr.bf16.mxu0 0
        %2427 = vmatmul.mubr.bf16.gmra.mxu0 %v2294
        %v2428 = vpop.f32.mrf.mxu0
        %v2429 = vadd.f32 %v2320, %v2428
        %v2430 = vpop.f32.mrf.mxu0
        %v2431 = vpop.f32.mrf.mxu0
        %v2432 = vadd.f32 %v2320, %v2431
        %v2433 = vpop.f32.mrf.mxu0
        %2434 = vmatprep.mubr.bf16.mxu0 0
        %2435 = vmatmul.mubr.bf16.gmra.mxu0 %v2295
        %v2436 = vpop.f32.mrf.mxu0
        %v2437 = vadd.f32 %v2320, %v2436
        %v2438 = vpop.f32.mrf.mxu0
        %v2439 = vpop.f32.mrf.mxu0
        %v2440 = vadd.f32 %v2320, %v2439
        %v2441 = vpop.f32.mrf.mxu0
        %2442 = vmatprep.mubr.bf16.mxu0 0
        %2443 = vmatmul.mubr.bf16.gmra.mxu0 %v2296
        %v2444 = vpop.f32.mrf.mxu0
        %v2445 = vadd.f32 %v2320, %v2444
        %v2446 = vpop.f32.mrf.mxu0
        %v2447 = vpop.f32.mrf.mxu0
        %v2448 = vadd.f32 %v2320, %v2447
        %v2449 = vpop.f32.mrf.mxu0
        %2450 = vmatprep.mubr.bf16.mxu0 0
        %2451 = vmatmul.mubr.bf16.gmra.mxu0 %v2297
        %v2452 = vpop.f32.mrf.mxu0
        %v2453 = vadd.f32 %v2320, %v2452
        %v2454 = vpop.f32.mrf.mxu0
        %v2455 = vpop.f32.mrf.mxu0
        %v2456 = vadd.f32 %v2320, %v2455
        %v2457 = vpop.f32.mrf.mxu0
        %2458 = vmatprep.mubr.bf16.mxu0 0
        %2459 = vmatmul.mubr.bf16.gmra.mxu0 %v2298
        %v2460 = vpop.f32.mrf.mxu0
        %v2461 = vadd.f32 %v2320, %v2460
        %v2462 = vpop.f32.mrf.mxu0
        %v2463 = vpop.f32.mrf.mxu0
        %v2464 = vadd.f32 %v2320, %v2463
        %v2465 = vpop.f32.mrf.mxu0
        %2466 = vdwg.mxu0
        %v2467 = vadd.f32 %v1323, %v2405
        %v2468 = vadd.f32 %v1324, %v2408
        %v2469 = vadd.f32 %v1325, %v2413
        %v2470 = vadd.f32 %v1326, %v2416
        %v2471 = vadd.f32 %v1327, %v2421
        %v2472 = vadd.f32 %v1328, %v2424
        %v2473 = vadd.f32 %v1329, %v2429
        %v2474 = vadd.f32 %v1330, %v2432
        %v2475 = vadd.f32 %v1331, %v2437
        %v2476 = vadd.f32 %v1332, %v2440
        %v2477 = vadd.f32 %v1333, %v2445
        %v2478 = vadd.f32 %v1334, %v2448
        %v2479 = vadd.f32 %v1335, %v2453
        %v2480 = vadd.f32 %v1336, %v2456
        %v2481 = vadd.f32 %v1337, %v2461
        %v2482 = vadd.f32 %v1338, %v2464
        %2483 = vst [vmem:[%s443] sm:$0xff] %v2467
        %2484 = vst [vmem:[%s443 + $0x8] sm:$0xff] %v2468
        %2485 = vst [vmem:[%s443 + $0x10] sm:$0xff] %v2469
        %2486 = vst [vmem:[%s443 + $0x18] sm:$0xff] %v2470
        %2487 = vst [vmem:[%s443 + $0x20] sm:$0xff] %v2471
        %2488 = vst [vmem:[%s443 + $0x28] sm:$0xff] %v2472
        %2489 = vst [vmem:[%s443 + $0x30] sm:$0xff] %v2473
        %2490 = vst [vmem:[%s443 + $0x38] sm:$0xff] %v2474
        %2491 = vst [vmem:[%s443 + $0x40] sm:$0xff] %v2475
        %2492 = vst [vmem:[%s443 + $0x48] sm:$0xff] %v2476
        %2493 = vst [vmem:[%s443 + $0x50] sm:$0xff] %v2477
        %2494 = vst [vmem:[%s443 + $0x58] sm:$0xff] %v2478
        %2495 = vst [vmem:[%s443 + $0x60] sm:$0xff] %v2479
        %2496 = vst [vmem:[%s443 + $0x68] sm:$0xff] %v2480
        %2497 = vst [vmem:[%s443 + $0x70] sm:$0xff] %v2481
        %2498 = vst [vmem:[%s443 + $0x78] sm:$0xff] %v2482
        %s2499 = sand.u32 %s275, 1
        %s2500 = scalar_lea.sflag [#allocation8], %s2499
        %s2501 = sand.u32 %s275, 1
        %s2502 = smul.addr %s2501, 128
        %s2503 = scalar_lea.vmem [#allocation15], %s2502
        // Predicated region
        $region106: #{tpu_custom_call.1} parent=59 // pred_check
          %p2504 = pneg %p285
        $region107: #{tpu_custom_call.1} parent=59 // pred_check_branch
          %2506 = sbr.rel (%p2504) target = $region109
        $region108: #{tpu_custom_call.1} parent=59 // pred_region
          %s2507 = smul.u32 %s33, 2
          %s2508 = sadd.s32 %s2507, %s34
          %s2509 = smul.u32 16, %s2508
          %s2511 = ssub.s32 2048, 2048
          %2512 = vsyncadd %s2500, %s2511
          %s2513 = smul.addr %s32, 32
          %s2514 = sadd.s32 %s2509, %s2513
          %s2515 = smul.addr %s2514, 128
          %s2516 = scalar_lea.hbm %s10, %s2515
          %s2517 = sshll.u32 %s2503, 4
          %s2518 = int_to_ptr.vmem [resolvable:$true] %s2517
          %2523 = dma.vmem_to_hbm [thread:$0]  %s2518, 2048, %s2516, %s2500, 128, 128, 8
        $region109: #{tpu_custom_call.1} parent=59 // pred_fallthru
          _
      $region60: #{tpu_custom_call.1} parent=5 // pred_fallthru
        _
      %p2524 = scmp.le.s32.totalorder 2, %s22
      // Predicated region
      $region110: #{tpu_custom_call.1} parent=5 // pred_check
        %p2525 = pneg %p2524
      $region111: #{tpu_custom_call.1} parent=5 // pred_check_branch
        %2527 = sbr.rel (%p2525) target = $region113
      $region112: #{tpu_custom_call.1} parent=5 // pred_region
        %s2528 = ssub.s32 %s22, 2
        // Predicated region
        $region114: #{tpu_custom_call.1} parent=112 // pred_check
          %p2529 = pneg %p291
        $region115: #{tpu_custom_call.1} parent=112 // pred_check_branch
          %2531 = sbr.rel (%p2529) target = $region117
        $region116: #{tpu_custom_call.1} parent=112 // pred_region
          %s2532 = sand.u32 %s276, 1
          %s2533 = scalar_lea.sflag [#allocation8], %s2532
          %s2534 = sand.u32 %s276, 1
          %s2535 = smul.addr %s2534, 128
          %s2536 = scalar_lea.vmem [#allocation15], %s2535
          %2537 = dma.done %s2533, 2048
        $region117: #{tpu_custom_call.1} parent=112 // pred_fallthru
          _
      $region113: #{tpu_custom_call.1} parent=5 // pred_fallthru
        _
    $region6: #{tpu_custom_call.1} parent=1 // loop_footer
      %s26 = sadd.s32 1, %s22
    $region7: #{tpu_custom_call.1} parent=1 // loop_footer_branch
      %21 = sbr.rel target = $region3
    $region8: #{tpu_custom_call.1} parent=1 // loop_exit
      _
    %2538 = vsyncpa [#allocation7], 1
    %s2539 = scalar_lea.sflag [#allocation7], 1
    %2540 = vsyncpa %s2539, 1
    %2541 = vsyncpa [#allocation10], 1
    %2542 = vsyncpa [#allocation13], 1
    %2543 = vsyncpa [#allocation8], 1
    %s2544 = scalar_lea.sflag [#allocation8], 1
    %2545 = vsyncpa %s2544, 1

// kernel: tpu_custom_call.1
$region0: #{tpu_custom_call.1}
  #allocation0 [shape = 'u32[]', space=smem, size = 0x4, offset = 0x4, fixed_abs, tag = 'smem constant byte address 0x4 - core index']
  #allocation1 [shape = 'u32[144,128]{1,0:T(1,128)}', space=vmem, size = 0x12000, scoped, tag = 'internal scratch']
  #allocation2 [shape = 'bf16[256,128]{1,0:T(8,128)(2,1)}', space=vmem, size = 0x10000, scoped, tag = 'scratch operand']
  #allocation3 [shape = 'bf16[256,128]{1,0:T(8,128)(2,1)}', space=vmem, size = 0x10000, scoped, tag = 'scratch operand']
  #allocation4 [shape = 'f32[1,128]{1,0:T(1,128)}', space=vmem, size = 0x200, scoped, tag = 'scratch operand']
  #allocation5 [shape = 'f32[1,128]{1,0:T(1,128)}', space=vmem, size = 0x200, scoped, tag = 'scratch operand']
  %s0 = inlined_call_operand.hbm [shape: f32[2,256,128], index: 0, kind: input, shape index: {}]
  %s1 = inlined_call_operand.hbm [shape: f32[128,128], index: 1, kind: input, shape index: {}]
  %s2 = inlined_call_operand.vmem [shape: f32[1,128], index: 2, kind: input, shape index: {}]
  %s3 = inlined_call_operand.vmem [shape: f32[1,128], index: 3, kind: input, shape index: {}]
  %s4 = inlined_call_operand.hbm [shape: bf16[128,128], index: 4, kind: input, shape index: {}]
  %s5 = inlined_call_operand.vmem [shape: f32[1,128], index: 5, kind: input, shape index: {}]
  %s6 = inlined_call_operand.hbm [shape: bf16[128,256], index: 6, kind: input, shape index: {}]
  %s7 = inlined_call_operand.vmem [shape: f32[1,128], index: 7, kind: input, shape index: {}]
  %s8 = inlined_call_operand.hbm [shape: bf16[128,128], index: 8, kind: input, shape index: {}]
  %s9 = inlined_call_operand.vmem [shape: f32[1,128], index: 9, kind: input, shape index: {}]
  %s10 = inlined_call_operand.hbm [shape: f32[2,256,128], index: 10, kind: output, shape index: {}]
  %s11 = sld [smem:[#allocation0]]
  $region118: #{tpu_custom_call.1} parent=0
    _
  %s13 = ssub.s32 1, %s11
  %s14 = scalar_select 0, %s13, %s11
  $region1: #{tpu_custom_call.1} parent=0
    #allocation6 [shape = 'u8[262144]{0}', space=vmem, size = 0x40000, scoped, tag = 'input window, operand 0']
    #allocation7 [shape = 's32[2]{0}', space=sflag, size = 0x8, scoped, tag = 'scoped memory for tpu_custom_call.1']
    #allocation8 [shape = 's32[2]{0}', space=sflag, size = 0x8, scoped, tag = 'scoped memory for tpu_custom_call.1']
    #allocation9 [shape = 'u8[65536]{0}', space=vmem, size = 0x10000, scoped, tag = 'input window, operand 1, single buffered']
    #allocation10 [shape = 's32[1]{0}', space=sflag, size = 0x4, scoped, tag = 'scoped memory for tpu_custom_call.1']
    #allocation11 [shape = 'u8[32768]{0}', space=vmem, size = 0x8000, scoped, tag = 'input window, operand 4, single buffered']
    #allocation12 [shape = 'u8[65536]{0}', space=vmem, size = 0x10000, scoped, tag = 'input window, operand 6, single buffered']
    #allocation13 [shape = 's32[1]{0}', space=sflag, size = 0x4, scoped, tag = 'scoped memory for tpu_custom_call.1']
    #allocation14 [shape = 'u8[32768]{0}', space=vmem, size = 0x8000, scoped, tag = 'input window, operand 8, single buffered']
    #allocation15 [shape = 'u8[131072]{0}', space=vmem, size = 0x20000, scoped, tag = 'output window, operand 0']
    %15 = vsyncpa [#allocation7], 0
    %s16 = scalar_lea.sflag [#allocation7], 1
    %17 = vsyncpa %s16, 0
    %18 = vsyncpa [#allocation10], 0
    %19 = vsyncpa [#allocation13], 0
    %20 = vsyncpa [#allocation8], 0
    %s21 = scalar_lea.sflag [#allocation8], 1
    %22 = vsyncpa %s21, 0
    loop: start=0, step=1, limit=6
    $region2: #{tpu_custom_call.1} parent=1 // loop_pre_header
      _
    $region3: #{tpu_custom_call.1} parent=1 // loop_header
      %s24 = sphi 0, %s28
      %p25 = scmp.ge.s32.totalorder %s24, 6
      %s31 = sphi 0, %s50
      %s32 = sphi 0, %s46
      %s33 = sphi 0, %s42
      %s34 = sphi 0, %s31
      %s35 = sphi 0, %s32
      %s36 = sphi 0, %s33
      %s37 = sphi 0, %s34
      %s38 = sphi 0, %s35
      %s39 = sphi 0, %s36
      %s53 = sphi 0, %s55
      %s56 = sphi 0, %s53
      %s57 = sphi 0, %s56
      %s73 = sphi 0, %s57
      %s77 = sphi 0, %s77
      %s79 = sphi 0, %s77
      %s80 = sphi 0, %s79
      %s94 = sphi 0, %s80
      %s98 = sphi 0, %s98
      %s100 = sphi 0, %s98
      %s101 = sphi 0, %s100
      %s115 = sphi 0, %s101
      %s119 = sphi 0, %s119
      %s121 = sphi 0, %s119
      %s122 = sphi 0, %s121
      %s136 = sphi 0, %s122
      %s140 = sphi 0, %s140
      %s142 = sphi 0, %s140
      %s143 = sphi 0, %s142
      %s157 = sphi 0, %s143
      %s161 = sphi 0, %s161
      %s163 = sphi 0, %s161
      %s164 = sphi 0, %s163
      %s178 = sphi 0, %s164
      %s182 = sphi 0, %s182
      %s184 = sphi 0, %s182
      %s185 = sphi 0, %s184
      %s199 = sphi 0, %s185
      %s203 = sphi 0, %s203
      %s205 = sphi 0, %s203
      %s206 = sphi 0, %s205
      %s220 = sphi 0, %s206
      %s224 = sphi 0, %s224
      %s226 = sphi 0, %s224
      %s227 = sphi 0, %s226
      %s241 = sphi 0, %s227
      %s245 = sphi 0, %s245
      %s247 = sphi 0, %s245
      %s248 = sphi 0, %s247
      %s262 = sphi 0, %s248
      %s274 = sphi 0, %s276
      %s277 = sphi 0, %s274
      %s278 = sphi 0, %s277
      %s294 = sphi 0, %s278
    $region4: #{tpu_custom_call.1} parent=1 // loop_header_branch
      %27 = sbr.rel (%p25) target = $region8
    $region5: #{tpu_custom_call.1} parent=1 // loop_body
      %s29 = ssub.s32 %s24, 1
      %s30 = ssub.s32 %s24, 2
      %s40 = sadd.s32 1, %s33
      %p41 = scmp.ge.s32.totalorder %s40, 2
      %s42 = scalar_select %p41, 0, %s40
      %s43 = sadd.s32 1, %s32
      %s44 = scalar_select %p41, %s43, %s32
      %p45 = scmp.ge.s32.totalorder %s44, 1
      %s46 = scalar_select %p45, 0, %s44
      %s47 = sadd.s32 1, %s31
      %s48 = scalar_select %p45, %s47, %s31
      %p49 = scmp.ge.s32.totalorder %s48, 2
      %s50 = scalar_select %p49, 0, %s48
      %s51 = ssub.s32 %s31, %s50
      %p52 = scmp.eq.s32.totalorder %s51, 0
      %s54 = sadd.s32 %s53, 1
      %s55 = scalar_select %p52, %s53, %s54
      %p58 = pneg %p52
      %p59 = scmp.eq.s32.totalorder %s24, 3
      %p60 = por %p58, %p59
      %p61 = scmp.ne.s32.totalorder %s53, %s56
      %p62 = scmp.eq.s32.totalorder %s24, 0
      %p63 = por %p61, %p62
      %p64 = scmp.ne.s32.totalorder %s53, %s56
      %p65 = scmp.eq.s32.totalorder %s29, 3
      %p66 = por %p64, %p65
      %p67 = scmp.ne.s32.totalorder %s56, %s57
      %p68 = scmp.eq.s32.totalorder %s29, 0
      %p69 = por %p67, %p68
      %p70 = scmp.ne.s32.totalorder %s56, %s57
      %p71 = scmp.eq.s32.totalorder %s30, 3
      %p72 = por %p70, %p71
      %p74 = scmp.ne.s32.totalorder %s57, %s73
      %p75 = scmp.eq.s32.totalorder %s30, 0
      %p76 = por %p74, %p75
      %s78 = sadd.s32 %s77, 1
      %p81 = scmp.eq.s32.totalorder %s24, 3
      %p82 = scmp.ne.s32.totalorder %s77, %s79
      %p83 = scmp.eq.s32.totalorder %s24, 0
      %p84 = por %p82, %p83
      %p85 = scmp.ne.s32.totalorder %s77, %s79
      %p86 = scmp.eq.s32.totalorder %s29, 3
      %p87 = por %p85, %p86
      %p88 = scmp.ne.s32.totalorder %s79, %s80
      %p89 = scmp.eq.s32.totalorder %s29, 0
      %p90 = por %p88, %p89
      %p91 = scmp.ne.s32.totalorder %s79, %s80
      %p92 = scmp.eq.s32.totalorder %s30, 3
      %p93 = por %p91, %p92
      %p95 = scmp.ne.s32.totalorder %s80, %s94
      %p96 = scmp.eq.s32.totalorder %s30, 0
      %p97 = por %p95, %p96
      %s99 = sadd.s32 %s98, 1
      %p102 = scmp.eq.s32.totalorder %s24, 3
      %p103 = scmp.ne.s32.totalorder %s98, %s100
      %p104 = scmp.eq.s32.totalorder %s24, 0
      %p105 = por %p103, %p104
      %p106 = scmp.ne.s32.totalorder %s98, %s100
      %p107 = scmp.eq.s32.totalorder %s29, 3
      %p108 = por %p106, %p107
      %p109 = scmp.ne.s32.totalorder %s100, %s101
      %p110 = scmp.eq.s32.totalorder %s29, 0
      %p111 = por %p109, %p110
      %p112 = scmp.ne.s32.totalorder %s100, %s101
      %p113 = scmp.eq.s32.totalorder %s30, 3
      %p114 = por %p112, %p113
      %p116 = scmp.ne.s32.totalorder %s101, %s115
      %p117 = scmp.eq.s32.totalorder %s30, 0
      %p118 = por %p116, %p117
      %s120 = sadd.s32 %s119, 1
      %p123 = scmp.eq.s32.totalorder %s24, 3
      %p124 = scmp.ne.s32.totalorder %s119, %s121
      %p125 = scmp.eq.s32.totalorder %s24, 0
      %p126 = por %p124, %p125
      %p127 = scmp.ne.s32.totalorder %s119, %s121
      %p128 = scmp.eq.s32.totalorder %s29, 3
      %p129 = por %p127, %p128
      %p130 = scmp.ne.s32.totalorder %s121, %s122
      %p131 = scmp.eq.s32.totalorder %s29, 0
      %p132 = por %p130, %p131
      %p133 = scmp.ne.s32.totalorder %s121, %s122
      %p134 = scmp.eq.s32.totalorder %s30, 3
      %p135 = por %p133, %p134
      %p137 = scmp.ne.s32.totalorder %s122, %s136
      %p138 = scmp.eq.s32.totalorder %s30, 0
      %p139 = por %p137, %p138
      %s141 = sadd.s32 %s140, 1
      %p144 = scmp.eq.s32.totalorder %s24, 3
      %p145 = scmp.ne.s32.totalorder %s140, %s142
      %p146 = scmp.eq.s32.totalorder %s24, 0
      %p147 = por %p145, %p146
      %p148 = scmp.ne.s32.totalorder %s140, %s142
      %p149 = scmp.eq.s32.totalorder %s29, 3
      %p150 = por %p148, %p149
      %p151 = scmp.ne.s32.totalorder %s142, %s143
      %p152 = scmp.eq.s32.totalorder %s29, 0
      %p153 = por %p151, %p152
      %p154 = scmp.ne.s32.totalorder %s142, %s143
      %p155 = scmp.eq.s32.totalorder %s30, 3
      %p156 = por %p154, %p155
      %p158 = scmp.ne.s32.totalorder %s143, %s157
      %p159 = scmp.eq.s32.totalorder %s30, 0
      %p160 = por %p158, %p159
      %s162 = sadd.s32 %s161, 1
      %p165 = scmp.eq.s32.totalorder %s24, 3
      %p166 = scmp.ne.s32.totalorder %s161, %s163
      %p167 = scmp.eq.s32.totalorder %s24, 0
      %p168 = por %p166, %p167
      %p169 = scmp.ne.s32.totalorder %s161, %s163
      %p170 = scmp.eq.s32.totalorder %s29, 3
      %p171 = por %p169, %p170
      %p172 = scmp.ne.s32.totalorder %s163, %s164
      %p173 = scmp.eq.s32.totalorder %s29, 0
      %p174 = por %p172, %p173
      %p175 = scmp.ne.s32.totalorder %s163, %s164
      %p176 = scmp.eq.s32.totalorder %s30, 3
      %p177 = por %p175, %p176
      %p179 = scmp.ne.s32.totalorder %s164, %s178
      %p180 = scmp.eq.s32.totalorder %s30, 0
      %p181 = por %p179, %p180
      %s183 = sadd.s32 %s182, 1
      %p186 = scmp.eq.s32.totalorder %s24, 3
      %p187 = scmp.ne.s32.totalorder %s182, %s184
      %p188 = scmp.eq.s32.totalorder %s24, 0
      %p189 = por %p187, %p188
      %p190 = scmp.ne.s32.totalorder %s182, %s184
      %p191 = scmp.eq.s32.totalorder %s29, 3
      %p192 = por %p190, %p191
      %p193 = scmp.ne.s32.totalorder %s184, %s185
      %p194 = scmp.eq.s32.totalorder %s29, 0
      %p195 = por %p193, %p194
      %p196 = scmp.ne.s32.totalorder %s184, %s185
      %p197 = scmp.eq.s32.totalorder %s30, 3
      %p198 = por %p196, %p197
      %p200 = scmp.ne.s32.totalorder %s185, %s199
      %p201 = scmp.eq.s32.totalorder %s30, 0
      %p202 = por %p200, %p201
      %s204 = sadd.s32 %s203, 1
      %p207 = scmp.eq.s32.totalorder %s24, 3
      %p208 = scmp.ne.s32.totalorder %s203, %s205
      %p209 = scmp.eq.s32.totalorder %s24, 0
      %p210 = por %p208, %p209
      %p211 = scmp.ne.s32.totalorder %s203, %s205
      %p212 = scmp.eq.s32.totalorder %s29, 3
      %p213 = por %p211, %p212
      %p214 = scmp.ne.s32.totalorder %s205, %s206
      %p215 = scmp.eq.s32.totalorder %s29, 0
      %p216 = por %p214, %p215
      %p217 = scmp.ne.s32.totalorder %s205, %s206
      %p218 = scmp.eq.s32.totalorder %s30, 3
      %p219 = por %p217, %p218
      %p221 = scmp.ne.s32.totalorder %s206, %s220
      %p222 = scmp.eq.s32.totalorder %s30, 0
      %p223 = por %p221, %p222
      %s225 = sadd.s32 %s224, 1
      %p228 = scmp.eq.s32.totalorder %s24, 3
      %p229 = scmp.ne.s32.totalorder %s224, %s226
      %p230 = scmp.eq.s32.totalorder %s24, 0
      %p231 = por %p229, %p230
      %p232 = scmp.ne.s32.totalorder %s224, %s226
      %p233 = scmp.eq.s32.totalorder %s29, 3
      %p234 = por %p232, %p233
      %p235 = scmp.ne.s32.totalorder %s226, %s227
      %p236 = scmp.eq.s32.totalorder %s29, 0
      %p237 = por %p235, %p236
      %p238 = scmp.ne.s32.totalorder %s226, %s227
      %p239 = scmp.eq.s32.totalorder %s30, 3
      %p240 = por %p238, %p239
      %p242 = scmp.ne.s32.totalorder %s227, %s241
      %p243 = scmp.eq.s32.totalorder %s30, 0
      %p244 = por %p242, %p243
      %s246 = sadd.s32 %s245, 1
      %p249 = scmp.eq.s32.totalorder %s24, 3
      %p250 = scmp.ne.s32.totalorder %s245, %s247
      %p251 = scmp.eq.s32.totalorder %s24, 0
      %p252 = por %p250, %p251
      %p253 = scmp.ne.s32.totalorder %s245, %s247
      %p254 = scmp.eq.s32.totalorder %s29, 3
      %p255 = por %p253, %p254
      %p256 = scmp.ne.s32.totalorder %s247, %s248
      %p257 = scmp.eq.s32.totalorder %s29, 0
      %p258 = por %p256, %p257
      %p259 = scmp.ne.s32.totalorder %s247, %s248
      %p260 = scmp.eq.s32.totalorder %s30, 3
      %p261 = por %p259, %p260
      %p263 = scmp.ne.s32.totalorder %s248, %s262
      %p264 = scmp.eq.s32.totalorder %s30, 0
      %p265 = por %p263, %p264
      %s266 = smul.u32 %s32, 2
      %s267 = sadd.s32 %s266, %s33
      %s268 = smul.u32 %s46, 2
      %s269 = sadd.s32 %s268, %s42
      %s270 = ssub.s32 %s31, %s50
      %s271 = ssub.s32 %s267, %s269
      %s272 = sor.u32 %s270, %s271
      %p273 = scmp.eq.s32.totalorder %s272, 0
      %s275 = sadd.s32 %s274, 1
      %s276 = scalar_select %p273, %s274, %s275
      %p279 = pneg %p273
      %p280 = scmp.eq.s32.totalorder %s24, 3
      %p281 = por %p279, %p280
      %p282 = scmp.ne.s32.totalorder %s274, %s277
      %p283 = scmp.eq.s32.totalorder %s24, 0
      %p284 = por %p282, %p283
      %p285 = scmp.ne.s32.totalorder %s274, %s277
      %p286 = scmp.eq.s32.totalorder %s29, 3
      %p287 = por %p285, %p286
      %p288 = scmp.ne.s32.totalorder %s277, %s278
      %p289 = scmp.eq.s32.totalorder %s29, 0
      %p290 = por %p288, %p289
      %p291 = scmp.ne.s32.totalorder %s277, %s278
      %p292 = scmp.eq.s32.totalorder %s30, 3
      %p293 = por %p291, %p292
      %p295 = scmp.ne.s32.totalorder %s278, %s294
      %p296 = scmp.eq.s32.totalorder %s30, 0
      %p297 = por %p295, %p296
      %p298 = scmp.le.s32.totalorder 1, %s24
      %p299 = scmp.lt.s32.totalorder %s24, 5
      %p300 = pnand %p298, %p299
      %p301 = pneg %p300
      // Predicated region
      $region9: #{tpu_custom_call.1} parent=5 // pred_check
        _
      $region10: #{tpu_custom_call.1} parent=5 // pred_check_branch
        %303 = sbr.rel (%p300) target = $region12
      $region11: #{tpu_custom_call.1} parent=5 // pred_region
        %s304 = ssub.s32 %s24, 1
        // Predicated region
        $region13: #{tpu_custom_call.1} parent=11 // pred_check
          %p305 = pneg %p90
        $region14: #{tpu_custom_call.1} parent=11 // pred_check_branch
          %307 = sbr.rel (%p305) target = $region16
        $region15: #{tpu_custom_call.1} parent=11 // pred_region
          %s309 = ssub.s32 2048, 2048
          %310 = vsyncadd [#allocation10], %s309
          %s311 = sshll.u32 [#allocation9], 4
          %s312 = int_to_ptr.vmem [resolvable:$true] %s311
          %317 = dma.hbm_to_vmem [thread:$0]  %s1, 2048, %s312, [#allocation10], 128, 128, 8
        $region16: #{tpu_custom_call.1} parent=11 // pred_fallthru
          _
        // Predicated region
        $region17: #{tpu_custom_call.1} parent=11 // pred_check
          %p318 = pneg %p111
        $region18: #{tpu_custom_call.1} parent=11 // pred_check_branch
          %320 = sbr.rel (%p318) target = $region20
        $region19: #{tpu_custom_call.1} parent=11 // pred_region
          _
        $region20: #{tpu_custom_call.1} parent=11 // pred_fallthru
          _
        // Predicated region
        $region21: #{tpu_custom_call.1} parent=11 // pred_check
          %p321 = pneg %p132
        $region22: #{tpu_custom_call.1} parent=11 // pred_check_branch
          %323 = sbr.rel (%p321) target = $region24
        $region23: #{tpu_custom_call.1} parent=11 // pred_region
          _
        $region24: #{tpu_custom_call.1} parent=11 // pred_fallthru
          _
        // Predicated region
        $region25: #{tpu_custom_call.1} parent=11 // pred_check
          %p324 = pneg %p153
        $region26: #{tpu_custom_call.1} parent=11 // pred_check_branch
          %326 = sbr.rel (%p324) target = $region28
        $region27: #{tpu_custom_call.1} parent=11 // pred_region
          %s328 = ssub.s32 1024, 1024
          %329 = vsyncadd [#allocation10], %s328
          %s330 = sshll.u32 [#allocation11], 4
          %s331 = int_to_ptr.vmem [resolvable:$true] %s330
          %336 = dma.hbm_to_vmem [thread:$0]  %s4, 1024, %s331, [#allocation10], 64, 64, 4
        $region28: #{tpu_custom_call.1} parent=11 // pred_fallthru
          _
        // Predicated region
        $region29: #{tpu_custom_call.1} parent=11 // pred_check
          %p337 = pneg %p174
        $region30: #{tpu_custom_call.1} parent=11 // pred_check_branch
          %339 = sbr.rel (%p337) target = $region32
        $region31: #{tpu_custom_call.1} parent=11 // pred_region
          _
        $region32: #{tpu_custom_call.1} parent=11 // pred_fallthru
          _
        // Predicated region
        $region33: #{tpu_custom_call.1} parent=11 // pred_check
          %p340 = pneg %p195
        $region34: #{tpu_custom_call.1} parent=11 // pred_check_branch
          %342 = sbr.rel (%p340) target = $region36
        $region35: #{tpu_custom_call.1} parent=11 // pred_region
          %s344 = ssub.s32 2048, 2048
          %345 = vsyncadd [#allocation13], %s344
          %s346 = sshll.u32 [#allocation12], 4
          %s347 = int_to_ptr.vmem [resolvable:$true] %s346
          %352 = dma.hbm_to_vmem [thread:$0]  %s6, 2048, %s347, [#allocation13], 128, 128, 8
        $region36: #{tpu_custom_call.1} parent=11 // pred_fallthru
          _
        // Predicated region
        $region37: #{tpu_custom_call.1} parent=11 // pred_check
          %p353 = pneg %p216
        $region38: #{tpu_custom_call.1} parent=11 // pred_check_branch
          %355 = sbr.rel (%p353) target = $region40
        $region39: #{tpu_custom_call.1} parent=11 // pred_region
          _
        $region40: #{tpu_custom_call.1} parent=11 // pred_fallthru
          _
        // Predicated region
        $region41: #{tpu_custom_call.1} parent=11 // pred_check
          %p356 = pneg %p237
        $region42: #{tpu_custom_call.1} parent=11 // pred_check_branch
          %358 = sbr.rel (%p356) target = $region44
        $region43: #{tpu_custom_call.1} parent=11 // pred_region
          %s360 = ssub.s32 1024, 1024
          %361 = vsyncadd [#allocation13], %s360
          %s362 = sshll.u32 [#allocation14], 4
          %s363 = int_to_ptr.vmem [resolvable:$true] %s362
          %368 = dma.hbm_to_vmem [thread:$0]  %s8, 1024, %s363, [#allocation13], 64, 64, 4
        $region44: #{tpu_custom_call.1} parent=11 // pred_fallthru
          _
        // Predicated region
        $region45: #{tpu_custom_call.1} parent=11 // pred_check
          %p369 = pneg %p258
        $region46: #{tpu_custom_call.1} parent=11 // pred_check_branch
          %371 = sbr.rel (%p369) target = $region48
        $region47: #{tpu_custom_call.1} parent=11 // pred_region
          _
        $region48: #{tpu_custom_call.1} parent=11 // pred_fallthru
          _
      $region12: #{tpu_custom_call.1} parent=5 // pred_fallthru
        _
      %p372 = scmp.lt.s32.totalorder %s24, 4
      // Predicated region
      $region49: #{tpu_custom_call.1} parent=5 // pred_check
        %p373 = pneg %p372
      $region50: #{tpu_custom_call.1} parent=5 // pred_check_branch
        %375 = sbr.rel (%p373) target = $region52
      $region51: #{tpu_custom_call.1} parent=5 // pred_region
        // Predicated region
        $region53: #{tpu_custom_call.1} parent=51 // pred_check
          %p376 = pneg %p63
        $region54: #{tpu_custom_call.1} parent=51 // pred_check_branch
          %378 = sbr.rel (%p376) target = $region56
        $region55: #{tpu_custom_call.1} parent=51 // pred_region
          %s379 = sand.u32 %s53, 1
          %s380 = scalar_lea.sflag [#allocation7], %s379
          %s381 = sand.u32 %s53, 1
          %s382 = smul.addr %s381, 256
          %s383 = scalar_lea.vmem [#allocation6], %s382
          %s385 = ssub.s32 4096, 4096
          %386 = vsyncadd %s380, %s385
          %s387 = smul.addr %s31, 32
          %s388 = smul.addr %s387, 128
          %s389 = scalar_lea.hbm %s0, %s388
          %s390 = sshll.u32 %s383, 4
          %s391 = int_to_ptr.vmem [resolvable:$true] %s390
          %396 = dma.hbm_to_vmem [thread:$0]  %s389, 4096, %s391, %s380, 128, 128, 8
        $region56: #{tpu_custom_call.1} parent=51 // pred_fallthru
          _
      $region52: #{tpu_custom_call.1} parent=5 // pred_fallthru
        _
      %p397 = scmp.le.s32.totalorder 1, %s24
      %p398 = scmp.lt.s32.totalorder %s24, 5
      %p399 = pnand %p397, %p398
      %p400 = pneg %p399
      // Predicated region
      $region57: #{tpu_custom_call.1} parent=5 // pred_check
        _
      $region58: #{tpu_custom_call.1} parent=5 // pred_check_branch
        %402 = sbr.rel (%p399) target = $region60
      $region59: #{tpu_custom_call.1} parent=5 // pred_region
        %s403 = ssub.s32 %s24, 1
        %s404 = sand.u32 %s56, 1
        %s405 = scalar_lea.sflag [#allocation7], %s404
        %s406 = sand.u32 %s56, 1
        %s407 = smul.addr %s406, 256
        %s408 = scalar_lea.vmem [#allocation6], %s407
        // Predicated region
        $region61: #{tpu_custom_call.1} parent=59 // pred_check
          %p409 = pneg %p69
        $region62: #{tpu_custom_call.1} parent=59 // pred_check_branch
          %411 = sbr.rel (%p409) target = $region64
        $region63: #{tpu_custom_call.1} parent=59 // pred_region
          %412 = dma.done %s405, 4096
        $region64: #{tpu_custom_call.1} parent=59 // pred_fallthru
          _
        // Predicated region
        $region65: #{tpu_custom_call.1} parent=59 // pred_check
          %p413 = pneg %p90
        $region66: #{tpu_custom_call.1} parent=59 // pred_check_branch
          %415 = sbr.rel (%p413) target = $region68
        $region67: #{tpu_custom_call.1} parent=59 // pred_region
          %416 = dma.done [#allocation10], 2048
        $region68: #{tpu_custom_call.1} parent=59 // pred_fallthru
          _
        // Predicated region
        $region69: #{tpu_custom_call.1} parent=59 // pred_check
          %p417 = pneg %p153
        $region70: #{tpu_custom_call.1} parent=59 // pred_check_branch
          %419 = sbr.rel (%p417) target = $region72
        $region71: #{tpu_custom_call.1} parent=59 // pred_region
          %420 = dma.done [#allocation10], 1024
        $region72: #{tpu_custom_call.1} parent=59 // pred_fallthru
          _
        // Predicated region
        $region73: #{tpu_custom_call.1} parent=59 // pred_check
          %p421 = pneg %p195
        $region74: #{tpu_custom_call.1} parent=59 // pred_check_branch
          %423 = sbr.rel (%p421) target = $region76
        $region75: #{tpu_custom_call.1} parent=59 // pred_region
          %424 = dma.done [#allocation13], 2048
        $region76: #{tpu_custom_call.1} parent=59 // pred_fallthru
          _
        // Predicated region
        $region77: #{tpu_custom_call.1} parent=59 // pred_check
          %p425 = pneg %p237
        $region78: #{tpu_custom_call.1} parent=59 // pred_check_branch
          %427 = sbr.rel (%p425) target = $region80
        $region79: #{tpu_custom_call.1} parent=59 // pred_region
          %428 = dma.done [#allocation13], 1024
        $region80: #{tpu_custom_call.1} parent=59 // pred_fallthru
          _
        %s429 = sand.u32 %s56, 1
        %s430 = scalar_lea.sflag [#allocation7], %s429
        %s431 = sand.u32 %s56, 1
        %s432 = smul.addr %s431, 256
        %s433 = scalar_lea.vmem [#allocation6], %s432
        %p434 = pneg %p69
        %p435 = pneg %p66
        %p436 = pneg %p90
        %p437 = pneg %p87
        %p438 = pneg %p111
        %p439 = pneg %p108
        %p440 = pneg %p132
        %p441 = pneg %p129
        %p442 = pneg %p153
        %p443 = pneg %p150
        %p444 = pneg %p174
        %p445 = pneg %p171
        %p446 = pneg %p195
        %p447 = pneg %p192
        %p448 = pneg %p216
        %p449 = pneg %p213
        %p450 = pneg %p237
        %p451 = pneg %p234
        %p452 = pneg %p258
        %p453 = pneg %p255
        %p454 = pneg %p290
        %p455 = pneg %p287
        %s456 = sand.u32 %s277, 1
        %s457 = scalar_lea.sflag [#allocation8], %s456
        %s458 = sand.u32 %s277, 1
        %s459 = smul.addr %s458, 128
        %s460 = scalar_lea.vmem [#allocation15], %s459
        %s461 = smul.u32 %s35, 2
        %s462 = sadd.s32 %s461, %s36
        %s463 = smul.u32 16, %s462
        %p465 = scmp.eq.s32.totalorder %s36, 0
        // Predicated region
        $region81: #{tpu_custom_call.1} parent=59 // pred_check
          %p466 = pneg %p465
        $region82: #{tpu_custom_call.1} parent=59 // pred_check_branch
          %468 = sbr.rel (%p466) target = $region84
        $region83: #{tpu_custom_call.1} parent=59 // pred_region
          loop: start=0, step=1, limit=2
          $region85: #{tpu_custom_call.1} parent=83 // loop_pre_header
            _
          $region86: #{tpu_custom_call.1} parent=83 // loop_header
            %s470 = sphi 0, %s474
            %p471 = scmp.ge.s32.totalorder %s470, 2
            %v475 = vphi 0.0, %v564
          $region87: #{tpu_custom_call.1} parent=83 // loop_header_branch
            %473 = sbr.rel (%p471) target = $region91
          $region88: #{tpu_custom_call.1} parent=83 // loop_body
            %s476 = smul.u32 %s470, 128
            %s477 = scalar_lea.vmem %s408, %s476 [#allocation6]
            %v478 = vld [vmem:[%s477] sm:$0xff]
            %v479 = vld [vmem:[%s477 + $0x8] sm:$0xff]
            %v480 = vld [vmem:[%s477 + $0x10] sm:$0xff]
            %v481 = vld [vmem:[%s477 + $0x18] sm:$0xff]
            %v482 = vld [vmem:[%s477 + $0x20] sm:$0xff]
            %v483 = vld [vmem:[%s477 + $0x28] sm:$0xff]
            %v484 = vld [vmem:[%s477 + $0x30] sm:$0xff]
            %v485 = vld [vmem:[%s477 + $0x38] sm:$0xff]
            %v486 = vld [vmem:[%s477 + $0x40] sm:$0xff]
            %v487 = vld [vmem:[%s477 + $0x48] sm:$0xff]
            %v488 = vld [vmem:[%s477 + $0x50] sm:$0xff]
            %v489 = vld [vmem:[%s477 + $0x58] sm:$0xff]
            %v490 = vld [vmem:[%s477 + $0x60] sm:$0xff]
            %v491 = vld [vmem:[%s477 + $0x68] sm:$0xff]
            %v492 = vld [vmem:[%s477 + $0x70] sm:$0xff]
            %v493 = vld [vmem:[%s477 + $0x78] sm:$0xff]
            %494 = vmatprep.subr.mxu0 0.0
            %495 = vmatpush1.msra.mxu0 %v493
            %496 = vmatprep.subr.mxu0 0.0
            %497 = vmatpush1.msra.mxu0 %v492
            %498 = vmatprep.subr.mxu0 0.0
            %499 = vmatpush1.msra.mxu0 %v491
            %500 = vmatprep.subr.mxu0 0.0
            %501 = vmatpush1.msra.mxu0 %v490
            %502 = vmatprep.subr.mxu0 0.0
            %503 = vmatpush1.msra.mxu0 %v489
            %504 = vmatprep.subr.mxu0 0.0
            %505 = vmatpush1.msra.mxu0 %v488
            %506 = vmatprep.subr.mxu0 0.0
            %507 = vmatpush1.msra.mxu0 %v487
            %508 = vmatprep.subr.mxu0 0.0
            %509 = vmatpush1.msra.mxu0 %v486
            %510 = vmatprep.subr.mxu0 0.0
            %511 = vmatpush1.msra.mxu0 %v485
            %512 = vmatprep.subr.mxu0 0.0
            %513 = vmatpush1.msra.mxu0 %v484
            %514 = vmatprep.subr.mxu0 0.0
            %515 = vmatpush1.msra.mxu0 %v483
            %516 = vmatprep.subr.mxu0 0.0
            %517 = vmatpush1.msra.mxu0 %v482
            %518 = vmatprep.subr.mxu0 0.0
            %519 = vmatpush1.msra.mxu0 %v481
            %520 = vmatprep.subr.mxu0 0.0
            %521 = vmatpush1.msra.mxu0 %v480
            %522 = vmatprep.subr.mxu0 0.0
            %523 = vmatpush1.msra.mxu0 %v479
            %524 = vmatprep.subr.mxu0 0.0
            %525 = vmatpush1.msra.mxu0 %v478
            %526 = vmatprep.subr.mxu0 0.0
            %527 = vmatpush2.msra.mxu0 0.0
            %528 = vmatprep.subr.mxu0 0.0
            %529 = vmatpush2.msra.mxu0 0.0
            %530 = vmatprep.subr.mxu0 0.0
            %531 = vmatpush2.msra.mxu0 0.0
            %532 = vmatprep.subr.mxu0 0.0
            %533 = vmatpush2.msra.mxu0 0.0
            %534 = vmatprep.subr.mxu0 0.0
            %535 = vmatpush2.msra.mxu0 0.0
            %536 = vmatprep.subr.mxu0 0.0
            %537 = vmatpush2.msra.mxu0 0.0
            %538 = vmatprep.subr.mxu0 0.0
            %539 = vmatpush2.msra.mxu0 0.0
            %540 = vmatprep.subr.mxu0 0.0
            %541 = vmatpush2.msra.mxu0 0.0
            %542 = vmatprep.subr.mxu0 0.0
            %543 = vmatpush2.msra.mxu0 0.0
            %544 = vmatprep.subr.mxu0 0.0
            %545 = vmatpush2.msra.mxu0 0.0
            %546 = vmatprep.subr.mxu0 0.0
            %547 = vmatpush2.msra.mxu0 0.0
            %548 = vmatprep.subr.mxu0 0.0
            %549 = vmatpush2.msra.mxu0 0.0
            %550 = vmatprep.subr.mxu0 0.0
            %551 = vmatpush2.msra.mxu0 0.0
            %552 = vmatprep.subr.mxu0 0.0
            %553 = vmatpush2.msra.mxu0 0.0
            %554 = vmatprep.subr.mxu0 0.0
            %555 = vmatpush2.msra.mxu0 0.0
            %556 = vmatprep.subr.mxu0 0.0
            %557 = vmatpush2.msra.mxu0 0.0
            %558 = vmatprep.mubr.f32.mxu0 0.0
            %559 = vmatmul.mubr.f32.gmra.mxu0 1.0
            %v560 = vpop.f32.mrf.mxu0
            %v561 = vadd.f32 0.0, %v560
            %v562 = vpop.f32.mrf.mxu0
            %563 = vdwg.mxu0
            %v564 = vadd.f32 %v475, %v561
          $region89: #{tpu_custom_call.1} parent=83 // loop_footer
            %s474 = sadd.s32 1, %s470
          $region90: #{tpu_custom_call.1} parent=83 // loop_footer_branch
            %469 = sbr.rel target = $region86
          $region91: #{tpu_custom_call.1} parent=83 // loop_exit
            _
          %v565 = vld [vmem:[#allocation9] sm:$0xff]
          %v566 = vld [vmem:[#allocation9 + $0x8] sm:$0xff]
          %v567 = vld [vmem:[#allocation9 + $0x10] sm:$0xff]
          %v568 = vld [vmem:[#allocation9 + $0x18] sm:$0xff]
          %v569 = vld [vmem:[#allocation9 + $0x20] sm:$0xff]
          %v570 = vld [vmem:[#allocation9 + $0x28] sm:$0xff]
          %v571 = vld [vmem:[#allocation9 + $0x30] sm:$0xff]
          %v572 = vld [vmem:[#allocation9 + $0x38] sm:$0xff]
          %v573 = vld [vmem:[#allocation9 + $0x40] sm:$0xff]
          %v574 = vld [vmem:[#allocation9 + $0x48] sm:$0xff]
          %v575 = vld [vmem:[#allocation9 + $0x50] sm:$0xff]
          %v576 = vld [vmem:[#allocation9 + $0x58] sm:$0xff]
          %v577 = vld [vmem:[#allocation9 + $0x60] sm:$0xff]
          %v578 = vld [vmem:[#allocation9 + $0x68] sm:$0xff]
          %v579 = vld [vmem:[#allocation9 + $0x70] sm:$0xff]
          %v580 = vld [vmem:[#allocation9 + $0x78] sm:$0xff]
          %581 = vmatprep.subr.mxu0 0.0
          %582 = vmatpush1.msra.mxu0 %v580
          %583 = vmatprep.subr.mxu0 0.0
          %584 = vmatpush1.msra.mxu0 %v579
          %585 = vmatprep.subr.mxu0 0.0
          %586 = vmatpush1.msra.mxu0 %v578
          %587 = vmatprep.subr.mxu0 0.0
          %588 = vmatpush1.msra.mxu0 %v577
          %589 = vmatprep.subr.mxu0 0.0
          %590 = vmatpush1.msra.mxu0 %v576
          %591 = vmatprep.subr.mxu0 0.0
          %592 = vmatpush1.msra.mxu0 %v575
          %593 = vmatprep.subr.mxu0 0.0
          %594 = vmatpush1.msra.mxu0 %v574
          %595 = vmatprep.subr.mxu0 0.0
          %596 = vmatpush1.msra.mxu0 %v573
          %597 = vmatprep.subr.mxu0 0.0
          %598 = vmatpush1.msra.mxu0 %v572
          %599 = vmatprep.subr.mxu0 0.0
          %600 = vmatpush1.msra.mxu0 %v571
          %601 = vmatprep.subr.mxu0 0.0
          %602 = vmatpush1.msra.mxu0 %v570
          %603 = vmatprep.subr.mxu0 0.0
          %604 = vmatpush1.msra.mxu0 %v569
          %605 = vmatprep.subr.mxu0 0.0
          %606 = vmatpush1.msra.mxu0 %v568
          %607 = vmatprep.subr.mxu0 0.0
          %608 = vmatpush1.msra.mxu0 %v567
          %609 = vmatprep.subr.mxu0 0.0
          %610 = vmatpush1.msra.mxu0 %v566
          %611 = vmatprep.subr.mxu0 0.0
          %612 = vmatpush1.msra.mxu0 %v565
          %613 = vmatprep.subr.mxu0 0.0
          %614 = vmatpush2.msra.mxu0 0.0
          %615 = vmatprep.subr.mxu0 0.0
          %616 = vmatpush2.msra.mxu0 0.0
          %617 = vmatprep.subr.mxu0 0.0
          %618 = vmatpush2.msra.mxu0 0.0
          %619 = vmatprep.subr.mxu0 0.0
          %620 = vmatpush2.msra.mxu0 0.0
          %621 = vmatprep.subr.mxu0 0.0
          %622 = vmatpush2.msra.mxu0 0.0
          %623 = vmatprep.subr.mxu0 0.0
          %624 = vmatpush2.msra.mxu0 0.0
          %625 = vmatprep.subr.mxu0 0.0
          %626 = vmatpush2.msra.mxu0 0.0
          %627 = vmatprep.subr.mxu0 0.0
          %628 = vmatpush2.msra.mxu0 0.0
          %629 = vmatprep.subr.mxu0 0.0
          %630 = vmatpush2.msra.mxu0 0.0
          %631 = vmatprep.subr.mxu0 0.0
          %632 = vmatpush2.msra.mxu0 0.0
          %633 = vmatprep.subr.mxu0 0.0
          %634 = vmatpush2.msra.mxu0 0.0
          %635 = vmatprep.subr.mxu0 0.0
          %636 = vmatpush2.msra.mxu0 0.0
          %637 = vmatprep.subr.mxu0 0.0
          %638 = vmatpush2.msra.mxu0 0.0
          %639 = vmatprep.subr.mxu0 0.0
          %640 = vmatpush2.msra.mxu0 0.0
          %641 = vmatprep.subr.mxu0 0.0
          %642 = vmatpush2.msra.mxu0 0.0
          %643 = vmatprep.subr.mxu0 0.0
          %644 = vmatpush2.msra.mxu0 0.0
          %645 = vmatprep.mubr.f32.mxu0 0.0
          %646 = vmatmul.mubr.f32.gmra.mxu0 %v475
          %v647 = vpop.f32.mrf.mxu0
          %v648 = vadd.f32 0.0, %v647
          %v649 = vpop.f32.mrf.mxu0
          %650 = vdwg.mxu0
          %v651 = vmul.f32 %v648, 0.0009765625
          loop: start=0, step=1, limit=2
          $region92: #{tpu_custom_call.1} parent=83 // loop_pre_header
            _
          $region93: #{tpu_custom_call.1} parent=83 // loop_header
            %s653 = sphi 0, %s657
            %p654 = scmp.ge.s32.totalorder %s653, 2
            %v658 = vphi 0.0, %v783
          $region94: #{tpu_custom_call.1} parent=83 // loop_header_branch
            %656 = sbr.rel (%p654) target = $region98
          $region95: #{tpu_custom_call.1} parent=83 // loop_body
            %s659 = smul.u32 %s653, 128
            %s660 = scalar_lea.vmem %s408, %s659 [#allocation6]
            %v661 = vld [vmem:[%s660] sm:$0xff]
            %v662 = vld [vmem:[%s660 + $0x8] sm:$0xff]
            %v663 = vld [vmem:[%s660 + $0x10] sm:$0xff]
            %v664 = vld [vmem:[%s660 + $0x18] sm:$0xff]
            %v665 = vld [vmem:[%s660 + $0x20] sm:$0xff]
            %v666 = vld [vmem:[%s660 + $0x28] sm:$0xff]
            %v667 = vld [vmem:[%s660 + $0x30] sm:$0xff]
            %v668 = vld [vmem:[%s660 + $0x38] sm:$0xff]
            %v669 = vld [vmem:[%s660 + $0x40] sm:$0xff]
            %v670 = vld [vmem:[%s660 + $0x48] sm:$0xff]
            %v671 = vld [vmem:[%s660 + $0x50] sm:$0xff]
            %v672 = vld [vmem:[%s660 + $0x58] sm:$0xff]
            %v673 = vld [vmem:[%s660 + $0x60] sm:$0xff]
            %v674 = vld [vmem:[%s660 + $0x68] sm:$0xff]
            %v675 = vld [vmem:[%s660 + $0x70] sm:$0xff]
            %v676 = vld [vmem:[%s660 + $0x78] sm:$0xff]
            %v677 = vlaneseq
            %v678 = vshrl.u32 %v677, 7
            %v679 = vsub.s32 0, %v678
            %v680 = vrot.slane %v651, %v679
            %v681 = vsub.f32 %v661, %v680
            %v682 = vsub.f32 %v662, %v680
            %v683 = vsub.f32 %v663, %v680
            %v684 = vsub.f32 %v664, %v680
            %v685 = vsub.f32 %v665, %v680
            %v686 = vsub.f32 %v666, %v680
            %v687 = vsub.f32 %v667, %v680
            %v688 = vsub.f32 %v668, %v680
            %v689 = vsub.f32 %v669, %v680
            %v690 = vsub.f32 %v670, %v680
            %v691 = vsub.f32 %v671, %v680
            %v692 = vsub.f32 %v672, %v680
            %v693 = vsub.f32 %v673, %v680
            %v694 = vsub.f32 %v674, %v680
            %v695 = vsub.f32 %v675, %v680
            %v696 = vsub.f32 %v676, %v680
            %v697 = vmul.f32 %v681, %v681
            %v698 = vmul.f32 %v682, %v682
            %v699 = vmul.f32 %v683, %v683
            %v700 = vmul.f32 %v684, %v684
            %v701 = vmul.f32 %v685, %v685
            %v702 = vmul.f32 %v686, %v686
            %v703 = vmul.f32 %v687, %v687
            %v704 = vmul.f32 %v688, %v688
            %v705 = vmul.f32 %v689, %v689
            %v706 = vmul.f32 %v690, %v690
            %v707 = vmul.f32 %v691, %v691
            %v708 = vmul.f32 %v692, %v692
            %v709 = vmul.f32 %v693, %v693
            %v710 = vmul.f32 %v694, %v694
            %v711 = vmul.f32 %v695, %v695
            %v712 = vmul.f32 %v696, %v696
            %713 = vmatprep.subr.mxu0 0.0
            %714 = vmatpush1.msra.mxu0 %v712
            %715 = vmatprep.subr.mxu0 0.0
            %716 = vmatpush1.msra.mxu0 %v711
            %717 = vmatprep.subr.mxu0 0.0
            %718 = vmatpush1.msra.mxu0 %v710
            %719 = vmatprep.subr.mxu0 0.0
            %720 = vmatpush1.msra.mxu0 %v709
            %721 = vmatprep.subr.mxu0 0.0
            %722 = vmatpush1.msra.mxu0 %v708
            %723 = vmatprep.subr.mxu0 0.0
            %724 = vmatpush1.msra.mxu0 %v707
            %725 = vmatprep.subr.mxu0 0.0
            %726 = vmatpush1.msra.mxu0 %v706
            %727 = vmatprep.subr.mxu0 0.0
            %728 = vmatpush1.msra.mxu0 %v705
            %729 = vmatprep.subr.mxu0 0.0
            %730 = vmatpush1.msra.mxu0 %v704
            %731 = vmatprep.subr.mxu0 0.0
            %732 = vmatpush1.msra.mxu0 %v703
            %733 = vmatprep.subr.mxu0 0.0
            %734 = vmatpush1.msra.mxu0 %v702
            %735 = vmatprep.subr.mxu0 0.0
            %736 = vmatpush1.msra.mxu0 %v701
            %737 = vmatprep.subr.mxu0 0.0
            %738 = vmatpush1.msra.mxu0 %v700
            %739 = vmatprep.subr.mxu0 0.0
            %740 = vmatpush1.msra.mxu0 %v699
            %741 = vmatprep.subr.mxu0 0.0
            %742 = vmatpush1.msra.mxu0 %v698
            %743 = vmatprep.subr.mxu0 0.0
            %744 = vmatpush1.msra.mxu0 %v697
            %745 = vmatprep.subr.mxu0 0.0
            %746 = vmatpush2.msra.mxu0 0.0
            %747 = vmatprep.subr.mxu0 0.0
            %748 = vmatpush2.msra.mxu0 0.0
            %749 = vmatprep.subr.mxu0 0.0
            %750 = vmatpush2.msra.mxu0 0.0
            %751 = vmatprep.subr.mxu0 0.0
            %752 = vmatpush2.msra.mxu0 0.0
            %753 = vmatprep.subr.mxu0 0.0
            %754 = vmatpush2.msra.mxu0 0.0
            %755 = vmatprep.subr.mxu0 0.0
            %756 = vmatpush2.msra.mxu0 0.0
            %757 = vmatprep.subr.mxu0 0.0
            %758 = vmatpush2.msra.mxu0 0.0
            %759 = vmatprep.subr.mxu0 0.0
            %760 = vmatpush2.msra.mxu0 0.0
            %761 = vmatprep.subr.mxu0 0.0
            %762 = vmatpush2.msra.mxu0 0.0
            %763 = vmatprep.subr.mxu0 0.0
            %764 = vmatpush2.msra.mxu0 0.0
            %765 = vmatprep.subr.mxu0 0.0
            %766 = vmatpush2.msra.mxu0 0.0
            %767 = vmatprep.subr.mxu0 0.0
            %768 = vmatpush2.msra.mxu0 0.0
            %769 = vmatprep.subr.mxu0 0.0
            %770 = vmatpush2.msra.mxu0 0.0
            %771 = vmatprep.subr.mxu0 0.0
            %772 = vmatpush2.msra.mxu0 0.0
            %773 = vmatprep.subr.mxu0 0.0
            %774 = vmatpush2.msra.mxu0 0.0
            %775 = vmatprep.subr.mxu0 0.0
            %776 = vmatpush2.msra.mxu0 0.0
            %777 = vmatprep.mubr.f32.mxu0 0.0
            %778 = vmatmul.mubr.f32.gmra.mxu0 1.0
            %v779 = vpop.f32.mrf.mxu0
            %v780 = vadd.f32 0.0, %v779
            %v781 = vpop.f32.mrf.mxu0
            %782 = vdwg.mxu0
            %v783 = vadd.f32 %v658, %v780
          $region96: #{tpu_custom_call.1} parent=83 // loop_footer
            %s657 = sadd.s32 1, %s653
          $region97: #{tpu_custom_call.1} parent=83 // loop_footer_branch
            %652 = sbr.rel target = $region93
          $region98: #{tpu_custom_call.1} parent=83 // loop_exit
            _
          %784 = vmatprep.subr.mxu0 0.0
          %785 = vmatpush1.msra.mxu0 %v580
          %786 = vmatprep.subr.mxu0 0.0
          %787 = vmatpush1.msra.mxu0 %v579
          %788 = vmatprep.subr.mxu0 0.0
          %789 = vmatpush1.msra.mxu0 %v578
          %790 = vmatprep.subr.mxu0 0.0
          %791 = vmatpush1.msra.mxu0 %v577
          %792 = vmatprep.subr.mxu0 0.0
          %793 = vmatpush1.msra.mxu0 %v576
          %794 = vmatprep.subr.mxu0 0.0
          %795 = vmatpush1.msra.mxu0 %v575
          %796 = vmatprep.subr.mxu0 0.0
          %797 = vmatpush1.msra.mxu0 %v574
          %798 = vmatprep.subr.mxu0 0.0
          %799 = vmatpush1.msra.mxu0 %v573
          %800 = vmatprep.subr.mxu0 0.0
          %801 = vmatpush1.msra.mxu0 %v572
          %802 = vmatprep.subr.mxu0 0.0
          %803 = vmatpush1.msra.mxu0 %v571
          %804 = vmatprep.subr.mxu0 0.0
          %805 = vmatpush1.msra.mxu0 %v570
          %806 = vmatprep.subr.mxu0 0.0
          %807 = vmatpush1.msra.mxu0 %v569
          %808 = vmatprep.subr.mxu0 0.0
          %809 = vmatpush1.msra.mxu0 %v568
          %810 = vmatprep.subr.mxu0 0.0
          %811 = vmatpush1.msra.mxu0 %v567
          %812 = vmatprep.subr.mxu0 0.0
          %813 = vmatpush1.msra.mxu0 %v566
          %814 = vmatprep.subr.mxu0 0.0
          %815 = vmatpush1.msra.mxu0 %v565
          %816 = vmatprep.subr.mxu0 0.0
          %817 = vmatpush2.msra.mxu0 0.0
          %818 = vmatprep.subr.mxu0 0.0
          %819 = vmatpush2.msra.mxu0 0.0
          %820 = vmatprep.subr.mxu0 0.0
          %821 = vmatpush2.msra.mxu0 0.0
          %822 = vmatprep.subr.mxu0 0.0
          %823 = vmatpush2.msra.mxu0 0.0
          %824 = vmatprep.subr.mxu0 0.0
          %825 = vmatpush2.msra.mxu0 0.0
          %826 = vmatprep.subr.mxu0 0.0
          %827 = vmatpush2.msra.mxu0 0.0
          %828 = vmatprep.subr.mxu0 0.0
          %829 = vmatpush2.msra.mxu0 0.0
          %830 = vmatprep.subr.mxu0 0.0
          %831 = vmatpush2.msra.mxu0 0.0
          %832 = vmatprep.subr.mxu0 0.0
          %833 = vmatpush2.msra.mxu0 0.0
          %834 = vmatprep.subr.mxu0 0.0
          %835 = vmatpush2.msra.mxu0 0.0
          %836 = vmatprep.subr.mxu0 0.0
          %837 = vmatpush2.msra.mxu0 0.0
          %838 = vmatprep.subr.mxu0 0.0
          %839 = vmatpush2.msra.mxu0 0.0
          %840 = vmatprep.subr.mxu0 0.0
          %841 = vmatpush2.msra.mxu0 0.0
          %842 = vmatprep.subr.mxu0 0.0
          %843 = vmatpush2.msra.mxu0 0.0
          %844 = vmatprep.subr.mxu0 0.0
          %845 = vmatpush2.msra.mxu0 0.0
          %846 = vmatprep.subr.mxu0 0.0
          %847 = vmatpush2.msra.mxu0 0.0
          %848 = vmatprep.mubr.f32.mxu0 0.0
          %849 = vmatmul.mubr.f32.gmra.mxu0 %v658
          %v850 = vpop.f32.mrf.mxu0
          %v851 = vadd.f32 0.0, %v850
          %v852 = vpop.f32.mrf.mxu0
          %853 = vdwg.mxu0
          %v854 = vmul.f32 %v851, 0.0009765625
          %v855 = vadd.f32 %v854, 1e-05
          %v856 = vrsqrt.pop %v855
          %v857 = vld [vmem:[%s2] sm:$0x1]
          %v858 = vmul.f32 %v856, %v857
          %v859 = vld [vmem:[%s3] sm:$0x1]
          %v860 = vmul.f32 %v651, %v858
          %v861 = vsub.f32 %v859, %v860
          %862 = vst [vmem:[#allocation4] sm:$0x1] %v858
          %863 = vst [vmem:[#allocation5] sm:$0x1] %v861
          %v864 = vld [vmem:[%s7] sm:$0x1]
          loop: start=0, step=1, limit=2
          $region99: #{tpu_custom_call.1} parent=83 // loop_pre_header
            _
          $region100: #{tpu_custom_call.1} parent=83 // loop_header
            %s866 = sphi 0, %s870
            %p867 = scmp.ge.s32.totalorder %s866, 2
          $region101: #{tpu_custom_call.1} parent=83 // loop_header_branch
            %869 = sbr.rel (%p867) target = $region105
          $region102: #{tpu_custom_call.1} parent=83 // loop_body
            %s871 = smul.u32 %s866, 128
            %s872 = scalar_lea.vmem %s408, %s871 [#allocation6]
            %v873 = vld [vmem:[%s872] sm:$0xff]
            %v874 = vld [vmem:[%s872 + $0x8] sm:$0xff]
            %v875 = vld [vmem:[%s872 + $0x10] sm:$0xff]
            %v876 = vld [vmem:[%s872 + $0x18] sm:$0xff]
            %v877 = vld [vmem:[%s872 + $0x20] sm:$0xff]
            %v878 = vld [vmem:[%s872 + $0x28] sm:$0xff]
            %v879 = vld [vmem:[%s872 + $0x30] sm:$0xff]
            %v880 = vld [vmem:[%s872 + $0x38] sm:$0xff]
            %v881 = vld [vmem:[%s872 + $0x40] sm:$0xff]
            %v882 = vld [vmem:[%s872 + $0x48] sm:$0xff]
            %v883 = vld [vmem:[%s872 + $0x50] sm:$0xff]
            %v884 = vld [vmem:[%s872 + $0x58] sm:$0xff]
            %v885 = vld [vmem:[%s872 + $0x60] sm:$0xff]
            %v886 = vld [vmem:[%s872 + $0x68] sm:$0xff]
            %v887 = vld [vmem:[%s872 + $0x70] sm:$0xff]
            %v888 = vld [vmem:[%s872 + $0x78] sm:$0xff]
            %v889 = vlaneseq
            %v890 = vshrl.u32 %v889, 7
            %v891 = vsub.s32 0, %v890
            %v892 = vrot.slane %v858, %v891
            %v893 = vmul.f32 %v873, %v892
            %v894 = vmul.f32 %v874, %v892
            %v895 = vmul.f32 %v875, %v892
            %v896 = vmul.f32 %v876, %v892
            %v897 = vmul.f32 %v877, %v892
            %v898 = vmul.f32 %v878, %v892
            %v899 = vmul.f32 %v879, %v892
            %v900 = vmul.f32 %v880, %v892
            %v901 = vmul.f32 %v881, %v892
            %v902 = vmul.f32 %v882, %v892
            %v903 = vmul.f32 %v883, %v892
            %v904 = vmul.f32 %v884, %v892
            %v905 = vmul.f32 %v885, %v892
            %v906 = vmul.f32 %v886, %v892
            %v907 = vmul.f32 %v887, %v892
            %v908 = vmul.f32 %v888, %v892
            %v910 = vlaneseq
            %v911 = vshrl.u32 %v910, 7
            %v912 = vsub.s32 0, %v911
            %v913 = vrot.slane %v861, %v912
            %v915 = vadd.f32 %v893, %v913
            %v916 = vadd.f32 %v894, %v913
            %v917 = vadd.f32 %v895, %v913
            %v918 = vadd.f32 %v896, %v913
            %v919 = vadd.f32 %v897, %v913
            %v920 = vadd.f32 %v898, %v913
            %v921 = vadd.f32 %v899, %v913
            %v922 = vadd.f32 %v900, %v913
            %v923 = vadd.f32 %v901, %v913
            %v924 = vadd.f32 %v902, %v913
            %v925 = vadd.f32 %v903, %v913
            %v926 = vadd.f32 %v904, %v913
            %v927 = vadd.f32 %v905, %v913
            %v928 = vadd.f32 %v906, %v913
            %v929 = vadd.f32 %v907, %v913
            %v930 = vadd.f32 %v908, %v913
            %v931 = vpack.c.bf16 %v916, %v915
            %v932 = vpack.c.bf16 %v918, %v917
            %v933 = vpack.c.bf16 %v920, %v919
            %v934 = vpack.c.bf16 %v922, %v921
            %v935 = vpack.c.bf16 %v924, %v923
            %v936 = vpack.c.bf16 %v926, %v925
            %v937 = vpack.c.bf16 %v928, %v927
            %v938 = vpack.c.bf16 %v930, %v929
            %v939 = vld [vmem:[#allocation12] sm:$0xff]
            %v940 = vld [vmem:[#allocation12 + $0x8] sm:$0xff]
            %v941 = vld [vmem:[#allocation12 + $0x10] sm:$0xff]
            %v942 = vld [vmem:[#allocation12 + $0x18] sm:$0xff]
            %v943 = vld [vmem:[#allocation12 + $0x20] sm:$0xff]
            %v944 = vld [vmem:[#allocation12 + $0x28] sm:$0xff]
            %v945 = vld [vmem:[#allocation12 + $0x30] sm:$0xff]
            %v946 = vld [vmem:[#allocation12 + $0x38] sm:$0xff]
            %v947 = vld [vmem:[#allocation12 + $0x40] sm:$0xff]
            %v948 = vld [vmem:[#allocation12 + $0x48] sm:$0xff]
            %v949 = vld [vmem:[#allocation12 + $0x50] sm:$0xff]
            %v950 = vld [vmem:[#allocation12 + $0x58] sm:$0xff]
            %v951 = vld [vmem:[#allocation12 + $0x60] sm:$0xff]
            %v952 = vld [vmem:[#allocation12 + $0x68] sm:$0xff]
            %v953 = vld [vmem:[#allocation12 + $0x70] sm:$0xff]
            %v954 = vld [vmem:[#allocation12 + $0x78] sm:$0xff]
            %v971 = vunpack.c.l.b16 %v939
            %v972 = vunpack.c.h.b16 %v939
            %v973 = vunpack.c.l.b16 %v940
            %v974 = vunpack.c.h.b16 %v940
            %v975 = vunpack.c.l.b16 %v941
            %v976 = vunpack.c.h.b16 %v941
            %v977 = vunpack.c.l.b16 %v942
            %v978 = vunpack.c.h.b16 %v942
            %v979 = vunpack.c.l.b16 %v943
            %v980 = vunpack.c.h.b16 %v943
            %v981 = vunpack.c.l.b16 %v944
            %v982 = vunpack.c.h.b16 %v944
            %v983 = vunpack.c.l.b16 %v945
            %v984 = vunpack.c.h.b16 %v945
            %v985 = vunpack.c.l.b16 %v946
            %v986 = vunpack.c.h.b16 %v946
            %v987 = vunpack.c.l.b16 %v947
            %v988 = vunpack.c.h.b16 %v947
            %v989 = vunpack.c.l.b16 %v948
            %v990 = vunpack.c.h.b16 %v948
            %v991 = vunpack.c.l.b16 %v949
            %v992 = vunpack.c.h.b16 %v949
            %v993 = vunpack.c.l.b16 %v950
            %v994 = vunpack.c.h.b16 %v950
            %v995 = vunpack.c.l.b16 %v951
            %v996 = vunpack.c.h.b16 %v951
            %v997 = vunpack.c.l.b16 %v952
            %v998 = vunpack.c.h.b16 %v952
            %v999 = vunpack.c.l.b16 %v953
            %v1000 = vunpack.c.h.b16 %v953
            %v1001 = vunpack.c.l.b16 %v954
            %v1002 = vunpack.c.h.b16 %v954
            %v1003 = vpack.c.b16 %v973, %v971
            %v1004 = vpack.c.b16 %v974, %v972
            %v1005 = vpack.c.b16 %v977, %v975
            %v1006 = vpack.c.b16 %v978, %v976
            %v1007 = vpack.c.b16 %v981, %v979
            %v1008 = vpack.c.b16 %v982, %v980
            %v1009 = vpack.c.b16 %v985, %v983
            %v1010 = vpack.c.b16 %v986, %v984
            %v1011 = vpack.c.b16 %v989, %v987
            %v1012 = vpack.c.b16 %v990, %v988
            %v1013 = vpack.c.b16 %v993, %v991
            %v1014 = vpack.c.b16 %v994, %v992
            %v1015 = vpack.c.b16 %v997, %v995
            %v1016 = vpack.c.b16 %v998, %v996
            %v1017 = vpack.c.b16 %v1001, %v999
            %v1018 = vpack.c.b16 %v1002, %v1000
            %1035 = vmatprep.subr.bf16.mxu0 %v1018
            %1036 = vmatpush1.bf16.msra.mxu0 %v1017
            %1037 = vmatprep.subr.bf16.mxu0 %v1016
            %1038 = vmatpush1.bf16.msra.mxu0 %v1015
            %1039 = vmatprep.subr.bf16.mxu0 %v1014
            %1040 = vmatpush1.bf16.msra.mxu0 %v1013
            %1041 = vmatprep.subr.bf16.mxu0 %v1012
            %1042 = vmatpush1.bf16.msra.mxu0 %v1011
            %1043 = vmatprep.subr.bf16.mxu0 %v1010
            %1044 = vmatpush1.bf16.msra.mxu0 %v1009
            %1045 = vmatprep.subr.bf16.mxu0 %v1008
            %1046 = vmatpush1.bf16.msra.mxu0 %v1007
            %1047 = vmatprep.subr.bf16.mxu0 %v1006
            %1048 = vmatpush1.bf16.msra.mxu0 %v1005
            %1049 = vmatprep.subr.bf16.mxu0 %v1004
            %1050 = vmatpush1.bf16.msra.mxu0 %v1003
            %1051 = vmatprep.subr.bf16.mxu0 0
            %1052 = vmatpush2.bf16.msra.mxu0 0
            %1053 = vmatprep.subr.bf16.mxu0 0
            %1054 = vmatpush2.bf16.msra.mxu0 0
            %1055 = vmatprep.subr.bf16.mxu0 0
            %1056 = vmatpush2.bf16.msra.mxu0 0
            %1057 = vmatprep.subr.bf16.mxu0 0
            %1058 = vmatpush2.bf16.msra.mxu0 0
            %1059 = vmatprep.subr.bf16.mxu0 0
            %1060 = vmatpush2.bf16.msra.mxu0 0
            %1061 = vmatprep.subr.bf16.mxu0 0
            %1062 = vmatpush2.bf16.msra.mxu0 0
            %1063 = vmatprep.subr.bf16.mxu0 0
            %1064 = vmatpush2.bf16.msra.mxu0 0
            %1065 = vmatprep.subr.bf16.mxu0 0
            %1066 = vmatpush2.bf16.msra.mxu0 0
            %1067 = vmatprep.mubr.bf16.mxu0 0
            %1068 = vmatmul.mubr.bf16.gmra.mxu0 %v931
            %v1069 = vpop.f32.mrf.mxu0
            %v1070 = vadd.f32 0.0, %v1069
            %v1071 = vpop.f32.mrf.mxu0
            %v1072 = vadd.f32 0.0, %v1071
            %v1073 = vpop.f32.mrf.mxu0
            %v1074 = vadd.f32 0.0, %v1073
            %v1075 = vpop.f32.mrf.mxu0
            %v1076 = vadd.f32 0.0, %v1075
            %1077 = vmatprep.mubr.bf16.mxu0 0
            %1078 = vmatmul.mubr.bf16.gmra.mxu0 %v932
            %v1079 = vpop.f32.mrf.mxu0
            %v1080 = vadd.f32 0.0, %v1079
            %v1081 = vpop.f32.mrf.mxu0
            %v1082 = vadd.f32 0.0, %v1081
            %v1083 = vpop.f32.mrf.mxu0
            %v1084 = vadd.f32 0.0, %v1083
            %v1085 = vpop.f32.mrf.mxu0
            %v1086 = vadd.f32 0.0, %v1085
            %1087 = vmatprep.mubr.bf16.mxu0 0
            %1088 = vmatmul.mubr.bf16.gmra.mxu0 %v933
            %v1089 = vpop.f32.mrf.mxu0
            %v1090 = vadd.f32 0.0, %v1089
            %v1091 = vpop.f32.mrf.mxu0
            %v1092 = vadd.f32 0.0, %v1091
            %v1093 = vpop.f32.mrf.mxu0
            %v1094 = vadd.f32 0.0, %v1093
            %v1095 = vpop.f32.mrf.mxu0
            %v1096 = vadd.f32 0.0, %v1095
            %1097 = vmatprep.mubr.bf16.mxu0 0
            %1098 = vmatmul.mubr.bf16.gmra.mxu0 %v934
            %v1099 = vpop.f32.mrf.mxu0
            %v1100 = vadd.f32 0.0, %v1099
            %v1101 = vpop.f32.mrf.mxu0
            %v1102 = vadd.f32 0.0, %v1101
            %v1103 = vpop.f32.mrf.mxu0
            %v1104 = vadd.f32 0.0, %v1103
            %v1105 = vpop.f32.mrf.mxu0
            %v1106 = vadd.f32 0.0, %v1105
            %1107 = vmatprep.mubr.bf16.mxu0 0
            %1108 = vmatmul.mubr.bf16.gmra.mxu0 %v935
            %v1109 = vpop.f32.mrf.mxu0
            %v1110 = vadd.f32 0.0, %v1109
            %v1111 = vpop.f32.mrf.mxu0
            %v1112 = vadd.f32 0.0, %v1111
            %v1113 = vpop.f32.mrf.mxu0
            %v1114 = vadd.f32 0.0, %v1113
            %v1115 = vpop.f32.mrf.mxu0
            %v1116 = vadd.f32 0.0, %v1115
            %1117 = vmatprep.mubr.bf16.mxu0 0
            %1118 = vmatmul.mubr.bf16.gmra.mxu0 %v936
            %v1119 = vpop.f32.mrf.mxu0
            %v1120 = vadd.f32 0.0, %v1119
            %v1121 = vpop.f32.mrf.mxu0
            %v1122 = vadd.f32 0.0, %v1121
            %v1123 = vpop.f32.mrf.mxu0
            %v1124 = vadd.f32 0.0, %v1123
            %v1125 = vpop.f32.mrf.mxu0
            %v1126 = vadd.f32 0.0, %v1125
            %1127 = vmatprep.mubr.bf16.mxu0 0
            %1128 = vmatmul.mubr.bf16.gmra.mxu0 %v937
            %v1129 = vpop.f32.mrf.mxu0
            %v1130 = vadd.f32 0.0, %v1129
            %v1131 = vpop.f32.mrf.mxu0
            %v1132 = vadd.f32 0.0, %v1131
            %v1133 = vpop.f32.mrf.mxu0
            %v1134 = vadd.f32 0.0, %v1133
            %v1135 = vpop.f32.mrf.mxu0
            %v1136 = vadd.f32 0.0, %v1135
            %1137 = vmatprep.mubr.bf16.mxu0 0
            %1138 = vmatmul.mubr.bf16.gmra.mxu0 %v938
            %v1139 = vpop.f32.mrf.mxu0
            %v1140 = vadd.f32 0.0, %v1139
            %v1141 = vpop.f32.mrf.mxu0
            %v1142 = vadd.f32 0.0, %v1141
            %v1143 = vpop.f32.mrf.mxu0
            %v1144 = vadd.f32 0.0, %v1143
            %v1145 = vpop.f32.mrf.mxu0
            %v1146 = vadd.f32 0.0, %v1145
            %1147 = vdwg.mxu0
            %v1148 = vpack.c.bf16 %v1074, %v1070
            %v1149 = vpack.c.bf16 %v1084, %v1080
            %v1150 = vpack.c.bf16 %v1094, %v1090
            %v1151 = vpack.c.bf16 %v1104, %v1100
            %v1152 = vpack.c.bf16 %v1114, %v1110
            %v1153 = vpack.c.bf16 %v1124, %v1120
            %v1154 = vpack.c.bf16 %v1134, %v1130
            %v1155 = vpack.c.bf16 %v1144, %v1140
            %v1164 = vunpack.c.l.b16 %v1148
            %v1165 = vunpack.c.h.b16 %v1148
            %v1166 = vunpack.c.l.b16 %v1149
            %v1167 = vunpack.c.h.b16 %v1149
            %v1168 = vunpack.c.l.b16 %v1150
            %v1169 = vunpack.c.h.b16 %v1150
            %v1170 = vunpack.c.l.b16 %v1151
            %v1171 = vunpack.c.h.b16 %v1151
            %v1172 = vunpack.c.l.b16 %v1152
            %v1173 = vunpack.c.h.b16 %v1152
            %v1174 = vunpack.c.l.b16 %v1153
            %v1175 = vunpack.c.h.b16 %v1153
            %v1176 = vunpack.c.l.b16 %v1154
            %v1177 = vunpack.c.h.b16 %v1154
            %v1178 = vunpack.c.l.b16 %v1155
            %v1179 = vunpack.c.h.b16 %v1155
            %v1180 = vpack.c.b16 %v1164, %v1164
            %v1181 = vpack.c.b16 %v1165, %v1165
            %v1182 = vpack.c.b16 %v1166, %v1166
            %v1183 = vpack.c.b16 %v1167, %v1167
            %v1184 = vpack.c.b16 %v1168, %v1168
            %v1185 = vpack.c.b16 %v1169, %v1169
            %v1186 = vpack.c.b16 %v1170, %v1170
            %v1187 = vpack.c.b16 %v1171, %v1171
            %v1188 = vpack.c.b16 %v1172, %v1172
            %v1189 = vpack.c.b16 %v1173, %v1173
            %v1190 = vpack.c.b16 %v1174, %v1174
            %v1191 = vpack.c.b16 %v1175, %v1175
            %v1192 = vpack.c.b16 %v1176, %v1176
            %v1193 = vpack.c.b16 %v1177, %v1177
            %v1194 = vpack.c.b16 %v1178, %v1178
            %v1195 = vpack.c.b16 %v1179, %v1179
            %s1212 = sshra.s32 %s871, 3
            %s1213 = sand.u32 %s871, 7
            %s1214 = smul.addr %s1212, 4
            %s1215 = scalar_lea.vmem [#allocation2], %s1214
            %1216 = vst [vmem:[%s1215] sm:$0xf] %v1180
            %1217 = vst [vmem:[%s1215 + $0x4] sm:$0xf] %v1181
            %1218 = vst [vmem:[%s1215 + $0x8] sm:$0xf] %v1182
            %1219 = vst [vmem:[%s1215 + $0xc] sm:$0xf] %v1183
            %1220 = vst [vmem:[%s1215 + $0x10] sm:$0xf] %v1184
            %1221 = vst [vmem:[%s1215 + $0x14] sm:$0xf] %v1185
            %1222 = vst [vmem:[%s1215 + $0x18] sm:$0xf] %v1186
            %1223 = vst [vmem:[%s1215 + $0x1c] sm:$0xf] %v1187
            %1224 = vst [vmem:[%s1215 + $0x20] sm:$0xf] %v1188
            %1225 = vst [vmem:[%s1215 + $0x24] sm:$0xf] %v1189
            %1226 = vst [vmem:[%s1215 + $0x28] sm:$0xf] %v1190
            %1227 = vst [vmem:[%s1215 + $0x2c] sm:$0xf] %v1191
            %1228 = vst [vmem:[%s1215 + $0x30] sm:$0xf] %v1192
            %1229 = vst [vmem:[%s1215 + $0x34] sm:$0xf] %v1193
            %1230 = vst [vmem:[%s1215 + $0x38] sm:$0xf] %v1194
            %1231 = vst [vmem:[%s1215 + $0x3c] sm:$0xf] %v1195
            %v1233 = vlaneseq
            %v1234 = vshrl.u32 %v1233, 7
            %v1235 = vsub.s32 0, %v1234
            %v1236 = vrot.slane %v864, %v1235
            %v1238 = vadd.f32 %v1072, %v1236
            %v1239 = vadd.f32 %v1076, %v1236
            %v1240 = vadd.f32 %v1082, %v1236
            %v1241 = vadd.f32 %v1086, %v1236
            %v1242 = vadd.f32 %v1092, %v1236
            %v1243 = vadd.f32 %v1096, %v1236
            %v1244 = vadd.f32 %v1102, %v1236
            %v1245 = vadd.f32 %v1106, %v1236
            %v1246 = vadd.f32 %v1112, %v1236
            %v1247 = vadd.f32 %v1116, %v1236
            %v1248 = vadd.f32 %v1122, %v1236
            %v1249 = vadd.f32 %v1126, %v1236
            %v1250 = vadd.f32 %v1132, %v1236
            %v1251 = vadd.f32 %v1136, %v1236
            %v1252 = vadd.f32 %v1142, %v1236
            %v1253 = vadd.f32 %v1146, %v1236
            %v1254 = vpack.c.bf16 %v1239, %v1238
            %v1255 = vpack.c.bf16 %v1241, %v1240
            %v1256 = vpack.c.bf16 %v1243, %v1242
            %v1257 = vpack.c.bf16 %v1245, %v1244
            %v1258 = vpack.c.bf16 %v1247, %v1246
            %v1259 = vpack.c.bf16 %v1249, %v1248
            %v1260 = vpack.c.bf16 %v1251, %v1250
            %v1261 = vpack.c.bf16 %v1253, %v1252
            %v1270 = vunpack.c.l.b16 %v1254
            %v1271 = vunpack.c.h.b16 %v1254
            %v1272 = vunpack.c.l.b16 %v1255
            %v1273 = vunpack.c.h.b16 %v1255
            %v1274 = vunpack.c.l.b16 %v1256
            %v1275 = vunpack.c.h.b16 %v1256
            %v1276 = vunpack.c.l.b16 %v1257
            %v1277 = vunpack.c.h.b16 %v1257
            %v1278 = vunpack.c.l.b16 %v1258
            %v1279 = vunpack.c.h.b16 %v1258
            %v1280 = vunpack.c.l.b16 %v1259
            %v1281 = vunpack.c.h.b16 %v1259
            %v1282 = vunpack.c.l.b16 %v1260
            %v1283 = vunpack.c.h.b16 %v1260
            %v1284 = vunpack.c.l.b16 %v1261
            %v1285 = vunpack.c.h.b16 %v1261
            %v1286 = vpack.c.b16 %v1270, %v1270
            %v1287 = vpack.c.b16 %v1271, %v1271
            %v1288 = vpack.c.b16 %v1272, %v1272
            %v1289 = vpack.c.b16 %v1273, %v1273
            %v1290 = vpack.c.b16 %v1274, %v1274
            %v1291 = vpack.c.b16 %v1275, %v1275
            %v1292 = vpack.c.b16 %v1276, %v1276
            %v1293 = vpack.c.b16 %v1277, %v1277
            %v1294 = vpack.c.b16 %v1278, %v1278
            %v1295 = vpack.c.b16 %v1279, %v1279
            %v1296 = vpack.c.b16 %v1280, %v1280
            %v1297 = vpack.c.b16 %v1281, %v1281
            %v1298 = vpack.c.b16 %v1282, %v1282
            %v1299 = vpack.c.b16 %v1283, %v1283
            %v1300 = vpack.c.b16 %v1284, %v1284
            %v1301 = vpack.c.b16 %v1285, %v1285
            %s1318 = smul.addr %s1212, 4
            %s1319 = scalar_lea.vmem [#allocation3], %s1318
            %1320 = vst [vmem:[%s1319] sm:$0xf] %v1286
            %1321 = vst [vmem:[%s1319 + $0x4] sm:$0xf] %v1287
            %1322 = vst [vmem:[%s1319 + $0x8] sm:$0xf] %v1288
            %1323 = vst [vmem:[%s1319 + $0xc] sm:$0xf] %v1289
            %1324 = vst [vmem:[%s1319 + $0x10] sm:$0xf] %v1290
            %1325 = vst [vmem:[%s1319 + $0x14] sm:$0xf] %v1291
            %1326 = vst [vmem:[%s1319 + $0x18] sm:$0xf] %v1292
            %1327 = vst [vmem:[%s1319 + $0x1c] sm:$0xf] %v1293
            %1328 = vst [vmem:[%s1319 + $0x20] sm:$0xf] %v1294
            %1329 = vst [vmem:[%s1319 + $0x24] sm:$0xf] %v1295
            %1330 = vst [vmem:[%s1319 + $0x28] sm:$0xf] %v1296
            %1331 = vst [vmem:[%s1319 + $0x2c] sm:$0xf] %v1297
            %1332 = vst [vmem:[%s1319 + $0x30] sm:$0xf] %v1298
            %1333 = vst [vmem:[%s1319 + $0x34] sm:$0xf] %v1299
            %1334 = vst [vmem:[%s1319 + $0x38] sm:$0xf] %v1300
            %1335 = vst [vmem:[%s1319 + $0x3c] sm:$0xf] %v1301
          $region103: #{tpu_custom_call.1} parent=83 // loop_footer
            %s870 = sadd.s32 1, %s866
          $region104: #{tpu_custom_call.1} parent=83 // loop_footer_branch
            %865 = sbr.rel target = $region100
          $region105: #{tpu_custom_call.1} parent=83 // loop_exit
            _
        $region84: #{tpu_custom_call.1} parent=59 // pred_fallthru
          _
        %s1336 = smul.u32 %s35, 2
        %s1337 = sadd.s32 %s1336, %s36
        %s1338 = smul.u32 %s1337, 128
        %s1339 = scalar_lea.vmem %s408, %s1338 [#allocation6]
        %v1340 = vld [vmem:[%s1339] sm:$0xff]
        %v1341 = vld [vmem:[%s1339 + $0x8] sm:$0xff]
        %v1342 = vld [vmem:[%s1339 + $0x10] sm:$0xff]
        %v1343 = vld [vmem:[%s1339 + $0x18] sm:$0xff]
        %v1344 = vld [vmem:[%s1339 + $0x20] sm:$0xff]
        %v1345 = vld [vmem:[%s1339 + $0x28] sm:$0xff]
        %v1346 = vld [vmem:[%s1339 + $0x30] sm:$0xff]
        %v1347 = vld [vmem:[%s1339 + $0x38] sm:$0xff]
        %v1348 = vld [vmem:[%s1339 + $0x40] sm:$0xff]
        %v1349 = vld [vmem:[%s1339 + $0x48] sm:$0xff]
        %v1350 = vld [vmem:[%s1339 + $0x50] sm:$0xff]
        %v1351 = vld [vmem:[%s1339 + $0x58] sm:$0xff]
        %v1352 = vld [vmem:[%s1339 + $0x60] sm:$0xff]
        %v1353 = vld [vmem:[%s1339 + $0x68] sm:$0xff]
        %v1354 = vld [vmem:[%s1339 + $0x70] sm:$0xff]
        %v1355 = vld [vmem:[%s1339 + $0x78] sm:$0xff]
        %v1356 = vld [vmem:[#allocation4] sm:$0x1]
        %v1358 = vlaneseq
        %v1359 = vshrl.u32 %v1358, 7
        %v1360 = vsub.s32 0, %v1359
        %v1361 = vrot.slane %v1356, %v1360
        %v1363 = vmul.f32 %v1340, %v1361
        %v1364 = vmul.f32 %v1341, %v1361
        %v1365 = vmul.f32 %v1342, %v1361
        %v1366 = vmul.f32 %v1343, %v1361
        %v1367 = vmul.f32 %v1344, %v1361
        %v1368 = vmul.f32 %v1345, %v1361
        %v1369 = vmul.f32 %v1346, %v1361
        %v1370 = vmul.f32 %v1347, %v1361
        %v1371 = vmul.f32 %v1348, %v1361
        %v1372 = vmul.f32 %v1349, %v1361
        %v1373 = vmul.f32 %v1350, %v1361
        %v1374 = vmul.f32 %v1351, %v1361
        %v1375 = vmul.f32 %v1352, %v1361
        %v1376 = vmul.f32 %v1353, %v1361
        %v1377 = vmul.f32 %v1354, %v1361
        %v1378 = vmul.f32 %v1355, %v1361
        %v1379 = vld [vmem:[#allocation5] sm:$0x1]
        %v1381 = vlaneseq
        %v1382 = vshrl.u32 %v1381, 7
        %v1383 = vsub.s32 0, %v1382
        %v1384 = vrot.slane %v1379, %v1383
        %v1386 = vadd.f32 %v1363, %v1384
        %v1387 = vadd.f32 %v1364, %v1384
        %v1388 = vadd.f32 %v1365, %v1384
        %v1389 = vadd.f32 %v1366, %v1384
        %v1390 = vadd.f32 %v1367, %v1384
        %v1391 = vadd.f32 %v1368, %v1384
        %v1392 = vadd.f32 %v1369, %v1384
        %v1393 = vadd.f32 %v1370, %v1384
        %v1394 = vadd.f32 %v1371, %v1384
        %v1395 = vadd.f32 %v1372, %v1384
        %v1396 = vadd.f32 %v1373, %v1384
        %v1397 = vadd.f32 %v1374, %v1384
        %v1398 = vadd.f32 %v1375, %v1384
        %v1399 = vadd.f32 %v1376, %v1384
        %v1400 = vadd.f32 %v1377, %v1384
        %v1401 = vadd.f32 %v1378, %v1384
        %v1402 = vpack.c.bf16 %v1387, %v1386
        %v1403 = vpack.c.bf16 %v1389, %v1388
        %v1404 = vpack.c.bf16 %v1391, %v1390
        %v1405 = vpack.c.bf16 %v1393, %v1392
        %v1406 = vpack.c.bf16 %v1395, %v1394
        %v1407 = vpack.c.bf16 %v1397, %v1396
        %v1408 = vpack.c.bf16 %v1399, %v1398
        %v1409 = vpack.c.bf16 %v1401, %v1400
        %v1410 = vld [vmem:[#allocation11] sm:$0xf]
        %v1411 = vld [vmem:[#allocation11 + $0x4] sm:$0xf]
        %v1412 = vld [vmem:[#allocation11 + $0x8] sm:$0xf]
        %v1413 = vld [vmem:[#allocation11 + $0xc] sm:$0xf]
        %v1414 = vld [vmem:[#allocation11 + $0x10] sm:$0xf]
        %v1415 = vld [vmem:[#allocation11 + $0x14] sm:$0xf]
        %v1416 = vld [vmem:[#allocation11 + $0x18] sm:$0xf]
        %v1417 = vld [vmem:[#allocation11 + $0x1c] sm:$0xf]
        %v1418 = vld [vmem:[#allocation11 + $0x20] sm:$0xf]
        %v1419 = vld [vmem:[#allocation11 + $0x24] sm:$0xf]
        %v1420 = vld [vmem:[#allocation11 + $0x28] sm:$0xf]
        %v1421 = vld [vmem:[#allocation11 + $0x2c] sm:$0xf]
        %v1422 = vld [vmem:[#allocation11 + $0x30] sm:$0xf]
        %v1423 = vld [vmem:[#allocation11 + $0x34] sm:$0xf]
        %v1424 = vld [vmem:[#allocation11 + $0x38] sm:$0xf]
        %v1425 = vld [vmem:[#allocation11 + $0x3c] sm:$0xf]
        %v1426 = vld [vmem:[%s5] sm:$0x1]
        %v1428 = vlaneseq
        %v1429 = vshrl.u32 %v1428, 7
        %v1430 = vsub.s32 0, %v1429
        %v1431 = vrot.slane %v1426, %v1430
        %v1449 = vunpack.c.l.b16 %v1410
        %v1450 = vunpack.c.l.b16 %v1411
        %v1451 = vunpack.c.l.b16 %v1412
        %v1452 = vunpack.c.l.b16 %v1413
        %v1453 = vunpack.c.l.b16 %v1414
        %v1454 = vunpack.c.l.b16 %v1415
        %v1455 = vunpack.c.l.b16 %v1416
        %v1456 = vunpack.c.l.b16 %v1417
        %v1457 = vunpack.c.l.b16 %v1418
        %v1458 = vunpack.c.l.b16 %v1419
        %v1459 = vunpack.c.l.b16 %v1420
        %v1460 = vunpack.c.l.b16 %v1421
        %v1461 = vunpack.c.l.b16 %v1422
        %v1462 = vunpack.c.l.b16 %v1423
        %v1463 = vunpack.c.l.b16 %v1424
        %v1464 = vunpack.c.l.b16 %v1425
        %v1465 = vpack.c.b16 %v1450, %v1449
        %v1466 = vpack.c.b16 %v1452, %v1451
        %v1467 = vpack.c.b16 %v1454, %v1453
        %v1468 = vpack.c.b16 %v1456, %v1455
        %v1469 = vpack.c.b16 %v1458, %v1457
        %v1470 = vpack.c.b16 %v1460, %v1459
        %v1471 = vpack.c.b16 %v1462, %v1461
        %v1472 = vpack.c.b16 %v1464, %v1463
        %1481 = vmatprep.subr.bf16.mxu0 0
        %1482 = vmatpush1.bf16.msra.mxu0 %v1472
        %1483 = vmatprep.subr.bf16.mxu0 0
        %1484 = vmatpush1.bf16.msra.mxu0 %v1471
        %1485 = vmatprep.subr.bf16.mxu0 0
        %1486 = vmatpush1.bf16.msra.mxu0 %v1470
        %1487 = vmatprep.subr.bf16.mxu0 0
        %1488 = vmatpush1.bf16.msra.mxu0 %v1469
        %1489 = vmatprep.subr.bf16.mxu0 0
        %1490 = vmatpush1.bf16.msra.mxu0 %v1468
        %1491 = vmatprep.subr.bf16.mxu0 0
        %1492 = vmatpush1.bf16.msra.mxu0 %v1467
        %1493 = vmatprep.subr.bf16.mxu0 0
        %1494 = vmatpush1.bf16.msra.mxu0 %v1466
        %1495 = vmatprep.subr.bf16.mxu0 0
        %1496 = vmatpush1.bf16.msra.mxu0 %v1465
        %1497 = vmatprep.subr.bf16.mxu0 0
        %1498 = vmatpush2.bf16.msra.mxu0 0
        %1499 = vmatprep.subr.bf16.mxu0 0
        %1500 = vmatpush2.bf16.msra.mxu0 0
        %1501 = vmatprep.subr.bf16.mxu0 0
        %1502 = vmatpush2.bf16.msra.mxu0 0
        %1503 = vmatprep.subr.bf16.mxu0 0
        %1504 = vmatpush2.bf16.msra.mxu0 0
        %1505 = vmatprep.subr.bf16.mxu0 0
        %1506 = vmatpush2.bf16.msra.mxu0 0
        %1507 = vmatprep.subr.bf16.mxu0 0
        %1508 = vmatpush2.bf16.msra.mxu0 0
        %1509 = vmatprep.subr.bf16.mxu0 0
        %1510 = vmatpush2.bf16.msra.mxu0 0
        %1511 = vmatprep.subr.bf16.mxu0 0
        %1512 = vmatpush2.bf16.msra.mxu0 0
        %1513 = vmatprep.mubr.bf16.mxu0 0
        %1514 = vmatmul.mubr.bf16.gmra.mxu0 %v1402
        %v1515 = vpop.f32.mrf.mxu0
        %v1516 = vadd.f32 %v1431, %v1515
        %v1517 = vpop.f32.mrf.mxu0
        %v1518 = vpop.f32.mrf.mxu0
        %v1519 = vadd.f32 %v1431, %v1518
        %v1520 = vpop.f32.mrf.mxu0
        %1521 = vmatprep.mubr.bf16.mxu0 0
        %1522 = vmatmul.mubr.bf16.gmra.mxu0 %v1403
        %v1523 = vpop.f32.mrf.mxu0
        %v1524 = vadd.f32 %v1431, %v1523
        %v1525 = vpop.f32.mrf.mxu0
        %v1526 = vpop.f32.mrf.mxu0
        %v1527 = vadd.f32 %v1431, %v1526
        %v1528 = vpop.f32.mrf.mxu0
        %1529 = vmatprep.mubr.bf16.mxu0 0
        %1530 = vmatmul.mubr.bf16.gmra.mxu0 %v1404
        %v1531 = vpop.f32.mrf.mxu0
        %v1532 = vadd.f32 %v1431, %v1531
        %v1533 = vpop.f32.mrf.mxu0
        %v1534 = vpop.f32.mrf.mxu0
        %v1535 = vadd.f32 %v1431, %v1534
        %v1536 = vpop.f32.mrf.mxu0
        %1537 = vmatprep.mubr.bf16.mxu0 0
        %1538 = vmatmul.mubr.bf16.gmra.mxu0 %v1405
        %v1539 = vpop.f32.mrf.mxu0
        %v1540 = vadd.f32 %v1431, %v1539
        %v1541 = vpop.f32.mrf.mxu0
        %v1542 = vpop.f32.mrf.mxu0
        %v1543 = vadd.f32 %v1431, %v1542
        %v1544 = vpop.f32.mrf.mxu0
        %1545 = vmatprep.mubr.bf16.mxu0 0
        %1546 = vmatmul.mubr.bf16.gmra.mxu0 %v1406
        %v1547 = vpop.f32.mrf.mxu0
        %v1548 = vadd.f32 %v1431, %v1547
        %v1549 = vpop.f32.mrf.mxu0
        %v1550 = vpop.f32.mrf.mxu0
        %v1551 = vadd.f32 %v1431, %v1550
        %v1552 = vpop.f32.mrf.mxu0
        %1553 = vmatprep.mubr.bf16.mxu0 0
        %1554 = vmatmul.mubr.bf16.gmra.mxu0 %v1407
        %v1555 = vpop.f32.mrf.mxu0
        %v1556 = vadd.f32 %v1431, %v1555
        %v1557 = vpop.f32.mrf.mxu0
        %v1558 = vpop.f32.mrf.mxu0
        %v1559 = vadd.f32 %v1431, %v1558
        %v1560 = vpop.f32.mrf.mxu0
        %1561 = vmatprep.mubr.bf16.mxu0 0
        %1562 = vmatmul.mubr.bf16.gmra.mxu0 %v1408
        %v1563 = vpop.f32.mrf.mxu0
        %v1564 = vadd.f32 %v1431, %v1563
        %v1565 = vpop.f32.mrf.mxu0
        %v1566 = vpop.f32.mrf.mxu0
        %v1567 = vadd.f32 %v1431, %v1566
        %v1568 = vpop.f32.mrf.mxu0
        %1569 = vmatprep.mubr.bf16.mxu0 0
        %1570 = vmatmul.mubr.bf16.gmra.mxu0 %v1409
        %v1571 = vpop.f32.mrf.mxu0
        %v1572 = vadd.f32 %v1431, %v1571
        %v1573 = vpop.f32.mrf.mxu0
        %v1574 = vpop.f32.mrf.mxu0
        %v1575 = vadd.f32 %v1431, %v1574
        %v1576 = vpop.f32.mrf.mxu0
        %1577 = vdwg.mxu0
        %v1578 = vpack.c.bf16 %v1519, %v1516
        %v1579 = vpack.c.bf16 %v1527, %v1524
        %v1580 = vpack.c.bf16 %v1535, %v1532
        %v1581 = vpack.c.bf16 %v1543, %v1540
        %v1582 = vpack.c.bf16 %v1551, %v1548
        %v1583 = vpack.c.bf16 %v1559, %v1556
        %v1584 = vpack.c.bf16 %v1567, %v1564
        %v1585 = vpack.c.bf16 %v1575, %v1572
        %v1586 = vld [vmem:[#allocation2] sm:$0xf]
        %v1587 = vld [vmem:[#allocation2 + $0x4] sm:$0xf]
        %v1588 = vld [vmem:[#allocation2 + $0x8] sm:$0xf]
        %v1589 = vld [vmem:[#allocation2 + $0xc] sm:$0xf]
        %v1590 = vld [vmem:[#allocation2 + $0x10] sm:$0xf]
        %v1591 = vld [vmem:[#allocation2 + $0x14] sm:$0xf]
        %v1592 = vld [vmem:[#allocation2 + $0x18] sm:$0xf]
        %v1593 = vld [vmem:[#allocation2 + $0x1c] sm:$0xf]
        %v1594 = vld [vmem:[#allocation2 + $0x20] sm:$0xf]
        %v1595 = vld [vmem:[#allocation2 + $0x24] sm:$0xf]
        %v1596 = vld [vmem:[#allocation2 + $0x28] sm:$0xf]
        %v1597 = vld [vmem:[#allocation2 + $0x2c] sm:$0xf]
        %v1598 = vld [vmem:[#allocation2 + $0x30] sm:$0xf]
        %v1599 = vld [vmem:[#allocation2 + $0x34] sm:$0xf]
        %v1600 = vld [vmem:[#allocation2 + $0x38] sm:$0xf]
        %v1601 = vld [vmem:[#allocation2 + $0x3c] sm:$0xf]
        %v1602 = vld [vmem:[#allocation2 + $0x40] sm:$0xf]
        %v1603 = vld [vmem:[#allocation2 + $0x44] sm:$0xf]
        %v1604 = vld [vmem:[#allocation2 + $0x48] sm:$0xf]
        %v1605 = vld [vmem:[#allocation2 + $0x4c] sm:$0xf]
        %v1606 = vld [vmem:[#allocation2 + $0x50] sm:$0xf]
        %v1607 = vld [vmem:[#allocation2 + $0x54] sm:$0xf]
        %v1608 = vld [vmem:[#allocation2 + $0x58] sm:$0xf]
        %v1609 = vld [vmem:[#allocation2 + $0x5c] sm:$0xf]
        %v1610 = vld [vmem:[#allocation2 + $0x60] sm:$0xf]
        %v1611 = vld [vmem:[#allocation2 + $0x64] sm:$0xf]
        %v1612 = vld [vmem:[#allocation2 + $0x68] sm:$0xf]
        %v1613 = vld [vmem:[#allocation2 + $0x6c] sm:$0xf]
        %v1614 = vld [vmem:[#allocation2 + $0x70] sm:$0xf]
        %v1615 = vld [vmem:[#allocation2 + $0x74] sm:$0xf]
        %v1616 = vld [vmem:[#allocation2 + $0x78] sm:$0xf]
        %v1617 = vld [vmem:[#allocation2 + $0x7c] sm:$0xf]
        %v1650 = vunpack.c.l.b16 %v1586
        %v1651 = vunpack.c.l.b16 %v1587
        %v1652 = vunpack.c.l.b16 %v1588
        %v1653 = vunpack.c.l.b16 %v1589
        %v1654 = vunpack.c.l.b16 %v1590
        %v1655 = vunpack.c.l.b16 %v1591
        %v1656 = vunpack.c.l.b16 %v1592
        %v1657 = vunpack.c.l.b16 %v1593
        %v1658 = vunpack.c.l.b16 %v1594
        %v1659 = vunpack.c.l.b16 %v1595
        %v1660 = vunpack.c.l.b16 %v1596
        %v1661 = vunpack.c.l.b16 %v1597
        %v1662 = vunpack.c.l.b16 %v1598
        %v1663 = vunpack.c.l.b16 %v1599
        %v1664 = vunpack.c.l.b16 %v1600
        %v1665 = vunpack.c.l.b16 %v1601
        %v1666 = vunpack.c.l.b16 %v1602
        %v1667 = vunpack.c.l.b16 %v1603
        %v1668 = vunpack.c.l.b16 %v1604
        %v1669 = vunpack.c.l.b16 %v1605
        %v1670 = vunpack.c.l.b16 %v1606
        %v1671 = vunpack.c.l.b16 %v1607
        %v1672 = vunpack.c.l.b16 %v1608
        %v1673 = vunpack.c.l.b16 %v1609
        %v1674 = vunpack.c.l.b16 %v1610
        %v1675 = vunpack.c.l.b16 %v1611
        %v1676 = vunpack.c.l.b16 %v1612
        %v1677 = vunpack.c.l.b16 %v1613
        %v1678 = vunpack.c.l.b16 %v1614
        %v1679 = vunpack.c.l.b16 %v1615
        %v1680 = vunpack.c.l.b16 %v1616
        %v1681 = vunpack.c.l.b16 %v1617
        %v1682 = vpack.c.b16 %v1651, %v1650
        %v1683 = vpack.c.b16 %v1653, %v1652
        %v1684 = vpack.c.b16 %v1655, %v1654
        %v1685 = vpack.c.b16 %v1657, %v1656
        %v1686 = vpack.c.b16 %v1659, %v1658
        %v1687 = vpack.c.b16 %v1661, %v1660
        %v1688 = vpack.c.b16 %v1663, %v1662
        %v1689 = vpack.c.b16 %v1665, %v1664
        %v1690 = vpack.c.b16 %v1667, %v1666
        %v1691 = vpack.c.b16 %v1669, %v1668
        %v1692 = vpack.c.b16 %v1671, %v1670
        %v1693 = vpack.c.b16 %v1673, %v1672
        %v1694 = vpack.c.b16 %v1675, %v1674
        %v1695 = vpack.c.b16 %v1677, %v1676
        %v1696 = vpack.c.b16 %v1679, %v1678
        %v1697 = vpack.c.b16 %v1681, %v1680
        %1714 = vmatprep.subr.bf16.mxu0 0
        %1715 = vmatpush1.bf16.xpose.msra.mxu0 %v1689
        %1716 = vmatprep.subr.bf16.mxu0 0
        %1717 = vmatpush1.bf16.xpose.msra.mxu0 %v1688
        %1718 = vmatprep.subr.bf16.mxu0 0
        %1719 = vmatpush1.bf16.xpose.msra.mxu0 %v1687
        %1720 = vmatprep.subr.bf16.mxu0 0
        %1721 = vmatpush1.bf16.xpose.msra.mxu0 %v1686
        %1722 = vmatprep.subr.bf16.mxu0 0
        %1723 = vmatpush1.bf16.xpose.msra.mxu0 %v1685
        %1724 = vmatprep.subr.bf16.mxu0 0
        %1725 = vmatpush1.bf16.xpose.msra.mxu0 %v1684
        %1726 = vmatprep.subr.bf16.mxu0 0
        %1727 = vmatpush1.bf16.xpose.msra.mxu0 %v1683
        %1728 = vmatprep.subr.bf16.mxu0 0
        %1729 = vmatpush1.bf16.xpose.msra.mxu0 %v1682
        %1730 = vmatprep.subr.bf16.mxu0 0
        %1731 = vmatpush2.bf16.xpose.msra.mxu0 %v1697
        %1732 = vmatprep.subr.bf16.mxu0 0
        %1733 = vmatpush2.bf16.xpose.msra.mxu0 %v1696
        %1734 = vmatprep.subr.bf16.mxu0 0
        %1735 = vmatpush2.bf16.xpose.msra.mxu0 %v1695
        %1736 = vmatprep.subr.bf16.mxu0 0
        %1737 = vmatpush2.bf16.xpose.msra.mxu0 %v1694
        %1738 = vmatprep.subr.bf16.mxu0 0
        %1739 = vmatpush2.bf16.xpose.msra.mxu0 %v1693
        %1740 = vmatprep.subr.bf16.mxu0 0
        %1741 = vmatpush2.bf16.xpose.msra.mxu0 %v1692
        %1742 = vmatprep.subr.bf16.mxu0 0
        %1743 = vmatpush2.bf16.xpose.msra.mxu0 %v1691
        %1744 = vmatprep.subr.bf16.mxu0 0
        %1745 = vmatpush2.bf16.xpose.msra.mxu0 %v1690
        %1746 = vmatprep.mubr.bf16.mxu0 0
        %1747 = vmatmul.mubr.bf16.gmra.mxu0 %v1578
        %v1748 = vpop.f32.mrf.mxu0
        %v1749 = vadd.f32 0.0, %v1748
        %v1750 = vpop.f32.mrf.mxu0
        %v1751 = vadd.f32 0.0, %v1750
        %v1752 = vpop.f32.mrf.mxu0
        %v1753 = vadd.f32 0.0, %v1752
        %v1754 = vpop.f32.mrf.mxu0
        %v1755 = vadd.f32 0.0, %v1754
        %1756 = vmatprep.mubr.bf16.mxu0 0
        %1757 = vmatmul.mubr.bf16.gmra.mxu0 %v1579
        %v1758 = vpop.f32.mrf.mxu0
        %v1759 = vadd.f32 0.0, %v1758
        %v1760 = vpop.f32.mrf.mxu0
        %v1761 = vadd.f32 0.0, %v1760
        %v1762 = vpop.f32.mrf.mxu0
        %v1763 = vadd.f32 0.0, %v1762
        %v1764 = vpop.f32.mrf.mxu0
        %v1765 = vadd.f32 0.0, %v1764
        %1766 = vmatprep.mubr.bf16.mxu0 0
        %1767 = vmatmul.mubr.bf16.gmra.mxu0 %v1580
        %v1768 = vpop.f32.mrf.mxu0
        %v1769 = vadd.f32 0.0, %v1768
        %v1770 = vpop.f32.mrf.mxu0
        %v1771 = vadd.f32 0.0, %v1770
        %v1772 = vpop.f32.mrf.mxu0
        %v1773 = vadd.f32 0.0, %v1772
        %v1774 = vpop.f32.mrf.mxu0
        %v1775 = vadd.f32 0.0, %v1774
        %1776 = vmatprep.mubr.bf16.mxu0 0
        %1777 = vmatmul.mubr.bf16.gmra.mxu0 %v1581
        %v1778 = vpop.f32.mrf.mxu0
        %v1779 = vadd.f32 0.0, %v1778
        %v1780 = vpop.f32.mrf.mxu0
        %v1781 = vadd.f32 0.0, %v1780
        %v1782 = vpop.f32.mrf.mxu0
        %v1783 = vadd.f32 0.0, %v1782
        %v1784 = vpop.f32.mrf.mxu0
        %v1785 = vadd.f32 0.0, %v1784
        %1786 = vmatprep.mubr.bf16.mxu0 0
        %1787 = vmatmul.mubr.bf16.gmra.mxu0 %v1582
        %v1788 = vpop.f32.mrf.mxu0
        %v1789 = vadd.f32 0.0, %v1788
        %v1790 = vpop.f32.mrf.mxu0
        %v1791 = vadd.f32 0.0, %v1790
        %v1792 = vpop.f32.mrf.mxu0
        %v1793 = vadd.f32 0.0, %v1792
        %v1794 = vpop.f32.mrf.mxu0
        %v1795 = vadd.f32 0.0, %v1794
        %1796 = vmatprep.mubr.bf16.mxu0 0
        %1797 = vmatmul.mubr.bf16.gmra.mxu0 %v1583
        %v1798 = vpop.f32.mrf.mxu0
        %v1799 = vadd.f32 0.0, %v1798
        %v1800 = vpop.f32.mrf.mxu0
        %v1801 = vadd.f32 0.0, %v1800
        %v1802 = vpop.f32.mrf.mxu0
        %v1803 = vadd.f32 0.0, %v1802
        %v1804 = vpop.f32.mrf.mxu0
        %v1805 = vadd.f32 0.0, %v1804
        %1806 = vmatprep.mubr.bf16.mxu0 0
        %1807 = vmatmul.mubr.bf16.gmra.mxu0 %v1584
        %v1808 = vpop.f32.mrf.mxu0
        %v1809 = vadd.f32 0.0, %v1808
        %v1810 = vpop.f32.mrf.mxu0
        %v1811 = vadd.f32 0.0, %v1810
        %v1812 = vpop.f32.mrf.mxu0
        %v1813 = vadd.f32 0.0, %v1812
        %v1814 = vpop.f32.mrf.mxu0
        %v1815 = vadd.f32 0.0, %v1814
        %1816 = vmatprep.mubr.bf16.mxu0 0
        %1817 = vmatmul.mubr.bf16.gmra.mxu0 %v1585
        %v1818 = vpop.f32.mrf.mxu0
        %v1819 = vadd.f32 0.0, %v1818
        %v1820 = vpop.f32.mrf.mxu0
        %v1821 = vadd.f32 0.0, %v1820
        %v1822 = vpop.f32.mrf.mxu0
        %v1823 = vadd.f32 0.0, %v1822
        %v1824 = vpop.f32.mrf.mxu0
        %v1825 = vadd.f32 0.0, %v1824
        %1826 = vdwg.mxu0
        %v1827 = vmax.f32 %v1749, %v1751
        %1828 = vmax.xlane.f32.xlu0 %v1827
        %v1829 = vpop.xlane.xlu0 %1828
        %v1830 = vmax.f32 %v1753, %v1755
        %1831 = vmax.xlane.f32.xlu0 %v1830
        %v1832 = vpop.xlane.xlu0 %1831
        %v1833 = vmax.f32 %v1759, %v1761
        %1834 = vmax.xlane.f32.xlu0 %v1833
        %v1835 = vpop.xlane.xlu0 %1834
        %v1836 = vmax.f32 %v1763, %v1765
        %1837 = vmax.xlane.f32.xlu0 %v1836
        %v1838 = vpop.xlane.xlu0 %1837
        %v1839 = vmax.f32 %v1769, %v1771
        %1840 = vmax.xlane.f32.xlu0 %v1839
        %v1841 = vpop.xlane.xlu0 %1840
        %v1842 = vmax.f32 %v1773, %v1775
        %1843 = vmax.xlane.f32.xlu0 %v1842
        %v1844 = vpop.xlane.xlu0 %1843
        %v1845 = vmax.f32 %v1779, %v1781
        %1846 = vmax.xlane.f32.xlu0 %v1845
        %v1847 = vpop.xlane.xlu0 %1846
        %v1848 = vmax.f32 %v1783, %v1785
        %1849 = vmax.xlane.f32.xlu0 %v1848
        %v1850 = vpop.xlane.xlu0 %1849
        %v1851 = vmax.f32 %v1789, %v1791
        %1852 = vmax.xlane.f32.xlu0 %v1851
        %v1853 = vpop.xlane.xlu0 %1852
        %v1854 = vmax.f32 %v1793, %v1795
        %1855 = vmax.xlane.f32.xlu0 %v1854
        %v1856 = vpop.xlane.xlu0 %1855
        %v1857 = vmax.f32 %v1799, %v1801
        %1858 = vmax.xlane.f32.xlu0 %v1857
        %v1859 = vpop.xlane.xlu0 %1858
        %v1860 = vmax.f32 %v1803, %v1805
        %1861 = vmax.xlane.f32.xlu0 %v1860
        %v1862 = vpop.xlane.xlu0 %1861
        %v1863 = vmax.f32 %v1809, %v1811
        %1864 = vmax.xlane.f32.xlu0 %v1863
        %v1865 = vpop.xlane.xlu0 %1864
        %v1866 = vmax.f32 %v1813, %v1815
        %1867 = vmax.xlane.f32.xlu0 %v1866
        %v1868 = vpop.xlane.xlu0 %1867
        %v1869 = vmax.f32 %v1819, %v1821
        %1870 = vmax.xlane.f32.xlu0 %v1869
        %v1871 = vpop.xlane.xlu0 %1870
        %v1872 = vmax.f32 %v1823, %v1825
        %1873 = vmax.xlane.f32.xlu0 %v1872
        %v1874 = vpop.xlane.xlu0 %1873
        %v1875 = vsub.f32 %v1749, %v1829
        %v1876 = vsub.f32 %v1751, %v1829
        %v1877 = vsub.f32 %v1753, %v1832
        %v1878 = vsub.f32 %v1755, %v1832
        %v1879 = vsub.f32 %v1759, %v1835
        %v1880 = vsub.f32 %v1761, %v1835
        %v1881 = vsub.f32 %v1763, %v1838
        %v1882 = vsub.f32 %v1765, %v1838
        %v1883 = vsub.f32 %v1769, %v1841
        %v1884 = vsub.f32 %v1771, %v1841
        %v1885 = vsub.f32 %v1773, %v1844
        %v1886 = vsub.f32 %v1775, %v1844
        %v1887 = vsub.f32 %v1779, %v1847
        %v1888 = vsub.f32 %v1781, %v1847
        %v1889 = vsub.f32 %v1783, %v1850
        %v1890 = vsub.f32 %v1785, %v1850
        %v1891 = vsub.f32 %v1789, %v1853
        %v1892 = vsub.f32 %v1791, %v1853
        %v1893 = vsub.f32 %v1793, %v1856
        %v1894 = vsub.f32 %v1795, %v1856
        %v1895 = vsub.f32 %v1799, %v1859
        %v1896 = vsub.f32 %v1801, %v1859
        %v1897 = vsub.f32 %v1803, %v1862
        %v1898 = vsub.f32 %v1805, %v1862
        %v1899 = vsub.f32 %v1809, %v1865
        %v1900 = vsub.f32 %v1811, %v1865
        %v1901 = vsub.f32 %v1813, %v1868
        %v1902 = vsub.f32 %v1815, %v1868
        %v1903 = vsub.f32 %v1819, %v1871
        %v1904 = vsub.f32 %v1821, %v1871
        %v1905 = vsub.f32 %v1823, %v1874
        %v1906 = vsub.f32 %v1825, %v1874
        %v1907 = vpack.c.bf16 %v1877, %v1875
        %v1908 = vpack.c.bf16 %v1878, %v1876
        %v1909 = vpack.c.bf16 %v1881, %v1879
        %v1910 = vpack.c.bf16 %v1882, %v1880
        %v1911 = vpack.c.bf16 %v1885, %v1883
        %v1912 = vpack.c.bf16 %v1886, %v1884
        %v1913 = vpack.c.bf16 %v1889, %v1887
        %v1914 = vpack.c.bf16 %v1890, %v1888
        %v1915 = vpack.c.bf16 %v1893, %v1891
        %v1916 = vpack.c.bf16 %v1894, %v1892
        %v1917 = vpack.c.bf16 %v1897, %v1895
        %v1918 = vpack.c.bf16 %v1898, %v1896
        %v1919 = vpack.c.bf16 %v1901, %v1899
        %v1920 = vpack.c.bf16 %v1902, %v1900
        %v1921 = vpack.c.bf16 %v1905, %v1903
        %v1922 = vpack.c.bf16 %v1906, %v1904
        %v1924 = vmul.bf16 %v1907, 1069105081
        %v1925 = vpow.bf16.pop %v1924
        %v1927 = vmul.bf16 %v1908, 1069105081
        %v1928 = vpow.bf16.pop %v1927
        %v1930 = vmul.bf16 %v1909, 1069105081
        %v1931 = vpow.bf16.pop %v1930
        %v1933 = vmul.bf16 %v1910, 1069105081
        %v1934 = vpow.bf16.pop %v1933
        %v1936 = vmul.bf16 %v1911, 1069105081
        %v1937 = vpow.bf16.pop %v1936
        %v1939 = vmul.bf16 %v1912, 1069105081
        %v1940 = vpow.bf16.pop %v1939
        %v1942 = vmul.bf16 %v1913, 1069105081
        %v1943 = vpow.bf16.pop %v1942
        %v1945 = vmul.bf16 %v1914, 1069105081
        %v1946 = vpow.bf16.pop %v1945
        %v1948 = vmul.bf16 %v1915, 1069105081
        %v1949 = vpow.bf16.pop %v1948
        %v1951 = vmul.bf16 %v1916, 1069105081
        %v1952 = vpow.bf16.pop %v1951
        %v1954 = vmul.bf16 %v1917, 1069105081
        %v1955 = vpow.bf16.pop %v1954
        %v1957 = vmul.bf16 %v1918, 1069105081
        %v1958 = vpow.bf16.pop %v1957
        %v1960 = vmul.bf16 %v1919, 1069105081
        %v1961 = vpow.bf16.pop %v1960
        %v1963 = vmul.bf16 %v1920, 1069105081
        %v1964 = vpow.bf16.pop %v1963
        %v1966 = vmul.bf16 %v1921, 1069105081
        %v1967 = vpow.bf16.pop %v1966
        %v1969 = vmul.bf16 %v1922, 1069105081
        %v1970 = vpow.bf16.pop %v1969
        %v1971 = vunpack.c.l.bf16 %v1925
        %v1972 = vunpack.c.l.bf16 %v1928
        %v1973 = vunpack.c.h.bf16 %v1925
        %v1974 = vunpack.c.h.bf16 %v1928
        %v1975 = vunpack.c.l.bf16 %v1931
        %v1976 = vunpack.c.l.bf16 %v1934
        %v1977 = vunpack.c.h.bf16 %v1931
        %v1978 = vunpack.c.h.bf16 %v1934
        %v1979 = vunpack.c.l.bf16 %v1937
        %v1980 = vunpack.c.l.bf16 %v1940
        %v1981 = vunpack.c.h.bf16 %v1937
        %v1982 = vunpack.c.h.bf16 %v1940
        %v1983 = vunpack.c.l.bf16 %v1943
        %v1984 = vunpack.c.l.bf16 %v1946
        %v1985 = vunpack.c.h.bf16 %v1943
        %v1986 = vunpack.c.h.bf16 %v1946
        %v1987 = vunpack.c.l.bf16 %v1949
        %v1988 = vunpack.c.l.bf16 %v1952
        %v1989 = vunpack.c.h.bf16 %v1949
        %v1990 = vunpack.c.h.bf16 %v1952
        %v1991 = vunpack.c.l.bf16 %v1955
        %v1992 = vunpack.c.l.bf16 %v1958
        %v1993 = vunpack.c.h.bf16 %v1955
        %v1994 = vunpack.c.h.bf16 %v1958
        %v1995 = vunpack.c.l.bf16 %v1961
        %v1996 = vunpack.c.l.bf16 %v1964
        %v1997 = vunpack.c.h.bf16 %v1961
        %v1998 = vunpack.c.h.bf16 %v1964
        %v1999 = vunpack.c.l.bf16 %v1967
        %v2000 = vunpack.c.l.bf16 %v1970
        %v2001 = vunpack.c.h.bf16 %v1967
        %v2002 = vunpack.c.h.bf16 %v1970
        %v2003 = vadd.f32 %v1971, %v1972
        %2004 = vadd.xlane.f32.xlu0 %v2003
        %v2005 = vpop.xlane.xlu0 %2004
        %v2006 = vadd.f32 %v1973, %v1974
        %2007 = vadd.xlane.f32.xlu0 %v2006
        %v2008 = vpop.xlane.xlu0 %2007
        %v2009 = vadd.f32 %v1975, %v1976
        %2010 = vadd.xlane.f32.xlu0 %v2009
        %v2011 = vpop.xlane.xlu0 %2010
        %v2012 = vadd.f32 %v1977, %v1978
        %2013 = vadd.xlane.f32.xlu0 %v2012
        %v2014 = vpop.xlane.xlu0 %2013
        %v2015 = vadd.f32 %v1979, %v1980
        %2016 = vadd.xlane.f32.xlu0 %v2015
        %v2017 = vpop.xlane.xlu0 %2016
        %v2018 = vadd.f32 %v1981, %v1982
        %2019 = vadd.xlane.f32.xlu0 %v2018
        %v2020 = vpop.xlane.xlu0 %2019
        %v2021 = vadd.f32 %v1983, %v1984
        %2022 = vadd.xlane.f32.xlu0 %v2021
        %v2023 = vpop.xlane.xlu0 %2022
        %v2024 = vadd.f32 %v1985, %v1986
        %2025 = vadd.xlane.f32.xlu0 %v2024
        %v2026 = vpop.xlane.xlu0 %2025
        %v2027 = vadd.f32 %v1987, %v1988
        %2028 = vadd.xlane.f32.xlu0 %v2027
        %v2029 = vpop.xlane.xlu0 %2028
        %v2030 = vadd.f32 %v1989, %v1990
        %2031 = vadd.xlane.f32.xlu0 %v2030
        %v2032 = vpop.xlane.xlu0 %2031
        %v2033 = vadd.f32 %v1991, %v1992
        %2034 = vadd.xlane.f32.xlu0 %v2033
        %v2035 = vpop.xlane.xlu0 %2034
        %v2036 = vadd.f32 %v1993, %v1994
        %2037 = vadd.xlane.f32.xlu0 %v2036
        %v2038 = vpop.xlane.xlu0 %2037
        %v2039 = vadd.f32 %v1995, %v1996
        %2040 = vadd.xlane.f32.xlu0 %v2039
        %v2041 = vpop.xlane.xlu0 %2040
        %v2042 = vadd.f32 %v1997, %v1998
        %2043 = vadd.xlane.f32.xlu0 %v2042
        %v2044 = vpop.xlane.xlu0 %2043
        %v2045 = vadd.f32 %v1999, %v2000
        %2046 = vadd.xlane.f32.xlu0 %v2045
        %v2047 = vpop.xlane.xlu0 %2046
        %v2048 = vadd.f32 %v2001, %v2002
        %2049 = vadd.xlane.f32.xlu0 %v2048
        %v2050 = vpop.xlane.xlu0 %2049
        %v2051 = vld [vmem:[#allocation3] sm:$0xf]
        %v2052 = vld [vmem:[#allocation3 + $0x4] sm:$0xf]
        %v2053 = vld [vmem:[#allocation3 + $0x8] sm:$0xf]
        %v2054 = vld [vmem:[#allocation3 + $0xc] sm:$0xf]
        %v2055 = vld [vmem:[#allocation3 + $0x10] sm:$0xf]
        %v2056 = vld [vmem:[#allocation3 + $0x14] sm:$0xf]
        %v2057 = vld [vmem:[#allocation3 + $0x18] sm:$0xf]
        %v2058 = vld [vmem:[#allocation3 + $0x1c] sm:$0xf]
        %v2059 = vld [vmem:[#allocation3 + $0x20] sm:$0xf]
        %v2060 = vld [vmem:[#allocation3 + $0x24] sm:$0xf]
        %v2061 = vld [vmem:[#allocation3 + $0x28] sm:$0xf]
        %v2062 = vld [vmem:[#allocation3 + $0x2c] sm:$0xf]
        %v2063 = vld [vmem:[#allocation3 + $0x30] sm:$0xf]
        %v2064 = vld [vmem:[#allocation3 + $0x34] sm:$0xf]
        %v2065 = vld [vmem:[#allocation3 + $0x38] sm:$0xf]
        %v2066 = vld [vmem:[#allocation3 + $0x3c] sm:$0xf]
        %v2067 = vld [vmem:[#allocation3 + $0x40] sm:$0xf]
        %v2068 = vld [vmem:[#allocation3 + $0x44] sm:$0xf]
        %v2069 = vld [vmem:[#allocation3 + $0x48] sm:$0xf]
        %v2070 = vld [vmem:[#allocation3 + $0x4c] sm:$0xf]
        %v2071 = vld [vmem:[#allocation3 + $0x50] sm:$0xf]
        %v2072 = vld [vmem:[#allocation3 + $0x54] sm:$0xf]
        %v2073 = vld [vmem:[#allocation3 + $0x58] sm:$0xf]
        %v2074 = vld [vmem:[#allocation3 + $0x5c] sm:$0xf]
        %v2075 = vld [vmem:[#allocation3 + $0x60] sm:$0xf]
        %v2076 = vld [vmem:[#allocation3 + $0x64] sm:$0xf]
        %v2077 = vld [vmem:[#allocation3 + $0x68] sm:$0xf]
        %v2078 = vld [vmem:[#allocation3 + $0x6c] sm:$0xf]
        %v2079 = vld [vmem:[#allocation3 + $0x70] sm:$0xf]
        %v2080 = vld [vmem:[#allocation3 + $0x74] sm:$0xf]
        %v2081 = vld [vmem:[#allocation3 + $0x78] sm:$0xf]
        %v2082 = vld [vmem:[#allocation3 + $0x7c] sm:$0xf]
        %v2115 = vunpack.c.l.b16 %v2051
        %v2116 = vunpack.c.l.b16 %v2052
        %v2117 = vunpack.c.l.b16 %v2053
        %v2118 = vunpack.c.l.b16 %v2054
        %v2119 = vunpack.c.l.b16 %v2055
        %v2120 = vunpack.c.l.b16 %v2056
        %v2121 = vunpack.c.l.b16 %v2057
        %v2122 = vunpack.c.l.b16 %v2058
        %v2123 = vunpack.c.l.b16 %v2059
        %v2124 = vunpack.c.l.b16 %v2060
        %v2125 = vunpack.c.l.b16 %v2061
        %v2126 = vunpack.c.l.b16 %v2062
        %v2127 = vunpack.c.l.b16 %v2063
        %v2128 = vunpack.c.l.b16 %v2064
        %v2129 = vunpack.c.l.b16 %v2065
        %v2130 = vunpack.c.l.b16 %v2066
        %v2131 = vunpack.c.l.b16 %v2067
        %v2132 = vunpack.c.l.b16 %v2068
        %v2133 = vunpack.c.l.b16 %v2069
        %v2134 = vunpack.c.l.b16 %v2070
        %v2135 = vunpack.c.l.b16 %v2071
        %v2136 = vunpack.c.l.b16 %v2072
        %v2137 = vunpack.c.l.b16 %v2073
        %v2138 = vunpack.c.l.b16 %v2074
        %v2139 = vunpack.c.l.b16 %v2075
        %v2140 = vunpack.c.l.b16 %v2076
        %v2141 = vunpack.c.l.b16 %v2077
        %v2142 = vunpack.c.l.b16 %v2078
        %v2143 = vunpack.c.l.b16 %v2079
        %v2144 = vunpack.c.l.b16 %v2080
        %v2145 = vunpack.c.l.b16 %v2081
        %v2146 = vunpack.c.l.b16 %v2082
        %v2147 = vpack.c.b16 %v2116, %v2115
        %v2148 = vpack.c.b16 %v2118, %v2117
        %v2149 = vpack.c.b16 %v2120, %v2119
        %v2150 = vpack.c.b16 %v2122, %v2121
        %v2151 = vpack.c.b16 %v2124, %v2123
        %v2152 = vpack.c.b16 %v2126, %v2125
        %v2153 = vpack.c.b16 %v2128, %v2127
        %v2154 = vpack.c.b16 %v2130, %v2129
        %v2155 = vpack.c.b16 %v2132, %v2131
        %v2156 = vpack.c.b16 %v2134, %v2133
        %v2157 = vpack.c.b16 %v2136, %v2135
        %v2158 = vpack.c.b16 %v2138, %v2137
        %v2159 = vpack.c.b16 %v2140, %v2139
        %v2160 = vpack.c.b16 %v2142, %v2141
        %v2161 = vpack.c.b16 %v2144, %v2143
        %v2162 = vpack.c.b16 %v2146, %v2145
        %2179 = vmatprep.subr.bf16.mxu0 0
        %2180 = vmatpush1.bf16.msra.mxu0 %v2154
        %2181 = vmatprep.subr.bf16.mxu0 0
        %2182 = vmatpush1.bf16.msra.mxu0 %v2153
        %2183 = vmatprep.subr.bf16.mxu0 0
        %2184 = vmatpush1.bf16.msra.mxu0 %v2152
        %2185 = vmatprep.subr.bf16.mxu0 0
        %2186 = vmatpush1.bf16.msra.mxu0 %v2151
        %2187 = vmatprep.subr.bf16.mxu0 0
        %2188 = vmatpush1.bf16.msra.mxu0 %v2150
        %2189 = vmatprep.subr.bf16.mxu0 0
        %2190 = vmatpush1.bf16.msra.mxu0 %v2149
        %2191 = vmatprep.subr.bf16.mxu0 0
        %2192 = vmatpush1.bf16.msra.mxu0 %v2148
        %2193 = vmatprep.subr.bf16.mxu0 0
        %2194 = vmatpush1.bf16.msra.mxu0 %v2147
        %2195 = vmatprep.subr.bf16.mxu0 0
        %2196 = vmatpush2.bf16.msra.mxu0 %v2162
        %2197 = vmatprep.subr.bf16.mxu0 0
        %2198 = vmatpush2.bf16.msra.mxu0 %v2161
        %2199 = vmatprep.subr.bf16.mxu0 0
        %2200 = vmatpush2.bf16.msra.mxu0 %v2160
        %2201 = vmatprep.subr.bf16.mxu0 0
        %2202 = vmatpush2.bf16.msra.mxu0 %v2159
        %2203 = vmatprep.subr.bf16.mxu0 0
        %2204 = vmatpush2.bf16.msra.mxu0 %v2158
        %2205 = vmatprep.subr.bf16.mxu0 0
        %2206 = vmatpush2.bf16.msra.mxu0 %v2157
        %2207 = vmatprep.subr.bf16.mxu0 0
        %2208 = vmatpush2.bf16.msra.mxu0 %v2156
        %2209 = vmatprep.subr.bf16.mxu0 0
        %2210 = vmatpush2.bf16.msra.mxu0 %v2155
        %2211 = vmatprep.mubr.bf16.mxu0 %v1928
        %2212 = vmatmul.mubr.bf16.gmra.mxu0 %v1925
        %v2213 = vpop.f32.mrf.mxu0
        %v2214 = vadd.f32 0.0, %v2213
        %v2215 = vpop.f32.mrf.mxu0
        %v2216 = vpop.f32.mrf.mxu0
        %v2217 = vadd.f32 0.0, %v2216
        %v2218 = vpop.f32.mrf.mxu0
        %2219 = vmatprep.mubr.bf16.mxu0 %v1934
        %2220 = vmatmul.mubr.bf16.gmra.mxu0 %v1931
        %v2221 = vpop.f32.mrf.mxu0
        %v2222 = vadd.f32 0.0, %v2221
        %v2223 = vpop.f32.mrf.mxu0
        %v2224 = vpop.f32.mrf.mxu0
        %v2225 = vadd.f32 0.0, %v2224
        %v2226 = vpop.f32.mrf.mxu0
        %2227 = vmatprep.mubr.bf16.mxu0 %v1940
        %2228 = vmatmul.mubr.bf16.gmra.mxu0 %v1937
        %v2229 = vpop.f32.mrf.mxu0
        %v2230 = vadd.f32 0.0, %v2229
        %v2231 = vpop.f32.mrf.mxu0
        %v2232 = vpop.f32.mrf.mxu0
        %v2233 = vadd.f32 0.0, %v2232
        %v2234 = vpop.f32.mrf.mxu0
        %2235 = vmatprep.mubr.bf16.mxu0 %v1946
        %2236 = vmatmul.mubr.bf16.gmra.mxu0 %v1943
        %v2237 = vpop.f32.mrf.mxu0
        %v2238 = vadd.f32 0.0, %v2237
        %v2239 = vpop.f32.mrf.mxu0
        %v2240 = vpop.f32.mrf.mxu0
        %v2241 = vadd.f32 0.0, %v2240
        %v2242 = vpop.f32.mrf.mxu0
        %2243 = vmatprep.mubr.bf16.mxu0 %v1952
        %2244 = vmatmul.mubr.bf16.gmra.mxu0 %v1949
        %v2245 = vpop.f32.mrf.mxu0
        %v2246 = vadd.f32 0.0, %v2245
        %v2247 = vpop.f32.mrf.mxu0
        %v2248 = vpop.f32.mrf.mxu0
        %v2249 = vadd.f32 0.0, %v2248
        %v2250 = vpop.f32.mrf.mxu0
        %2251 = vmatprep.mubr.bf16.mxu0 %v1958
        %2252 = vmatmul.mubr.bf16.gmra.mxu0 %v1955
        %v2253 = vpop.f32.mrf.mxu0
        %v2254 = vadd.f32 0.0, %v2253
        %v2255 = vpop.f32.mrf.mxu0
        %v2256 = vpop.f32.mrf.mxu0
        %v2257 = vadd.f32 0.0, %v2256
        %v2258 = vpop.f32.mrf.mxu0
        %2259 = vmatprep.mubr.bf16.mxu0 %v1964
        %2260 = vmatmul.mubr.bf16.gmra.mxu0 %v1961
        %v2261 = vpop.f32.mrf.mxu0
        %v2262 = vadd.f32 0.0, %v2261
        %v2263 = vpop.f32.mrf.mxu0
        %v2264 = vpop.f32.mrf.mxu0
        %v2265 = vadd.f32 0.0, %v2264
        %v2266 = vpop.f32.mrf.mxu0
        %2267 = vmatprep.mubr.bf16.mxu0 %v1970
        %2268 = vmatmul.mubr.bf16.gmra.mxu0 %v1967
        %v2269 = vpop.f32.mrf.mxu0
        %v2270 = vadd.f32 0.0, %v2269
        %v2271 = vpop.f32.mrf.mxu0
        %v2272 = vpop.f32.mrf.mxu0
        %v2273 = vadd.f32 0.0, %v2272
        %v2274 = vpop.f32.mrf.mxu0
        %2275 = vdwg.mxu0
        %v2276 = vrcp.pop %v2005
        %v2277 = vrcp.pop %v2008
        %v2278 = vrcp.pop %v2011
        %v2279 = vrcp.pop %v2014
        %v2280 = vrcp.pop %v2017
        %v2281 = vrcp.pop %v2020
        %v2282 = vrcp.pop %v2023
        %v2283 = vrcp.pop %v2026
        %v2284 = vrcp.pop %v2029
        %v2285 = vrcp.pop %v2032
        %v2286 = vrcp.pop %v2035
        %v2287 = vrcp.pop %v2038
        %v2288 = vrcp.pop %v2041
        %v2289 = vrcp.pop %v2044
        %v2290 = vrcp.pop %v2047
        %v2291 = vrcp.pop %v2050
        %v2292 = vmul.f32 %v2214, %v2276
        %v2293 = vmul.f32 %v2217, %v2277
        %v2294 = vmul.f32 %v2222, %v2278
        %v2295 = vmul.f32 %v2225, %v2279
        %v2296 = vmul.f32 %v2230, %v2280
        %v2297 = vmul.f32 %v2233, %v2281
        %v2298 = vmul.f32 %v2238, %v2282
        %v2299 = vmul.f32 %v2241, %v2283
        %v2300 = vmul.f32 %v2246, %v2284
        %v2301 = vmul.f32 %v2249, %v2285
        %v2302 = vmul.f32 %v2254, %v2286
        %v2303 = vmul.f32 %v2257, %v2287
        %v2304 = vmul.f32 %v2262, %v2288
        %v2305 = vmul.f32 %v2265, %v2289
        %v2306 = vmul.f32 %v2270, %v2290
        %v2307 = vmul.f32 %v2273, %v2291
        %v2308 = vpack.c.bf16 %v2293, %v2292
        %v2309 = vpack.c.bf16 %v2295, %v2294
        %v2310 = vpack.c.bf16 %v2297, %v2296
        %v2311 = vpack.c.bf16 %v2299, %v2298
        %v2312 = vpack.c.bf16 %v2301, %v2300
        %v2313 = vpack.c.bf16 %v2303, %v2302
        %v2314 = vpack.c.bf16 %v2305, %v2304
        %v2315 = vpack.c.bf16 %v2307, %v2306
        %v2316 = vld [vmem:[#allocation14] sm:$0xf]
        %v2317 = vld [vmem:[#allocation14 + $0x4] sm:$0xf]
        %v2318 = vld [vmem:[#allocation14 + $0x8] sm:$0xf]
        %v2319 = vld [vmem:[#allocation14 + $0xc] sm:$0xf]
        %v2320 = vld [vmem:[#allocation14 + $0x10] sm:$0xf]
        %v2321 = vld [vmem:[#allocation14 + $0x14] sm:$0xf]
        %v2322 = vld [vmem:[#allocation14 + $0x18] sm:$0xf]
        %v2323 = vld [vmem:[#allocation14 + $0x1c] sm:$0xf]
        %v2324 = vld [vmem:[#allocation14 + $0x20] sm:$0xf]
        %v2325 = vld [vmem:[#allocation14 + $0x24] sm:$0xf]
        %v2326 = vld [vmem:[#allocation14 + $0x28] sm:$0xf]
        %v2327 = vld [vmem:[#allocation14 + $0x2c] sm:$0xf]
        %v2328 = vld [vmem:[#allocation14 + $0x30] sm:$0xf]
        %v2329 = vld [vmem:[#allocation14 + $0x34] sm:$0xf]
        %v2330 = vld [vmem:[#allocation14 + $0x38] sm:$0xf]
        %v2331 = vld [vmem:[#allocation14 + $0x3c] sm:$0xf]
        %v2332 = vld [vmem:[%s9] sm:$0x1]
        %v2334 = vlaneseq
        %v2335 = vshrl.u32 %v2334, 7
        %v2336 = vsub.s32 0, %v2335
        %v2337 = vrot.slane %v2332, %v2336
        %v2355 = vunpack.c.l.b16 %v2316
        %v2356 = vunpack.c.l.b16 %v2317
        %v2357 = vunpack.c.l.b16 %v2318
        %v2358 = vunpack.c.l.b16 %v2319
        %v2359 = vunpack.c.l.b16 %v2320
        %v2360 = vunpack.c.l.b16 %v2321
        %v2361 = vunpack.c.l.b16 %v2322
        %v2362 = vunpack.c.l.b16 %v2323
        %v2363 = vunpack.c.l.b16 %v2324
        %v2364 = vunpack.c.l.b16 %v2325
        %v2365 = vunpack.c.l.b16 %v2326
        %v2366 = vunpack.c.l.b16 %v2327
        %v2367 = vunpack.c.l.b16 %v2328
        %v2368 = vunpack.c.l.b16 %v2329
        %v2369 = vunpack.c.l.b16 %v2330
        %v2370 = vunpack.c.l.b16 %v2331
        %v2371 = vpack.c.b16 %v2356, %v2355
        %v2372 = vpack.c.b16 %v2358, %v2357
        %v2373 = vpack.c.b16 %v2360, %v2359
        %v2374 = vpack.c.b16 %v2362, %v2361
        %v2375 = vpack.c.b16 %v2364, %v2363
        %v2376 = vpack.c.b16 %v2366, %v2365
        %v2377 = vpack.c.b16 %v2368, %v2367
        %v2378 = vpack.c.b16 %v2370, %v2369
        %2387 = vmatprep.subr.bf16.mxu0 0
        %2388 = vmatpush1.bf16.msra.mxu0 %v2378
        %2389 = vmatprep.subr.bf16.mxu0 0
        %2390 = vmatpush1.bf16.msra.mxu0 %v2377
        %2391 = vmatprep.subr.bf16.mxu0 0
        %2392 = vmatpush1.bf16.msra.mxu0 %v2376
        %2393 = vmatprep.subr.bf16.mxu0 0
        %2394 = vmatpush1.bf16.msra.mxu0 %v2375
        %2395 = vmatprep.subr.bf16.mxu0 0
        %2396 = vmatpush1.bf16.msra.mxu0 %v2374
        %2397 = vmatprep.subr.bf16.mxu0 0
        %2398 = vmatpush1.bf16.msra.mxu0 %v2373
        %2399 = vmatprep.subr.bf16.mxu0 0
        %2400 = vmatpush1.bf16.msra.mxu0 %v2372
        %2401 = vmatprep.subr.bf16.mxu0 0
        %2402 = vmatpush1.bf16.msra.mxu0 %v2371
        %2403 = vmatprep.subr.bf16.mxu0 0
        %2404 = vmatpush2.bf16.msra.mxu0 0
        %2405 = vmatprep.subr.bf16.mxu0 0
        %2406 = vmatpush2.bf16.msra.mxu0 0
        %2407 = vmatprep.subr.bf16.mxu0 0
        %2408 = vmatpush2.bf16.msra.mxu0 0
        %2409 = vmatprep.subr.bf16.mxu0 0
        %2410 = vmatpush2.bf16.msra.mxu0 0
        %2411 = vmatprep.subr.bf16.mxu0 0
        %2412 = vmatpush2.bf16.msra.mxu0 0
        %2413 = vmatprep.subr.bf16.mxu0 0
        %2414 = vmatpush2.bf16.msra.mxu0 0
        %2415 = vmatprep.subr.bf16.mxu0 0
        %2416 = vmatpush2.bf16.msra.mxu0 0
        %2417 = vmatprep.subr.bf16.mxu0 0
        %2418 = vmatpush2.bf16.msra.mxu0 0
        %2419 = vmatprep.mubr.bf16.mxu0 0
        %2420 = vmatmul.mubr.bf16.gmra.mxu0 %v2308
        %v2421 = vpop.f32.mrf.mxu0
        %v2422 = vadd.f32 %v2337, %v2421
        %v2423 = vpop.f32.mrf.mxu0
        %v2424 = vpop.f32.mrf.mxu0
        %v2425 = vadd.f32 %v2337, %v2424
        %v2426 = vpop.f32.mrf.mxu0
        %2427 = vmatprep.mubr.bf16.mxu0 0
        %2428 = vmatmul.mubr.bf16.gmra.mxu0 %v2309
        %v2429 = vpop.f32.mrf.mxu0
        %v2430 = vadd.f32 %v2337, %v2429
        %v2431 = vpop.f32.mrf.mxu0
        %v2432 = vpop.f32.mrf.mxu0
        %v2433 = vadd.f32 %v2337, %v2432
        %v2434 = vpop.f32.mrf.mxu0
        %2435 = vmatprep.mubr.bf16.mxu0 0
        %2436 = vmatmul.mubr.bf16.gmra.mxu0 %v2310
        %v2437 = vpop.f32.mrf.mxu0
        %v2438 = vadd.f32 %v2337, %v2437
        %v2439 = vpop.f32.mrf.mxu0
        %v2440 = vpop.f32.mrf.mxu0
        %v2441 = vadd.f32 %v2337, %v2440
        %v2442 = vpop.f32.mrf.mxu0
        %2443 = vmatprep.mubr.bf16.mxu0 0
        %2444 = vmatmul.mubr.bf16.gmra.mxu0 %v2311
        %v2445 = vpop.f32.mrf.mxu0
        %v2446 = vadd.f32 %v2337, %v2445
        %v2447 = vpop.f32.mrf.mxu0
        %v2448 = vpop.f32.mrf.mxu0
        %v2449 = vadd.f32 %v2337, %v2448
        %v2450 = vpop.f32.mrf.mxu0
        %2451 = vmatprep.mubr.bf16.mxu0 0
        %2452 = vmatmul.mubr.bf16.gmra.mxu0 %v2312
        %v2453 = vpop.f32.mrf.mxu0
        %v2454 = vadd.f32 %v2337, %v2453
        %v2455 = vpop.f32.mrf.mxu0
        %v2456 = vpop.f32.mrf.mxu0
        %v2457 = vadd.f32 %v2337, %v2456
        %v2458 = vpop.f32.mrf.mxu0
        %2459 = vmatprep.mubr.bf16.mxu0 0
        %2460 = vmatmul.mubr.bf16.gmra.mxu0 %v2313
        %v2461 = vpop.f32.mrf.mxu0
        %v2462 = vadd.f32 %v2337, %v2461
        %v2463 = vpop.f32.mrf.mxu0
        %v2464 = vpop.f32.mrf.mxu0
        %v2465 = vadd.f32 %v2337, %v2464
        %v2466 = vpop.f32.mrf.mxu0
        %2467 = vmatprep.mubr.bf16.mxu0 0
        %2468 = vmatmul.mubr.bf16.gmra.mxu0 %v2314
        %v2469 = vpop.f32.mrf.mxu0
        %v2470 = vadd.f32 %v2337, %v2469
        %v2471 = vpop.f32.mrf.mxu0
        %v2472 = vpop.f32.mrf.mxu0
        %v2473 = vadd.f32 %v2337, %v2472
        %v2474 = vpop.f32.mrf.mxu0
        %2475 = vmatprep.mubr.bf16.mxu0 0
        %2476 = vmatmul.mubr.bf16.gmra.mxu0 %v2315
        %v2477 = vpop.f32.mrf.mxu0
        %v2478 = vadd.f32 %v2337, %v2477
        %v2479 = vpop.f32.mrf.mxu0
        %v2480 = vpop.f32.mrf.mxu0
        %v2481 = vadd.f32 %v2337, %v2480
        %v2482 = vpop.f32.mrf.mxu0
        %2483 = vdwg.mxu0
        %v2484 = vadd.f32 %v1340, %v2422
        %v2485 = vadd.f32 %v1341, %v2425
        %v2486 = vadd.f32 %v1342, %v2430
        %v2487 = vadd.f32 %v1343, %v2433
        %v2488 = vadd.f32 %v1344, %v2438
        %v2489 = vadd.f32 %v1345, %v2441
        %v2490 = vadd.f32 %v1346, %v2446
        %v2491 = vadd.f32 %v1347, %v2449
        %v2492 = vadd.f32 %v1348, %v2454
        %v2493 = vadd.f32 %v1349, %v2457
        %v2494 = vadd.f32 %v1350, %v2462
        %v2495 = vadd.f32 %v1351, %v2465
        %v2496 = vadd.f32 %v1352, %v2470
        %v2497 = vadd.f32 %v1353, %v2473
        %v2498 = vadd.f32 %v1354, %v2478
        %v2499 = vadd.f32 %v1355, %v2481
        %2500 = vst [vmem:[%s460] sm:$0xff] %v2484
        %2501 = vst [vmem:[%s460 + $0x8] sm:$0xff] %v2485
        %2502 = vst [vmem:[%s460 + $0x10] sm:$0xff] %v2486
        %2503 = vst [vmem:[%s460 + $0x18] sm:$0xff] %v2487
        %2504 = vst [vmem:[%s460 + $0x20] sm:$0xff] %v2488
        %2505 = vst [vmem:[%s460 + $0x28] sm:$0xff] %v2489
        %2506 = vst [vmem:[%s460 + $0x30] sm:$0xff] %v2490
        %2507 = vst [vmem:[%s460 + $0x38] sm:$0xff] %v2491
        %2508 = vst [vmem:[%s460 + $0x40] sm:$0xff] %v2492
        %2509 = vst [vmem:[%s460 + $0x48] sm:$0xff] %v2493
        %2510 = vst [vmem:[%s460 + $0x50] sm:$0xff] %v2494
        %2511 = vst [vmem:[%s460 + $0x58] sm:$0xff] %v2495
        %2512 = vst [vmem:[%s460 + $0x60] sm:$0xff] %v2496
        %2513 = vst [vmem:[%s460 + $0x68] sm:$0xff] %v2497
        %2514 = vst [vmem:[%s460 + $0x70] sm:$0xff] %v2498
        %2515 = vst [vmem:[%s460 + $0x78] sm:$0xff] %v2499
        %s2516 = sand.u32 %s277, 1
        %s2517 = scalar_lea.sflag [#allocation8], %s2516
        %s2518 = sand.u32 %s277, 1
        %s2519 = smul.addr %s2518, 128
        %s2520 = scalar_lea.vmem [#allocation15], %s2519
        // Predicated region
        $region106: #{tpu_custom_call.1} parent=59 // pred_check
          %p2521 = pneg %p287
        $region107: #{tpu_custom_call.1} parent=59 // pred_check_branch
          %2523 = sbr.rel (%p2521) target = $region109
        $region108: #{tpu_custom_call.1} parent=59 // pred_region
          %s2524 = smul.u32 %s35, 2
          %s2525 = sadd.s32 %s2524, %s36
          %s2526 = smul.u32 16, %s2525
          %s2528 = ssub.s32 2048, 2048
          %2529 = vsyncadd %s2517, %s2528
          %s2530 = smul.addr %s34, 32
          %s2531 = sadd.s32 %s2526, %s2530
          %s2532 = smul.addr %s2531, 128
          %s2533 = scalar_lea.hbm %s10, %s2532
          %s2534 = sshll.u32 %s2520, 4
          %s2535 = int_to_ptr.vmem [resolvable:$true] %s2534
          %2540 = dma.vmem_to_hbm [thread:$0]  %s2535, 2048, %s2533, %s2517, 128, 128, 8
        $region109: #{tpu_custom_call.1} parent=59 // pred_fallthru
          _
      $region60: #{tpu_custom_call.1} parent=5 // pred_fallthru
        _
      %p2541 = scmp.le.s32.totalorder 2, %s24
      // Predicated region
      $region110: #{tpu_custom_call.1} parent=5 // pred_check
        %p2542 = pneg %p2541
      $region111: #{tpu_custom_call.1} parent=5 // pred_check_branch
        %2544 = sbr.rel (%p2542) target = $region113
      $region112: #{tpu_custom_call.1} parent=5 // pred_region
        %s2545 = ssub.s32 %s24, 2
        // Predicated region
        $region114: #{tpu_custom_call.1} parent=112 // pred_check
          %p2546 = pneg %p293
        $region115: #{tpu_custom_call.1} parent=112 // pred_check_branch
          %2548 = sbr.rel (%p2546) target = $region117
        $region116: #{tpu_custom_call.1} parent=112 // pred_region
          %s2549 = sand.u32 %s278, 1
          %s2550 = scalar_lea.sflag [#allocation8], %s2549
          %s2551 = sand.u32 %s278, 1
          %s2552 = smul.addr %s2551, 128
          %s2553 = scalar_lea.vmem [#allocation15], %s2552
          %2554 = dma.done %s2550, 2048
        $region117: #{tpu_custom_call.1} parent=112 // pred_fallthru
          _
      $region113: #{tpu_custom_call.1} parent=5 // pred_fallthru
        _
    $region6: #{tpu_custom_call.1} parent=1 // loop_footer
      %s28 = sadd.s32 1, %s24
    $region7: #{tpu_custom_call.1} parent=1 // loop_footer_branch
      %23 = sbr.rel target = $region3
    $region8: #{tpu_custom_call.1} parent=1 // loop_exit
      _
    %2555 = vsyncpa [#allocation7], 1
    %s2556 = scalar_lea.sflag [#allocation7], 1
    %2557 = vsyncpa %s2556, 1
    %2558 = vsyncpa [#allocation10], 1
    %2559 = vsyncpa [#allocation13], 1
    %2560 = vsyncpa [#allocation8], 1
    %s2561 = scalar_lea.sflag [#allocation8], 1
    %2562 = vsyncpa %s2561, 1

</llo_original>
